<compile_context>
chip_gen: v7x
topology: tpu7x:2x2x1
jax: 0.10.0
libtpu: 0.0.40
codegen_flags: <defaults>
</compile_context>

<pallas_src>
import functools

import jax
import jax.numpy as jnp
import numpy as np
from jax.experimental import pallas as pl
from jax.experimental.pallas import tpu as pltpu

NUM_HEADS = 4          # nn.MultiheadAttention(hidden//3, num_heads=4)
LANE = 128             # TPU lane width


def _round_up(x, m):
    return (x + m - 1) // m * m


def _w_layout(hidden):
    """Row layout (name, n_rows) of the packed weight slab, in order."""
    split = hidden // 3
    return (("wih_f", split), ("wih_r", split),
            ("wqkv1", split), ("wo1", split),
            ("wqkv2", split), ("wo2", split),
            ("wf1", split), ("wf2", split),
            ("wd", 3 * split))


_B_ORDER = ("b_f", "b_r", "bqkv1", "bo1", "bqkv2", "bo2", "bf1", "bf2", "bd")


# --------------------------------------------------------------------------- #
# Phase 1: attention pooling  softmax(Linear(H,1), dim=seq) then weighted sum #
# --------------------------------------------------------------------------- #
def _pool_kernel(enc_ref, wp_ref, bp_ref, pooled_ref):
    # Encoder arrives as bf16 (halved HBM traffic); upcast immediately so all
    # elementwise / softmax math runs in f32 (v5e VPU/EUP have no bf16).
    enc = enc_ref[...].astype(jnp.float32)                      # (Bt, S, H)
    wp = wp_ref[...][None, :, :]                                # (1, 1, H)
    bp = bp_ref[0, 0]
    scores = jnp.sum(enc * wp, axis=-1, keepdims=True) + bp     # (Bt, S, 1)
    m = jnp.max(scores, axis=1, keepdims=True)                  # softmax over seq
    e = jnp.exp(scores - m)
    w = e * pl.reciprocal(jnp.sum(e, axis=1, keepdims=True), approx=True)
    pooled_ref[...] = jnp.sum(w * enc, axis=1)                  # (Bt, H)


# --------------------------------------------------------------------------- #
# Phase 2: BiLSTM(len-1) + 2x MHA + FFN head on the pooled full batch         #
# --------------------------------------------------------------------------- #
def _make_head_kernel(hidden, num_labels, out_lanes):
    split = hidden // 3
    lstm_hid = hidden // 6
    hd = split // NUM_HEADS
    scale = 1.0 / float(np.sqrt(hd))

    offs, r = {}, 0
    for name, nrows in _w_layout(hidden):
        offs[name] = r
        r += nrows
    b_rows = {name: i for i, name in enumerate(_B_ORDER)}

    def w_of(ref, name, nrows, ncols):
        o = offs[name]
        return ref[o:o + nrows, 0:ncols]

    def b_of(ref, name, ncols):
        i = b_rows[name]
        return ref[i:i + 1, 0:ncols]

    def mha(x, w_ref, b_ref, tag):
        # NOTE: attention intentionally mixes across the batch dimension
        # (L == B), exactly what the original permute(1,0,2)+batch_first does.
        qkv = (jnp.dot(x, w_of(w_ref, "wqkv" + tag, split, 3 * split),
                       preferred_element_type=jnp.float32)
               + b_of(b_ref, "bqkv" + tag, 3 * split))          # fused QKV (L, 3E)
        wo = w_of(w_ref, "wo" + tag, split, split)
        out = b_of(b_ref, "bo" + tag, split)                    # (1, split)
        # 4 static head steps over lane slices; the output projection is folded
        # in as per-head partial dots (no concat, no lane-splitting reshape).
        for h in range(NUM_HEADS):
            q = qkv[:, h * hd:(h + 1) * hd]
            k = qkv[:, split + h * hd:split + (h + 1) * hd]
            v = qkv[:, 2 * split + h * hd:2 * split + (h + 1) * hd]
            s = jax.lax.dot_general(q, k, (((1,), (1,)), ((), ())),
                                    preferred_element_type=jnp.float32) * scale
            m = jnp.max(s, axis=-1, keepdims=True)
            e = jnp.exp(s - m)
            p = e * pl.reciprocal(jnp.sum(e, axis=-1, keepdims=True), approx=True)
            oh = jnp.dot(p, v, preferred_element_type=jnp.float32)     # (L, hd)
            out = out + jnp.dot(oh, wo[h * hd:(h + 1) * hd, :],
                                preferred_element_type=jnp.float32)
        return out                                                     # (L, split)

    def kernel(pooled_ref, w_ref, b_ref, out_ref):
        pooled = pooled_ref[...]                         # (B, hidden) f32
        B = pooled.shape[0]
        c0 = pooled[:, 0:split]
        c1 = pooled[:, split:2 * split]
        c2 = pooled[:, 2 * split:3 * split]

        wd_off = offs["wd"]
        # Logits accumulated with partial dots against the packed dense weight
        # (padded lanes of wd/bd are zero) -> no concat of branch outputs.
        logits = jnp.zeros((B, out_lanes), jnp.float32) + b_of(b_ref, "bd", out_lanes)

        # ---- BiLSTM over a length-1 sequence (h0 = c_init = 0 => W_hh drops) ----
        col = 0
        for name_w, name_b in (("wih_f", "b_f"), ("wih_r", "b_r")):
            gates = (jnp.dot(c0, w_of(w_ref, name_w, split, 4 * lstm_hid),
                             preferred_element_type=jnp.float32)
                     + b_of(b_ref, name_b, 4 * lstm_hid))
            i_g = jax.nn.sigmoid(gates[:, 0:lstm_hid])
            # forget gate irrelevant: the initial cell state is zero
            g_g = jnp.tanh(gates[:, 2 * lstm_hid:3 * lstm_hid])
            o_g = jax.nn.sigmoid(gates[:, 3 * lstm_hid:4 * lstm_hid])
            h_dir = o_g * jnp.tanh(i_g * g_g)                    # (B, lstm_hid)
            logits = logits + jnp.dot(
                h_dir, w_ref[wd_off + col:wd_off + col + lstm_hid, 0:out_lanes],
                preferred_element_type=jnp.float32)
            col += lstm_hid

        # ---- self-attention branch ----
        attn_out = mha(c1, w_ref, b_ref, "1")
        logits = logits + jnp.dot(
            attn_out, w_ref[wd_off + split:wd_off + 2 * split, 0:out_lanes],
            preferred_element_type=jnp.float32)

        # ---- feedforward + attention branch ----
        ff = (jnp.dot(c2, w_of(w_ref, "wf1", split, split),
                      preferred_element_type=jnp.float32) + b_of(b_ref, "bf1", split))
        ff = jnp.maximum(ff, 0.0)
        ff = (jnp.dot(ff, w_of(w_ref, "wf2", split, split),
                      preferred_element_type=jnp.float32) + b_of(b_ref, "bf2", split))
        attn_ff = mha(ff, w_ref, b_ref, "2")
        logits = logits + jnp.dot(
            attn_ff, w_ref[wd_off + 2 * split:wd_off + 3 * split, 0:out_lanes],
            preferred_element_type=jnp.float32)

        # ---- lane-dense softmax: mask padded logit lanes before normalizing ----
        lane = jax.lax.broadcasted_iota(jnp.int32, (B, out_lanes), 1)
        logits = jnp.where(lane < num_labels, logits, -1e30)
        m = jnp.max(logits, axis=-1, keepdims=True)
        e = jnp.exp(logits - m)
        out_ref[...] = e * pl.reciprocal(jnp.sum(e, axis=-1, keepdims=True),
                                         approx=True)

    return kernel


# --------------------------------------------------------------------------- #
# Wrapper                                                                      #
# --------------------------------------------------------------------------- #
@functools.partial(jax.jit, static_argnames=("num_labels",))
def threat_detection_forward(encoder_outputs, wp, bp, wslab, bslab, num_labels):
    B, S, H = encoder_outputs.shape

    # Phase 1: pooling over the (only) large tensor, gridded over batch.
    bt = B if B <= 8 else 8
    pooled = pl.pallas_call(
        _pool_kernel,
        out_shape=jax.ShapeDtypeStruct((B, H), jnp.float32),
        grid=(pl.cdiv(B, bt),),
        in_specs=[
            pl.BlockSpec((bt, S, H), lambda b: (b, 0, 0)),
            pl.BlockSpec((1, H), lambda b: (0, 0)),
            pl.BlockSpec((1, 1), lambda b: (0, 0),
                         memory_space=pltpu.MemorySpace.SMEM),
        ],
        out_specs=pl.BlockSpec((bt, H), lambda b: (b, 0)),
        compiler_params=pltpu.CompilerParams(
            dimension_semantics=("parallel",),
            vmem_limit_bytes=32 * 1024 * 1024),
    )(encoder_outputs, wp, bp)

    # Phase 2: tiny head on the FULL batch (MHA attends across batch), with all
    # parameters packed into two lane-dense slabs; lane-dense padded output.
    out_lanes = _round_up(num_labels, LANE)
    head_kernel = _make_head_kernel(H, num_labels, out_lanes)
    probs_padded = pl.pallas_call(
        head_kernel,
        out_shape=jax.ShapeDtypeStruct((B, out_lanes), jnp.float32),
        in_specs=[pl.BlockSpec(memory_space=pltpu.MemorySpace.VMEM)] * 3,
        out_specs=pl.BlockSpec(memory_space=pltpu.MemorySpace.VMEM),
        compiler_params=pltpu.CompilerParams(
            vmem_limit_bytes=32 * 1024 * 1024),
    )(pooled, wslab, bslab)
    return probs_padded[:, :num_labels]


# --------------------------------------------------------------------------- #
# Parameter construction / packing / pure-JAX reference                        #
# --------------------------------------------------------------------------- #
def init_params(key, hidden, num_labels):
    split = hidden // 3
    lstm_hid = hidden // 6
    names = ["wp", "bp", "wih_f", "b_f", "wih_r", "b_r",
             "wqkv1", "bqkv1", "wo1", "bo1",
             "wqkv2", "bqkv2", "wo2", "bo2",
             "wf1", "bf1", "wf2", "bf2", "wd", "bd"]
    keys = dict(zip(names, jax.random.split(key, len(names))))

    def nrm(k, shape, scale=0.05):
        return (scale * jax.random.normal(keys[k], shape)).astype(jnp.float32)

    p = {
        "wp": nrm("wp", (1, hidden)),            # attention_pooling Linear(H,1) as row
        "bp": nrm("bp", (1, 1)),
        "wih_f": nrm("wih_f", (split, 4 * lstm_hid)),   # LSTM W_ih^T fwd (i,f,g,o)
        "b_f": nrm("b_f", (4 * lstm_hid,)),             # b_ih + b_hh combined
        "wih_r": nrm("wih_r", (split, 4 * lstm_hid)),   # reverse direction
        "b_r": nrm("b_r", (4 * lstm_hid,)),
        "wf1": nrm("wf1", (split, split)), "bf1": nrm("bf1", (split,)),
        "wf2": nrm("wf2", (split, split)), "bf2": nrm("bf2", (split,)),
        "wd": nrm("wd", (3 * split, num_labels)), "bd": nrm("bd", (num_labels,)),
    }
    for tag in ("1", "2"):                              # self_attention / attention_layer
        p["wqkv" + tag] = nrm("wqkv" + tag, (split, 3 * split))   # fused in_proj^T
        p["bqkv" + tag] = nrm("bqkv" + tag, (3 * split,))
        p["wo" + tag] = nrm("wo" + tag, (split, split))
        p["bo" + tag] = nrm("bo" + tag, (split,))
    return p


def pack_params(p, hidden, num_labels):
    """Pack all head parameters into one lane-dense weight slab + one bias slab."""
    split = hidden // 3
    lstm_hid = hidden // 6
    layout = _w_layout(hidden)
    rows = _round_up(sum(n for _, n in layout), 8)
    cols = _round_up(max(4 * lstm_hid, 3 * split, num_labels), LANE)

    wslab = np.zeros((rows, cols), np.float32)
    r = 0
    for name, nrows in layout:
        w = np.asarray(p[name], np.float32)
        wslab[r:r + nrows, :w.shape[1]] = w
        r += nrows

    bslab = np.zeros((_round_up(len(_B_ORDER), 8), cols), np.float32)
    for i, name in enumerate(_B_ORDER):
        b = np.asarray(p[name], np.float32)
        bslab[i, :b.shape[0]] = b

    return (jnp.asarray(p["wp"]), jnp.asarray(p["bp"]),
            jnp.asarray(wslab), jnp.asarray(bslab))


def reference_forward(enc, p):
    """Pure-JAX reference mirroring the PyTorch forward semantics."""
    B, S, H = enc.shape
    split = H // 3
    hd = split // NUM_HEADS
    scores = jnp.sum(enc * p["wp"], axis=-1, keepdims=True) + p["bp"][0, 0]
    w = jax.nn.softmax(scores, axis=1)
    pooled = jnp.sum(w * enc, axis=1)
    c0, c1, c2 = pooled[:, :split], pooled[:, split:2 * split], pooled[:, 2 * split:]

    hdirs = []
    for wih, b in ((p["wih_f"], p["b_f"]), (p["wih_r"], p["b_r"])):
        gates = c0 @ wih + b
        hid = gates.shape[-1] // 4
        i_g = jax.nn.sigmoid(gates[:, :hid])
        g_g = jnp.tanh(gates[:, 2 * hid:3 * hid])
        o_g = jax.nn.sigmoid(gates[:, 3 * hid:])
        hdirs.append(o_g * jnp.tanh(i_g * g_g))
    rnn_out = jnp.concatenate(hdirs, axis=-1)

    def mha(x, tag):
        qkv = x @ p["wqkv" + tag] + p["bqkv" + tag]
        q, k, v = qkv[:, :split], qkv[:, split:2 * split], qkv[:, 2 * split:]
        outs = []
        for h in range(NUM_HEADS):
            qh = q[:, h * hd:(h + 1) * hd]
            kh = k[:, h * hd:(h + 1) * hd]
            vh = v[:, h * hd:(h + 1) * hd]
            s = qh @ kh.T / np.sqrt(hd)
            outs.append(jax.nn.softmax(s, axis=-1) @ vh)
        return jnp.concatenate(outs, axis=-1) @ p["wo" + tag] + p["bo" + tag]

    attn_out = mha(c1, "1")
    ff = jnp.maximum(c2 @ p["wf1"] + p["bf1"], 0.0) @ p["wf2"] + p["bf2"]
    attn_ff = mha(ff, "2")
    combined = jnp.concatenate([rnn_out, attn_out, attn_ff], axis=-1)
    return jax.nn.softmax(combined @ p["wd"] + p["bd"], axis=-1)


if __name__ == "__main__":
    B, S, HIDDEN, NUM_LABELS = 2, 8, 96, 4      # hidden//3 = 32, divisible by 4 heads

    key = jax.random.PRNGKey(0)
    k_enc, k_par = jax.random.split(key)
    # Stand-in for the RoBERTa last_hidden_state (see TODO(synk) at top),
    # streamed to the kernel as bf16 (the f32 original is kept for the reference).
    encoder_f32 = jax.random.normal(k_enc, (B, S, HIDDEN), dtype=jnp.float32)
    encoder_bf16 = encoder_f32.astype(jnp.bfloat16)

    params = init_params(k_par, HIDDEN, NUM_LABELS)
    wp, bp, wslab, bslab = pack_params(params, HIDDEN, NUM_LABELS)

    probs = threat_detection_forward(encoder_bf16, wp, bp, wslab, bslab,
                                     num_labels=NUM_LABELS)
    probs = jax.block_until_ready(probs)

    # Reference evaluated on the same bf16-rounded input the kernel sees.
    ref = reference_forward(encoder_bf16.astype(jnp.float32), params)
    np.testing.assert_allclose(np.asarray(probs), np.asarray(ref),
                               atol=5e-3, rtol=5e-3)
    assert probs.shape == (B, NUM_LABELS)
    print("KERNEL_OK")
</pallas_src>

<mosaic_0001>
module attributes {stable_mosaic.version = 11 : i64} {
  func.func @_pool_kernel(%arg0: i32, %arg1: memref<2x8x96xbf16, #tpu.memory_space<vmem>>, %arg2: memref<1x96xf32, #tpu.memory_space<vmem>>, %arg3: memref<1x1xf32, #tpu.memory_space<smem>>, %arg4: memref<2x96xf32, #tpu.memory_space<vmem>>) attributes {dimension_semantics = [#tpu.dimension_semantics<parallel>], iteration_bounds = array<i64: 1>, scalar_prefetch = 0 : i64, scratch_operands = 0 : i64, tpu.core_type = #tpu.core_type<tc>, window_params = [{transform_indices = @transform_0, window_bounds = array<i64: 2, 8, 96>}, {pipeline_mode = #tpu.pipeline_mode<synchronous>, transform_indices = @transform_1, window_bounds = array<i64: 1, 96>}, {transform_indices = @transform_2, window_bounds = array<i64: 1, 1>}, {transform_indices = @transform_3, window_bounds = array<i64: 2, 96>}]} {
    %c0 = arith.constant 0 : index
    %c0_0 = arith.constant 0 : index
    %c0_1 = arith.constant 0 : index
    %0 = vector.load %arg1[%c0, %c0_0, %c0_1] : memref<2x8x96xbf16, #tpu.memory_space<vmem>>, vector<2x8x96xbf16>
    %1 = arith.extf %0 : vector<2x8x96xbf16> to vector<2x8x96xf32>
    %c0_2 = arith.constant 0 : index
    %c0_3 = arith.constant 0 : index
    %2 = vector.load %arg2[%c0_2, %c0_3] : memref<1x96xf32, #tpu.memory_space<vmem>>, vector<1x96xf32>
    %3 = vector.shape_cast %2 : vector<1x96xf32> to vector<1x1x96xf32>
    %c0_4 = arith.constant 0 : index
    %c0_5 = arith.constant 0 : index
    %4 = memref.load %arg3[%c0_4, %c0_5] : memref<1x1xf32, #tpu.memory_space<smem>>
    %5 = vector.broadcast %3 : vector<1x1x96xf32> to vector<2x8x96xf32>
    %6 = arith.mulf %1, %5 : vector<2x8x96xf32>
    %cst = arith.constant dense<0.000000e+00> : vector<2x8xf32>
    %7 = vector.multi_reduction <add>, %6, %cst [2] : vector<2x8x96xf32> to vector<2x8xf32>
    %8 = vector.shape_cast %7 : vector<2x8xf32> to vector<2x8x1xf32>
    %9 = vector.broadcast %4 : f32 to vector<2x8x1xf32>
    %10 = arith.addf %8, %9 : vector<2x8x1xf32>
    %cst_6 = arith.constant dense<0xFF800000> : vector<2x1xf32>
    %11 = vector.multi_reduction <maximumf>, %10, %cst_6 [1] : vector<2x8x1xf32> to vector<2x1xf32>
    %12 = vector.shape_cast %11 : vector<2x1xf32> to vector<2x1x1xf32>
    %13 = vector.broadcast %12 : vector<2x1x1xf32> to vector<2x8x1xf32>
    %14 = arith.subf %10, %13 : vector<2x8x1xf32>
    %15 = math.exp %14 : vector<2x8x1xf32>
    %cst_7 = arith.constant dense<0.000000e+00> : vector<2x1xf32>
    %16 = vector.multi_reduction <add>, %15, %cst_7 [1] : vector<2x8x1xf32> to vector<2x1xf32>
    %17 = vector.shape_cast %16 : vector<2x1xf32> to vector<2x1x1xf32>
    %18 = tpu.reciprocal %17 {approx = true} : vector<2x1x1xf32> -> vector<2x1x1xf32>
    %19 = vector.broadcast %18 : vector<2x1x1xf32> to vector<2x8x1xf32>
    %20 = arith.mulf %15, %19 : vector<2x8x1xf32>
    %21 = vector.broadcast %20 : vector<2x8x1xf32> to vector<2x8x96xf32>
    %22 = arith.mulf %21, %1 : vector<2x8x96xf32>
    %cst_8 = arith.constant dense<0.000000e+00> : vector<2x96xf32>
    %23 = vector.multi_reduction <add>, %22, %cst_8 [1] : vector<2x8x96xf32> to vector<2x96xf32>
    %c0_9 = arith.constant 0 : index
    %c0_10 = arith.constant 0 : index
    %24 = vector.load %arg4[%c0_9, %c0_10] : memref<2x96xf32, #tpu.memory_space<vmem>>, vector<2x96xf32>
    tpu.vector_store %arg4[%c0_9, %c0_10], %23 {strides = array<i32>} : memref<2x96xf32, #tpu.memory_space<vmem>>, vector<2x96xf32>,
    return
  }
  func.func @transform_0(%arg0: i32) -> (i32, i32, i32) {
    %c0_i32 = arith.constant 0 : i32
    %c0_i32_0 = arith.constant 0 : i32
    %c0_i32_1 = arith.constant 0 : i32
    return %arg0, %c0_i32, %c0_i32_0 : i32, i32, i32
  }
  func.func @transform_1(%arg0: i32) -> (i32, i32) {
    %c0_i32 = arith.constant 0 : i32
    %c0_i32_0 = arith.constant 0 : i32
    %c0_i32_1 = arith.constant 0 : i32
    return %c0_i32, %c0_i32_0 : i32, i32
  }
  func.func @transform_2(%arg0: i32) -> (i32, i32) {
    %c0_i32 = arith.constant 0 : i32
    %c0_i32_0 = arith.constant 0 : i32
    %c0_i32_1 = arith.constant 0 : i32
    return %c0_i32, %c0_i32_0 : i32, i32
  }
  func.func @transform_3(%arg0: i32) -> (i32, i32) {
    %c0_i32 = arith.constant 0 : i32
    %c0_i32_0 = arith.constant 0 : i32
    return %arg0, %c0_i32 : i32, i32
  }
}

module attributes {stable_mosaic.version = 11 : i64} {
  func.func @kernel(%arg0: memref<2x96xf32, #tpu.memory_space<vmem>>, %arg1: memref<352x128xf32, #tpu.memory_space<vmem>>, %arg2: memref<16x128xf32, #tpu.memory_space<vmem>>, %arg3: memref<2x128xf32, #tpu.memory_space<vmem>>) attributes {dimension_semantics = [], scalar_prefetch = 0 : i64, scratch_operands = 0 : i64, tpu.core_type = #tpu.core_type<tc>} {
    %c0 = arith.constant 0 : index
    %c0_0 = arith.constant 0 : index
    %0 = vector.load %arg0[%c0, %c0_0] : memref<2x96xf32, #tpu.memory_space<vmem>>, vector<2x96xf32>
    %1 = vector.extract_strided_slice %0 {offsets = [0, 0], sizes = [2, 32], strides = [1, 1]} : vector<2x96xf32> to vector<2x32xf32>
    %2 = vector.extract_strided_slice %0 {offsets = [0, 32], sizes = [2, 32], strides = [1, 1]} : vector<2x96xf32> to vector<2x32xf32>
    %3 = vector.extract_strided_slice %0 {offsets = [0, 64], sizes = [2, 32], strides = [1, 1]} : vector<2x96xf32> to vector<2x32xf32>
    %cst = arith.constant 0.000000e+00 : f32
    %4 = vector.broadcast %cst : f32 to vector<2x128xf32>
    %c8 = arith.constant 8 : index
    %c0_1 = arith.constant 0 : index
    %5 = vector.load %arg2[%c8, %c0_1] : memref<16x128xf32, #tpu.memory_space<vmem>>, vector<1x128xf32>
    %6 = vector.broadcast %5 : vector<1x128xf32> to vector<2x128xf32>
    %7 = arith.addf %4, %6 : vector<2x128xf32>
    %c0_2 = arith.constant 0 : index
    %c0_3 = arith.constant 0 : index
    %8 = vector.load %arg1[%c0_2, %c0_3] : memref<352x128xf32, #tpu.memory_space<vmem>>, vector<32x64xf32>
    %cst_4 = arith.constant dense<0.000000e+00> : vector<2x64xf32>
    %9 = tpu.matmul %1, %8, %cst_4 {dimension_numbers = #tpu.dot_dimension_numbers<[1], [0], [0], [1], [0, 0, 1, 1], [], []>} : vector<2x32xf32>, vector<32x64xf32>, vector<2x64xf32> -> vector<2x64xf32>
    %c0_5 = arith.constant 0 : index
    %c0_6 = arith.constant 0 : index
    %10 = vector.load %arg2[%c0_5, %c0_6] : memref<16x128xf32, #tpu.memory_space<vmem>>, vector<1x64xf32>
    %11 = vector.broadcast %10 : vector<1x64xf32> to vector<2x64xf32>
    %12 = arith.addf %9, %11 : vector<2x64xf32>
    %13 = vector.extract_strided_slice %12 {offsets = [0, 0], sizes = [2, 16], strides = [1, 1]} : vector<2x64xf32> to vector<2x16xf32>
    %14 = arith.negf %13 : vector<2x16xf32>
    %15 = math.exp %14 : vector<2x16xf32>
    %cst_7 = arith.constant 1.000000e+00 : f32
    %16 = vector.broadcast %cst_7 : f32 to vector<2x16xf32>
    %17 = arith.addf %16, %15 : vector<2x16xf32>
    %18 = arith.divf %16, %17 : vector<2x16xf32>
    %19 = vector.extract_strided_slice %12 {offsets = [0, 32], sizes = [2, 16], strides = [1, 1]} : vector<2x64xf32> to vector<2x16xf32>
    %20 = math.tanh %19 : vector<2x16xf32>
    %21 = vector.extract_strided_slice %12 {offsets = [0, 48], sizes = [2, 16], strides = [1, 1]} : vector<2x64xf32> to vector<2x16xf32>
    %22 = arith.negf %21 : vector<2x16xf32>
    %23 = math.exp %22 : vector<2x16xf32>
    %cst_8 = arith.constant 1.000000e+00 : f32
    %24 = vector.broadcast %cst_8 : f32 to vector<2x16xf32>
    %25 = arith.addf %24, %23 : vector<2x16xf32>
    %26 = arith.divf %24, %25 : vector<2x16xf32>
    %27 = arith.mulf %18, %20 : vector<2x16xf32>
    %28 = math.tanh %27 : vector<2x16xf32>
    %29 = arith.mulf %26, %28 : vector<2x16xf32>
    %c256 = arith.constant 256 : index
    %c0_9 = arith.constant 0 : index
    %30 = vector.load %arg1[%c256, %c0_9] : memref<352x128xf32, #tpu.memory_space<vmem>>, vector<16x128xf32>
    %cst_10 = arith.constant dense<0.000000e+00> : vector<2x128xf32>
    %31 = tpu.matmul %29, %30, %cst_10 {dimension_numbers = #tpu.dot_dimension_numbers<[1], [0], [0], [1], [0, 0, 1, 1], [], []>} : vector<2x16xf32>, vector<16x128xf32>, vector<2x128xf32> -> vector<2x128xf32>
    %32 = arith.addf %7, %31 : vector<2x128xf32>
    %c32 = arith.constant 32 : index
    %c0_11 = arith.constant 0 : index
    %33 = vector.load %arg1[%c32, %c0_11] : memref<352x128xf32, #tpu.memory_space<vmem>>, vector<32x64xf32>
    %cst_12 = arith.constant dense<0.000000e+00> : vector<2x64xf32>
    %34 = tpu.matmul %1, %33, %cst_12 {dimension_numbers = #tpu.dot_dimension_numbers<[1], [0], [0], [1], [0, 0, 1, 1], [], []>} : vector<2x32xf32>, vector<32x64xf32>, vector<2x64xf32> -> vector<2x64xf32>
    %c1 = arith.constant 1 : index
    %c0_13 = arith.constant 0 : index
    %35 = vector.load %arg2[%c1, %c0_13] : memref<16x128xf32, #tpu.memory_space<vmem>>, vector<1x64xf32>
    %36 = vector.broadcast %35 : vector<1x64xf32> to vector<2x64xf32>
    %37 = arith.addf %34, %36 : vector<2x64xf32>
    %38 = vector.extract_strided_slice %37 {offsets = [0, 0], sizes = [2, 16], strides = [1, 1]} : vector<2x64xf32> to vector<2x16xf32>
    %39 = arith.negf %38 : vector<2x16xf32>
    %40 = math.exp %39 : vector<2x16xf32>
    %cst_14 = arith.constant 1.000000e+00 : f32
    %41 = vector.broadcast %cst_14 : f32 to vector<2x16xf32>
    %42 = arith.addf %41, %40 : vector<2x16xf32>
    %43 = arith.divf %41, %42 : vector<2x16xf32>
    %44 = vector.extract_strided_slice %37 {offsets = [0, 32], sizes = [2, 16], strides = [1, 1]} : vector<2x64xf32> to vector<2x16xf32>
    %45 = math.tanh %44 : vector<2x16xf32>
    %46 = vector.extract_strided_slice %37 {offsets = [0, 48], sizes = [2, 16], strides = [1, 1]} : vector<2x64xf32> to vector<2x16xf32>
    %47 = arith.negf %46 : vector<2x16xf32>
    %48 = math.exp %47 : vector<2x16xf32>
    %cst_15 = arith.constant 1.000000e+00 : f32
    %49 = vector.broadcast %cst_15 : f32 to vector<2x16xf32>
    %50 = arith.addf %49, %48 : vector<2x16xf32>
    %51 = arith.divf %49, %50 : vector<2x16xf32>
    %52 = arith.mulf %43, %45 : vector<2x16xf32>
    %53 = math.tanh %52 : vector<2x16xf32>
    %54 = arith.mulf %51, %53 : vector<2x16xf32>
    %c272 = arith.constant 272 : index
    %c0_16 = arith.constant 0 : index
    %55 = vector.load %arg1[%c272, %c0_16] : memref<352x128xf32, #tpu.memory_space<vmem>>, vector<16x128xf32>
    %cst_17 = arith.constant dense<0.000000e+00> : vector<2x128xf32>
    %56 = tpu.matmul %54, %55, %cst_17 {dimension_numbers = #tpu.dot_dimension_numbers<[1], [0], [0], [1], [0, 0, 1, 1], [], []>} : vector<2x16xf32>, vector<16x128xf32>, vector<2x128xf32> -> vector<2x128xf32>
    %57 = arith.addf %32, %56 : vector<2x128xf32>
    %c64 = arith.constant 64 : index
    %c0_18 = arith.constant 0 : index
    %58 = vector.load %arg1[%c64, %c0_18] : memref<352x128xf32, #tpu.memory_space<vmem>>, vector<32x96xf32>
    %cst_19 = arith.constant dense<0.000000e+00> : vector<2x96xf32>
    %59 = tpu.matmul %2, %58, %cst_19 {dimension_numbers = #tpu.dot_dimension_numbers<[1], [0], [0], [1], [0, 0, 1, 1], [], []>} : vector<2x32xf32>, vector<32x96xf32>, vector<2x96xf32> -> vector<2x96xf32>
    %c2 = arith.constant 2 : index
    %c0_20 = arith.constant 0 : index
    %60 = vector.load %arg2[%c2, %c0_20] : memref<16x128xf32, #tpu.memory_space<vmem>>, vector<1x96xf32>
    %61 = vector.broadcast %60 : vector<1x96xf32> to vector<2x96xf32>
    %62 = arith.addf %59, %61 : vector<2x96xf32>
    %c96 = arith.constant 96 : index
    %c0_21 = arith.constant 0 : index
    %63 = vector.load %arg1[%c96, %c0_21] : memref<352x128xf32, #tpu.memory_space<vmem>>, vector<32x32xf32>
    %c3 = arith.constant 3 : index
    %c0_22 = arith.constant 0 : index
    %64 = vector.load %arg2[%c3, %c0_22] : memref<16x128xf32, #tpu.memory_space<vmem>>, vector<1x32xf32>
    %65 = vector.extract_strided_slice %62 {offsets = [0, 0], sizes = [2, 8], strides = [1, 1]} : vector<2x96xf32> to vector<2x8xf32>
    %66 = vector.extract_strided_slice %62 {offsets = [0, 32], sizes = [2, 8], strides = [1, 1]} : vector<2x96xf32> to vector<2x8xf32>
    %67 = vector.extract_strided_slice %62 {offsets = [0, 64], sizes = [2, 8], strides = [1, 1]} : vector<2x96xf32> to vector<2x8xf32>
    %cst_23 = arith.constant dense<0.000000e+00> : vector<2x2xf32>
    %68 = tpu.matmul %65, %66, %cst_23 {dimension_numbers = #tpu.dot_dimension_numbers<[1], [1], [0], [0], [0, 0, 1, 0], [], []>} : vector<2x8xf32>, vector<2x8xf32>, vector<2x2xf32> -> vector<2x2xf32>
    %cst_24 = arith.constant 0.353553385 : f32
    %69 = vector.broadcast %cst_24 : f32 to vector<2x2xf32>
    %70 = arith.mulf %68, %69 : vector<2x2xf32>
    %cst_25 = arith.constant dense<0xFF800000> : vector<2xf32>
    %71 = vector.multi_reduction <maximumf>, %70, %cst_25 [1] : vector<2x2xf32> to vector<2xf32>
    %72 = vector.shape_cast %71 : vector<2xf32> to vector<2x1xf32>
    %73 = vector.broadcast %72 : vector<2x1xf32> to vector<2x2xf32>
    %74 = arith.subf %70, %73 : vector<2x2xf32>
    %75 = math.exp %74 : vector<2x2xf32>
    %cst_26 = arith.constant dense<0.000000e+00> : vector<2xf32>
    %76 = vector.multi_reduction <add>, %75, %cst_26 [1] : vector<2x2xf32> to vector<2xf32>
    %77 = vector.shape_cast %76 : vector<2xf32> to vector<2x1xf32>
    %78 = tpu.reciprocal %77 {approx = true} : vector<2x1xf32> -> vector<2x1xf32>
    %79 = vector.broadcast %78 : vector<2x1xf32> to vector<2x2xf32>
    %80 = arith.mulf %75, %79 : vector<2x2xf32>
    %cst_27 = arith.constant dense<0.000000e+00> : vector<2x8xf32>
    %81 = tpu.matmul %80, %67, %cst_27 {dimension_numbers = #tpu.dot_dimension_numbers<[1], [0], [0], [1], [0, 0, 1, 1], [], []>} : vector<2x2xf32>, vector<2x8xf32>, vector<2x8xf32> -> vector<2x8xf32>
    %82 = vector.extract_strided_slice %63 {offsets = [0, 0], sizes = [8, 32], strides = [1, 1]} : vector<32x32xf32> to vector<8x32xf32>
    %cst_28 = arith.constant dense<0.000000e+00> : vector<2x32xf32>
    %83 = tpu.matmul %81, %82, %cst_28 {dimension_numbers = #tpu.dot_dimension_numbers<[1], [0], [0], [1], [0, 0, 1, 1], [], []>} : vector<2x8xf32>, vector<8x32xf32>, vector<2x32xf32> -> vector<2x32xf32>
    %84 = vector.broadcast %64 : vector<1x32xf32> to vector<2x32xf32>
    %85 = arith.addf %84, %83 : vector<2x32xf32>
    %86 = vector.extract_strided_slice %62 {offsets = [0, 8], sizes = [2, 8], strides = [1, 1]} : vector<2x96xf32> to vector<2x8xf32>
    %87 = vector.extract_strided_slice %62 {offsets = [0, 40], sizes = [2, 8], strides = [1, 1]} : vector<2x96xf32> to vector<2x8xf32>
    %88 = vector.extract_strided_slice %62 {offsets = [0, 72], sizes = [2, 8], strides = [1, 1]} : vector<2x96xf32> to vector<2x8xf32>
    %cst_29 = arith.constant dense<0.000000e+00> : vector<2x2xf32>
    %89 = tpu.matmul %86, %87, %cst_29 {dimension_numbers = #tpu.dot_dimension_numbers<[1], [1], [0], [0], [0, 0, 1, 0], [], []>} : vector<2x8xf32>, vector<2x8xf32>, vector<2x2xf32> -> vector<2x2xf32>
    %cst_30 = arith.constant 0.353553385 : f32
    %90 = vector.broadcast %cst_30 : f32 to vector<2x2xf32>
    %91 = arith.mulf %89, %90 : vector<2x2xf32>
    %cst_31 = arith.constant dense<0xFF800000> : vector<2xf32>
    %92 = vector.multi_reduction <maximumf>, %91, %cst_31 [1] : vector<2x2xf32> to vector<2xf32>
    %93 = vector.shape_cast %92 : vector<2xf32> to vector<2x1xf32>
    %94 = vector.broadcast %93 : vector<2x1xf32> to vector<2x2xf32>
    %95 = arith.subf %91, %94 : vector<2x2xf32>
    %96 = math.exp %95 : vector<2x2xf32>
    %cst_32 = arith.constant dense<0.000000e+00> : vector<2xf32>
    %97 = vector.multi_reduction <add>, %96, %cst_32 [1] : vector<2x2xf32> to vector<2xf32>
    %98 = vector.shape_cast %97 : vector<2xf32> to vector<2x1xf32>
    %99 = tpu.reciprocal %98 {approx = true} : vector<2x1xf32> -> vector<2x1xf32>
    %100 = vector.broadcast %99 : vector<2x1xf32> to vector<2x2xf32>
    %101 = arith.mulf %96, %100 : vector<2x2xf32>
    %cst_33 = arith.constant dense<0.000000e+00> : vector<2x8xf32>
    %102 = tpu.matmul %101, %88, %cst_33 {dimension_numbers = #tpu.dot_dimension_numbers<[1], [0], [0], [1], [0, 0, 1, 1], [], []>} : vector<2x2xf32>, vector<2x8xf32>, vector<2x8xf32> -> vector<2x8xf32>
    %103 = vector.extract_strided_slice %63 {offsets = [8, 0], sizes = [8, 32], strides = [1, 1]} : vector<32x32xf32> to vector<8x32xf32>
    %cst_34 = arith.constant dense<0.000000e+00> : vector<2x32xf32>
    %104 = tpu.matmul %102, %103, %cst_34 {dimension_numbers = #tpu.dot_dimension_numbers<[1], [0], [0], [1], [0, 0, 1, 1], [], []>} : vector<2x8xf32>, vector<8x32xf32>, vector<2x32xf32> -> vector<2x32xf32>
    %105 = arith.addf %85, %104 : vector<2x32xf32>
    %106 = vector.extract_strided_slice %62 {offsets = [0, 16], sizes = [2, 8], strides = [1, 1]} : vector<2x96xf32> to vector<2x8xf32>
    %107 = vector.extract_strided_slice %62 {offsets = [0, 48], sizes = [2, 8], strides = [1, 1]} : vector<2x96xf32> to vector<2x8xf32>
    %108 = vector.extract_strided_slice %62 {offsets = [0, 80], sizes = [2, 8], strides = [1, 1]} : vector<2x96xf32> to vector<2x8xf32>
    %cst_35 = arith.constant dense<0.000000e+00> : vector<2x2xf32>
    %109 = tpu.matmul %106, %107, %cst_35 {dimension_numbers = #tpu.dot_dimension_numbers<[1], [1], [0], [0], [0, 0, 1, 0], [], []>} : vector<2x8xf32>, vector<2x8xf32>, vector<2x2xf32> -> vector<2x2xf32>
    %cst_36 = arith.constant 0.353553385 : f32
    %110 = vector.broadcast %cst_36 : f32 to vector<2x2xf32>
    %111 = arith.mulf %109, %110 : vector<2x2xf32>
    %cst_37 = arith.constant dense<0xFF800000> : vector<2xf32>
    %112 = vector.multi_reduction <maximumf>, %111, %cst_37 [1] : vector<2x2xf32> to vector<2xf32>
    %113 = vector.shape_cast %112 : vector<2xf32> to vector<2x1xf32>
    %114 = vector.broadcast %113 : vector<2x1xf32> to vector<2x2xf32>
    %115 = arith.subf %111, %114 : vector<2x2xf32>
    %116 = math.exp %115 : vector<2x2xf32>
    %cst_38 = arith.constant dense<0.000000e+00> : vector<2xf32>
    %117 = vector.multi_reduction <add>, %116, %cst_38 [1] : vector<2x2xf32> to vector<2xf32>
    %118 = vector.shape_cast %117 : vector<2xf32> to vector<2x1xf32>
    %119 = tpu.reciprocal %118 {approx = true} : vector<2x1xf32> -> vector<2x1xf32>
    %120 = vector.broadcast %119 : vector<2x1xf32> to vector<2x2xf32>
    %121 = arith.mulf %116, %120 : vector<2x2xf32>
    %cst_39 = arith.constant dense<0.000000e+00> : vector<2x8xf32>
    %122 = tpu.matmul %121, %108, %cst_39 {dimension_numbers = #tpu.dot_dimension_numbers<[1], [0], [0], [1], [0, 0, 1, 1], [], []>} : vector<2x2xf32>, vector<2x8xf32>, vector<2x8xf32> -> vector<2x8xf32>
    %123 = vector.extract_strided_slice %63 {offsets = [16, 0], sizes = [8, 32], strides = [1, 1]} : vector<32x32xf32> to vector<8x32xf32>
    %cst_40 = arith.constant dense<0.000000e+00> : vector<2x32xf32>
    %124 = tpu.matmul %122, %123, %cst_40 {dimension_numbers = #tpu.dot_dimension_numbers<[1], [0], [0], [1], [0, 0, 1, 1], [], []>} : vector<2x8xf32>, vector<8x32xf32>, vector<2x32xf32> -> vector<2x32xf32>
    %125 = arith.addf %105, %124 : vector<2x32xf32>
    %126 = vector.extract_strided_slice %62 {offsets = [0, 24], sizes = [2, 8], strides = [1, 1]} : vector<2x96xf32> to vector<2x8xf32>
    %127 = vector.extract_strided_slice %62 {offsets = [0, 56], sizes = [2, 8], strides = [1, 1]} : vector<2x96xf32> to vector<2x8xf32>
    %128 = vector.extract_strided_slice %62 {offsets = [0, 88], sizes = [2, 8], strides = [1, 1]} : vector<2x96xf32> to vector<2x8xf32>
    %cst_41 = arith.constant dense<0.000000e+00> : vector<2x2xf32>
    %129 = tpu.matmul %126, %127, %cst_41 {dimension_numbers = #tpu.dot_dimension_numbers<[1], [1], [0], [0], [0, 0, 1, 0], [], []>} : vector<2x8xf32>, vector<2x8xf32>, vector<2x2xf32> -> vector<2x2xf32>
    %cst_42 = arith.constant 0.353553385 : f32
    %130 = vector.broadcast %cst_42 : f32 to vector<2x2xf32>
    %131 = arith.mulf %129, %130 : vector<2x2xf32>
    %cst_43 = arith.constant dense<0xFF800000> : vector<2xf32>
    %132 = vector.multi_reduction <maximumf>, %131, %cst_43 [1] : vector<2x2xf32> to vector<2xf32>
    %133 = vector.shape_cast %132 : vector<2xf32> to vector<2x1xf32>
    %134 = vector.broadcast %133 : vector<2x1xf32> to vector<2x2xf32>
    %135 = arith.subf %131, %134 : vector<2x2xf32>
    %136 = math.exp %135 : vector<2x2xf32>
    %cst_44 = arith.constant dense<0.000000e+00> : vector<2xf32>
    %137 = vector.multi_reduction <add>, %136, %cst_44 [1] : vector<2x2xf32> to vector<2xf32>
    %138 = vector.shape_cast %137 : vector<2xf32> to vector<2x1xf32>
    %139 = tpu.reciprocal %138 {approx = true} : vector<2x1xf32> -> vector<2x1xf32>
    %140 = vector.broadcast %139 : vector<2x1xf32> to vector<2x2xf32>
    %141 = arith.mulf %136, %140 : vector<2x2xf32>
    %cst_45 = arith.constant dense<0.000000e+00> : vector<2x8xf32>
    %142 = tpu.matmul %141, %128, %cst_45 {dimension_numbers = #tpu.dot_dimension_numbers<[1], [0], [0], [1], [0, 0, 1, 1], [], []>} : vector<2x2xf32>, vector<2x8xf32>, vector<2x8xf32> -> vector<2x8xf32>
    %143 = vector.extract_strided_slice %63 {offsets = [24, 0], sizes = [8, 32], strides = [1, 1]} : vector<32x32xf32> to vector<8x32xf32>
    %cst_46 = arith.constant dense<0.000000e+00> : vector<2x32xf32>
    %144 = tpu.matmul %142, %143, %cst_46 {dimension_numbers = #tpu.dot_dimension_numbers<[1], [0], [0], [1], [0, 0, 1, 1], [], []>} : vector<2x8xf32>, vector<8x32xf32>, vector<2x32xf32> -> vector<2x32xf32>
    %145 = arith.addf %125, %144 : vector<2x32xf32>
    %c288 = arith.constant 288 : index
    %c0_47 = arith.constant 0 : index
    %146 = vector.load %arg1[%c288, %c0_47] : memref<352x128xf32, #tpu.memory_space<vmem>>, vector<32x128xf32>
    %cst_48 = arith.constant dense<0.000000e+00> : vector<2x128xf32>
    %147 = tpu.matmul %145, %146, %cst_48 {dimension_numbers = #tpu.dot_dimension_numbers<[1], [0], [0], [1], [0, 0, 1, 1], [], []>} : vector<2x32xf32>, vector<32x128xf32>, vector<2x128xf32> -> vector<2x128xf32>
    %148 = arith.addf %57, %147 : vector<2x128xf32>
    %c192 = arith.constant 192 : index
    %c0_49 = arith.constant 0 : index
    %149 = vector.load %arg1[%c192, %c0_49] : memref<352x128xf32, #tpu.memory_space<vmem>>, vector<32x32xf32>
    %cst_50 = arith.constant dense<0.000000e+00> : vector<2x32xf32>
    %150 = tpu.matmul %3, %149, %cst_50 {dimension_numbers = #tpu.dot_dimension_numbers<[1], [0], [0], [1], [0, 0, 1, 1], [], []>} : vector<2x32xf32>, vector<32x32xf32>, vector<2x32xf32> -> vector<2x32xf32>
    %c6 = arith.constant 6 : index
    %c0_51 = arith.constant 0 : index
    %151 = vector.load %arg2[%c6, %c0_51] : memref<16x128xf32, #tpu.memory_space<vmem>>, vector<1x32xf32>
    %152 = vector.broadcast %151 : vector<1x32xf32> to vector<2x32xf32>
    %153 = arith.addf %150, %152 : vector<2x32xf32>
    %cst_52 = arith.constant 0.000000e+00 : f32
    %154 = vector.broadcast %cst_52 : f32 to vector<2x32xf32>
    %155 = arith.maximumf %153, %154 : vector<2x32xf32>
    %c224 = arith.constant 224 : index
    %c0_53 = arith.constant 0 : index
    %156 = vector.load %arg1[%c224, %c0_53] : memref<352x128xf32, #tpu.memory_space<vmem>>, vector<32x32xf32>
    %cst_54 = arith.constant dense<0.000000e+00> : vector<2x32xf32>
    %157 = tpu.matmul %155, %156, %cst_54 {dimension_numbers = #tpu.dot_dimension_numbers<[1], [0], [0], [1], [0, 0, 1, 1], [], []>} : vector<2x32xf32>, vector<32x32xf32>, vector<2x32xf32> -> vector<2x32xf32>
    %c7 = arith.constant 7 : index
    %c0_55 = arith.constant 0 : index
    %158 = vector.load %arg2[%c7, %c0_55] : memref<16x128xf32, #tpu.memory_space<vmem>>, vector<1x32xf32>
    %159 = vector.broadcast %158 : vector<1x32xf32> to vector<2x32xf32>
    %160 = arith.addf %157, %159 : vector<2x32xf32>
    %c128 = arith.constant 128 : index
    %c0_56 = arith.constant 0 : index
    %161 = vector.load %arg1[%c128, %c0_56] : memref<352x128xf32, #tpu.memory_space<vmem>>, vector<32x96xf32>
    %cst_57 = arith.constant dense<0.000000e+00> : vector<2x96xf32>
    %162 = tpu.matmul %160, %161, %cst_57 {dimension_numbers = #tpu.dot_dimension_numbers<[1], [0], [0], [1], [0, 0, 1, 1], [], []>} : vector<2x32xf32>, vector<32x96xf32>, vector<2x96xf32> -> vector<2x96xf32>
    %c4 = arith.constant 4 : index
    %c0_58 = arith.constant 0 : index
    %163 = vector.load %arg2[%c4, %c0_58] : memref<16x128xf32, #tpu.memory_space<vmem>>, vector<1x96xf32>
    %164 = vector.broadcast %163 : vector<1x96xf32> to vector<2x96xf32>
    %165 = arith.addf %162, %164 : vector<2x96xf32>
    %c160 = arith.constant 160 : index
    %c0_59 = arith.constant 0 : index
    %166 = vector.load %arg1[%c160, %c0_59] : memref<352x128xf32, #tpu.memory_space<vmem>>, vector<32x32xf32>
    %c5 = arith.constant 5 : index
    %c0_60 = arith.constant 0 : index
    %167 = vector.load %arg2[%c5, %c0_60] : memref<16x128xf32, #tpu.memory_space<vmem>>, vector<1x32xf32>
    %168 = vector.extract_strided_slice %165 {offsets = [0, 0], sizes = [2, 8], strides = [1, 1]} : vector<2x96xf32> to vector<2x8xf32>
    %169 = vector.extract_strided_slice %165 {offsets = [0, 32], sizes = [2, 8], strides = [1, 1]} : vector<2x96xf32> to vector<2x8xf32>
    %170 = vector.extract_strided_slice %165 {offsets = [0, 64], sizes = [2, 8], strides = [1, 1]} : vector<2x96xf32> to vector<2x8xf32>
    %cst_61 = arith.constant dense<0.000000e+00> : vector<2x2xf32>
    %171 = tpu.matmul %168, %169, %cst_61 {dimension_numbers = #tpu.dot_dimension_numbers<[1], [1], [0], [0], [0, 0, 1, 0], [], []>} : vector<2x8xf32>, vector<2x8xf32>, vector<2x2xf32> -> vector<2x2xf32>
    %cst_62 = arith.constant 0.353553385 : f32
    %172 = vector.broadcast %cst_62 : f32 to vector<2x2xf32>
    %173 = arith.mulf %171, %172 : vector<2x2xf32>
    %cst_63 = arith.constant dense<0xFF800000> : vector<2xf32>
    %174 = vector.multi_reduction <maximumf>, %173, %cst_63 [1] : vector<2x2xf32> to vector<2xf32>
    %175 = vector.shape_cast %174 : vector<2xf32> to vector<2x1xf32>
    %176 = vector.broadcast %175 : vector<2x1xf32> to vector<2x2xf32>
    %177 = arith.subf %173, %176 : vector<2x2xf32>
    %178 = math.exp %177 : vector<2x2xf32>
    %cst_64 = arith.constant dense<0.000000e+00> : vector<2xf32>
    %179 = vector.multi_reduction <add>, %178, %cst_64 [1] : vector<2x2xf32> to vector<2xf32>
    %180 = vector.shape_cast %179 : vector<2xf32> to vector<2x1xf32>
    %181 = tpu.reciprocal %180 {approx = true} : vector<2x1xf32> -> vector<2x1xf32>
    %182 = vector.broadcast %181 : vector<2x1xf32> to vector<2x2xf32>
    %183 = arith.mulf %178, %182 : vector<2x2xf32>
    %cst_65 = arith.constant dense<0.000000e+00> : vector<2x8xf32>
    %184 = tpu.matmul %183, %170, %cst_65 {dimension_numbers = #tpu.dot_dimension_numbers<[1], [0], [0], [1], [0, 0, 1, 1], [], []>} : vector<2x2xf32>, vector<2x8xf32>, vector<2x8xf32> -> vector<2x8xf32>
    %185 = vector.extract_strided_slice %166 {offsets = [0, 0], sizes = [8, 32], strides = [1, 1]} : vector<32x32xf32> to vector<8x32xf32>
    %cst_66 = arith.constant dense<0.000000e+00> : vector<2x32xf32>
    %186 = tpu.matmul %184, %185, %cst_66 {dimension_numbers = #tpu.dot_dimension_numbers<[1], [0], [0], [1], [0, 0, 1, 1], [], []>} : vector<2x8xf32>, vector<8x32xf32>, vector<2x32xf32> -> vector<2x32xf32>
    %187 = vector.broadcast %167 : vector<1x32xf32> to vector<2x32xf32>
    %188 = arith.addf %187, %186 : vector<2x32xf32>
    %189 = vector.extract_strided_slice %165 {offsets = [0, 8], sizes = [2, 8], strides = [1, 1]} : vector<2x96xf32> to vector<2x8xf32>
    %190 = vector.extract_strided_slice %165 {offsets = [0, 40], sizes = [2, 8], strides = [1, 1]} : vector<2x96xf32> to vector<2x8xf32>
    %191 = vector.extract_strided_slice %165 {offsets = [0, 72], sizes = [2, 8], strides = [1, 1]} : vector<2x96xf32> to vector<2x8xf32>
    %cst_67 = arith.constant dense<0.000000e+00> : vector<2x2xf32>
    %192 = tpu.matmul %189, %190, %cst_67 {dimension_numbers = #tpu.dot_dimension_numbers<[1], [1], [0], [0], [0, 0, 1, 0], [], []>} : vector<2x8xf32>, vector<2x8xf32>, vector<2x2xf32> -> vector<2x2xf32>
    %cst_68 = arith.constant 0.353553385 : f32
    %193 = vector.broadcast %cst_68 : f32 to vector<2x2xf32>
    %194 = arith.mulf %192, %193 : vector<2x2xf32>
    %cst_69 = arith.constant dense<0xFF800000> : vector<2xf32>
    %195 = vector.multi_reduction <maximumf>, %194, %cst_69 [1] : vector<2x2xf32> to vector<2xf32>
    %196 = vector.shape_cast %195 : vector<2xf32> to vector<2x1xf32>
    %197 = vector.broadcast %196 : vector<2x1xf32> to vector<2x2xf32>
    %198 = arith.subf %194, %197 : vector<2x2xf32>
    %199 = math.exp %198 : vector<2x2xf32>
    %cst_70 = arith.constant dense<0.000000e+00> : vector<2xf32>
    %200 = vector.multi_reduction <add>, %199, %cst_70 [1] : vector<2x2xf32> to vector<2xf32>
    %201 = vector.shape_cast %200 : vector<2xf32> to vector<2x1xf32>
    %202 = tpu.reciprocal %201 {approx = true} : vector<2x1xf32> -> vector<2x1xf32>
    %203 = vector.broadcast %202 : vector<2x1xf32> to vector<2x2xf32>
    %204 = arith.mulf %199, %203 : vector<2x2xf32>
    %cst_71 = arith.constant dense<0.000000e+00> : vector<2x8xf32>
    %205 = tpu.matmul %204, %191, %cst_71 {dimension_numbers = #tpu.dot_dimension_numbers<[1], [0], [0], [1], [0, 0, 1, 1], [], []>} : vector<2x2xf32>, vector<2x8xf32>, vector<2x8xf32> -> vector<2x8xf32>
    %206 = vector.extract_strided_slice %166 {offsets = [8, 0], sizes = [8, 32], strides = [1, 1]} : vector<32x32xf32> to vector<8x32xf32>
    %cst_72 = arith.constant dense<0.000000e+00> : vector<2x32xf32>
    %207 = tpu.matmul %205, %206, %cst_72 {dimension_numbers = #tpu.dot_dimension_numbers<[1], [0], [0], [1], [0, 0, 1, 1], [], []>} : vector<2x8xf32>, vector<8x32xf32>, vector<2x32xf32> -> vector<2x32xf32>
    %208 = arith.addf %188, %207 : vector<2x32xf32>
    %209 = vector.extract_strided_slice %165 {offsets = [0, 16], sizes = [2, 8], strides = [1, 1]} : vector<2x96xf32> to vector<2x8xf32>
    %210 = vector.extract_strided_slice %165 {offsets = [0, 48], sizes = [2, 8], strides = [1, 1]} : vector<2x96xf32> to vector<2x8xf32>
    %211 = vector.extract_strided_slice %165 {offsets = [0, 80], sizes = [2, 8], strides = [1, 1]} : vector<2x96xf32> to vector<2x8xf32>
    %cst_73 = arith.constant dense<0.000000e+00> : vector<2x2xf32>
    %212 = tpu.matmul %209, %210, %cst_73 {dimension_numbers = #tpu.dot_dimension_numbers<[1], [1], [0], [0], [0, 0, 1, 0], [], []>} : vector<2x8xf32>, vector<2x8xf32>, vector<2x2xf32> -> vector<2x2xf32>
    %cst_74 = arith.constant 0.353553385 : f32
    %213 = vector.broadcast %cst_74 : f32 to vector<2x2xf32>
    %214 = arith.mulf %212, %213 : vector<2x2xf32>
    %cst_75 = arith.constant dense<0xFF800000> : vector<2xf32>
    %215 = vector.multi_reduction <maximumf>, %214, %cst_75 [1] : vector<2x2xf32> to vector<2xf32>
    %216 = vector.shape_cast %215 : vector<2xf32> to vector<2x1xf32>
    %217 = vector.broadcast %216 : vector<2x1xf32> to vector<2x2xf32>
    %218 = arith.subf %214, %217 : vector<2x2xf32>
    %219 = math.exp %218 : vector<2x2xf32>
    %cst_76 = arith.constant dense<0.000000e+00> : vector<2xf32>
    %220 = vector.multi_reduction <add>, %219, %cst_76 [1] : vector<2x2xf32> to vector<2xf32>
    %221 = vector.shape_cast %220 : vector<2xf32> to vector<2x1xf32>
    %222 = tpu.reciprocal %221 {approx = true} : vector<2x1xf32> -> vector<2x1xf32>
    %223 = vector.broadcast %222 : vector<2x1xf32> to vector<2x2xf32>
    %224 = arith.mulf %219, %223 : vector<2x2xf32>
    %cst_77 = arith.constant dense<0.000000e+00> : vector<2x8xf32>
    %225 = tpu.matmul %224, %211, %cst_77 {dimension_numbers = #tpu.dot_dimension_numbers<[1], [0], [0], [1], [0, 0, 1, 1], [], []>} : vector<2x2xf32>, vector<2x8xf32>, vector<2x8xf32> -> vector<2x8xf32>
    %226 = vector.extract_strided_slice %166 {offsets = [16, 0], sizes = [8, 32], strides = [1, 1]} : vector<32x32xf32> to vector<8x32xf32>
    %cst_78 = arith.constant dense<0.000000e+00> : vector<2x32xf32>
    %227 = tpu.matmul %225, %226, %cst_78 {dimension_numbers = #tpu.dot_dimension_numbers<[1], [0], [0], [1], [0, 0, 1, 1], [], []>} : vector<2x8xf32>, vector<8x32xf32>, vector<2x32xf32> -> vector<2x32xf32>
    %228 = arith.addf %208, %227 : vector<2x32xf32>
    %229 = vector.extract_strided_slice %165 {offsets = [0, 24], sizes = [2, 8], strides = [1, 1]} : vector<2x96xf32> to vector<2x8xf32>
    %230 = vector.extract_strided_slice %165 {offsets = [0, 56], sizes = [2, 8], strides = [1, 1]} : vector<2x96xf32> to vector<2x8xf32>
    %231 = vector.extract_strided_slice %165 {offsets = [0, 88], sizes = [2, 8], strides = [1, 1]} : vector<2x96xf32> to vector<2x8xf32>
    %cst_79 = arith.constant dense<0.000000e+00> : vector<2x2xf32>
    %232 = tpu.matmul %229, %230, %cst_79 {dimension_numbers = #tpu.dot_dimension_numbers<[1], [1], [0], [0], [0, 0, 1, 0], [], []>} : vector<2x8xf32>, vector<2x8xf32>, vector<2x2xf32> -> vector<2x2xf32>
    %cst_80 = arith.constant 0.353553385 : f32
    %233 = vector.broadcast %cst_80 : f32 to vector<2x2xf32>
    %234 = arith.mulf %232, %233 : vector<2x2xf32>
    %cst_81 = arith.constant dense<0xFF800000> : vector<2xf32>
    %235 = vector.multi_reduction <maximumf>, %234, %cst_81 [1] : vector<2x2xf32> to vector<2xf32>
    %236 = vector.shape_cast %235 : vector<2xf32> to vector<2x1xf32>
    %237 = vector.broadcast %236 : vector<2x1xf32> to vector<2x2xf32>
    %238 = arith.subf %234, %237 : vector<2x2xf32>
    %239 = math.exp %238 : vector<2x2xf32>
    %cst_82 = arith.constant dense<0.000000e+00> : vector<2xf32>
    %240 = vector.multi_reduction <add>, %239, %cst_82 [1] : vector<2x2xf32> to vector<2xf32>
    %241 = vector.shape_cast %240 : vector<2xf32> to vector<2x1xf32>
    %242 = tpu.reciprocal %241 {approx = true} : vector<2x1xf32> -> vector<2x1xf32>
    %243 = vector.broadcast %242 : vector<2x1xf32> to vector<2x2xf32>
    %244 = arith.mulf %239, %243 : vector<2x2xf32>
    %cst_83 = arith.constant dense<0.000000e+00> : vector<2x8xf32>
    %245 = tpu.matmul %244, %231, %cst_83 {dimension_numbers = #tpu.dot_dimension_numbers<[1], [0], [0], [1], [0, 0, 1, 1], [], []>} : vector<2x2xf32>, vector<2x8xf32>, vector<2x8xf32> -> vector<2x8xf32>
    %246 = vector.extract_strided_slice %166 {offsets = [24, 0], sizes = [8, 32], strides = [1, 1]} : vector<32x32xf32> to vector<8x32xf32>
    %cst_84 = arith.constant dense<0.000000e+00> : vector<2x32xf32>
    %247 = tpu.matmul %245, %246, %cst_84 {dimension_numbers = #tpu.dot_dimension_numbers<[1], [0], [0], [1], [0, 0, 1, 1], [], []>} : vector<2x8xf32>, vector<8x32xf32>, vector<2x32xf32> -> vector<2x32xf32>
    %248 = arith.addf %228, %247 : vector<2x32xf32>
    %c320 = arith.constant 320 : index
    %c0_85 = arith.constant 0 : index
    %249 = vector.load %arg1[%c320, %c0_85] : memref<352x128xf32, #tpu.memory_space<vmem>>, vector<32x128xf32>
    %cst_86 = arith.constant dense<0.000000e+00> : vector<2x128xf32>
    %250 = tpu.matmul %248, %249, %cst_86 {dimension_numbers = #tpu.dot_dimension_numbers<[1], [0], [0], [1], [0, 0, 1, 1], [], []>} : vector<2x32xf32>, vector<32x128xf32>, vector<2x128xf32> -> vector<2x128xf32>
    %251 = arith.addf %148, %250 : vector<2x128xf32>
    %252 = tpu.iota {dimensions = array<i32: 1>} : vector<2x128xi32>
    %c4_i32 = arith.constant 4 : i32
    %253 = vector.broadcast %c4_i32 : i32 to vector<2x128xi32>
    %254 = arith.cmpi slt, %252, %253 : vector<2x128xi32>
    %cst_87 = arith.constant -1.000000e+30 : f32
    %255 = vector.broadcast %cst_87 : f32 to vector<2x128xf32>
    %256 = arith.select %254, %251, %255 : vector<2x128xi1>, vector<2x128xf32>
    %cst_88 = arith.constant dense<0xFF800000> : vector<2xf32>
    %257 = vector.multi_reduction <maximumf>, %256, %cst_88 [1] : vector<2x128xf32> to vector<2xf32>
    %258 = vector.shape_cast %257 : vector<2xf32> to vector<2x1xf32>
    %259 = vector.broadcast %258 : vector<2x1xf32> to vector<2x128xf32>
    %260 = arith.subf %256, %259 : vector<2x128xf32>
    %261 = math.exp %260 : vector<2x128xf32>
    %cst_89 = arith.constant dense<0.000000e+00> : vector<2xf32>
    %262 = vector.multi_reduction <add>, %261, %cst_89 [1] : vector<2x128xf32> to vector<2xf32>
    %263 = vector.shape_cast %262 : vector<2xf32> to vector<2x1xf32>
    %264 = tpu.reciprocal %263 {approx = true} : vector<2x1xf32> -> vector<2x1xf32>
    %265 = vector.broadcast %264 : vector<2x1xf32> to vector<2x128xf32>
    %266 = arith.mulf %261, %265 : vector<2x128xf32>
    %c0_90 = arith.constant 0 : index
    %c0_91 = arith.constant 0 : index
    %267 = vector.load %arg3[%c0_90, %c0_91] : memref<2x128xf32, #tpu.memory_space<vmem>>, vector<2x128xf32>
    tpu.vector_store %arg3[%c0_90, %c0_91], %266 {strides = array<i32>} : memref<2x128xf32, #tpu.memory_space<vmem>>, vector<2x128xf32>,
    return
  }
}

</mosaic_0001>

<llo_original>
// kernel: threat_detection_forward.2
$region0: #{threat_detection_forward.2}
  #allocation0 [shape = 'u32[]', space=smem, size = 0x4, offset = 0x4, fixed_abs, tag = 'smem constant byte address 0x4 - core index']
  #allocation1 [shape = 'u32[144,128]{1,0:T(1,128)}', space=vmem, size = 0x12000, scoped, tag = 'internal scratch']
  #allocation2 [shape = 'f32[1,1]{1,0:T(1,128)S(6)}', space=smem, size = 0x200, scoped, tag = 'scoped memory for threat_detection_forward.2']
  %s0 = inlined_call_operand.hbm [shape: bf16[2,8,96], index: 0, kind: input, shape index: {}]
  %s1 = inlined_call_operand.hbm [shape: f32[1,96], index: 1, kind: input, shape index: {}]
  %s2 = inlined_call_operand.<no memory space> [shape: f32[1,1], index: 2, kind: input, shape index: {}]
  %s3 = inlined_call_operand.vmem [shape: f32[2,96], index: 3, kind: output, shape index: {}]
  %s4 = sld [smem:[#allocation0]]
  $region30: #{threat_detection_forward.2} parent=0
    _
  %s6 = ssub.s32 1, %s4
  %s7 = scalar_select 0, %s6, %s4
  %8 = sst [smem:[#allocation2]] %s2
  $region1: #{threat_detection_forward.2} parent=0
    #allocation3 [shape = 'u8[4096]{0}', space=vmem, size = 0x1000, scoped, tag = 'input window, operand 0, single buffered']
    #allocation4 [shape = 's32[1]{0}', space=sflag, size = 0x4, scoped, tag = 'scoped memory for threat_detection_forward.2']
    #allocation5 [shape = 'u8[512]{0}', space=vmem, size = 0x400, scoped, tag = 'input window, operand 1, single buffered']
    #allocation6 [shape = 's32[1]{0}', space=sflag, size = 0x4, scoped, tag = 'scoped memory for threat_detection_forward.2']
    %9 = vsyncpa [#allocation4], 0
    %10 = vsyncpa [#allocation6], 0
    // Predicated region
    $region2: #{threat_detection_forward.2} parent=1 // pred_check
      _
    $region3: #{threat_detection_forward.2} parent=1 // pred_check_branch
      %12 = sbr.rel (0) target = $region5
    $region4: #{threat_detection_forward.2} parent=1 // pred_region
      %s14 = ssub.s32 128, 128
      %15 = vsyncadd [#allocation4], %s14
      %s16 = sshll.u32 [#allocation3], 4
      %s17 = int_to_ptr.vmem [resolvable:$true] %s16
      %22 = dma.hbm_to_vmem [thread:$0]  %s0, 128, %s17, [#allocation4], 64, 64, 4
    $region5: #{threat_detection_forward.2} parent=1 // pred_fallthru
      _
    // Predicated region
    $region6: #{threat_detection_forward.2} parent=1 // pred_check
      _
    $region7: #{threat_detection_forward.2} parent=1 // pred_check_branch
      %24 = sbr.rel (0) target = $region9
    $region8: #{threat_detection_forward.2} parent=1 // pred_region
      %s26 = ssub.s32 16, 16
      %27 = vsyncadd [#allocation6], %s26
      %s29 = sshll.u32 [#allocation5], 4
      %s30 = int_to_ptr.vmem [resolvable:$true] %s29
      %32 = dma.hbm_to_vmem [thread:$0]  %s1, 16, %s30, [#allocation6]
    $region9: #{threat_detection_forward.2} parent=1 // pred_fallthru
      _
    // Predicated region
    $region10: #{threat_detection_forward.2} parent=1 // pred_check
      _
    $region11: #{threat_detection_forward.2} parent=1 // pred_check_branch
      %34 = sbr.rel (0) target = $region13
    $region12: #{threat_detection_forward.2} parent=1 // pred_region
      _
    $region13: #{threat_detection_forward.2} parent=1 // pred_fallthru
      _
    // Predicated region
    $region14: #{threat_detection_forward.2} parent=1 // pred_check
      _
    $region15: #{threat_detection_forward.2} parent=1 // pred_check_branch
      %36 = sbr.rel (0) target = $region17
    $region16: #{threat_detection_forward.2} parent=1 // pred_region
      %37 = dma.done [#allocation4], 128
    $region17: #{threat_detection_forward.2} parent=1 // pred_fallthru
      _
    // Predicated region
    $region18: #{threat_detection_forward.2} parent=1 // pred_check
      _
    $region19: #{threat_detection_forward.2} parent=1 // pred_check_branch
      %39 = sbr.rel (0) target = $region21
    $region20: #{threat_detection_forward.2} parent=1 // pred_region
      %40 = dma.done [#allocation6], 16
    $region21: #{threat_detection_forward.2} parent=1 // pred_fallthru
      _
    %v41 = vld [vmem:[#allocation3] sm:$0xf]
    %v42 = vld [vmem:[#allocation3 + $0x4] sm:$0xf]
    %v43 = vunpack.c.l.bf16 %v41
    %v44 = vunpack.c.l.bf16 %v42
    %v45 = vld [vmem:[#allocation5] sm:$0x1]
    %s46 = sld [smem:[#allocation2]]
    %v48 = vlaneseq
    %v49 = vshrl.u32 %v48, 7
    %v50 = vsub.s32 0, %v49
    %v51 = vrot.slane %v45, %v50
    %v53 = vmul.f32 %v43, %v51
    %v54 = vmul.f32 %v44, %v51
    %vm55 = vcmask 785408
    %v56 = vsel %vm55, %v53, 0.0
    %57 = vadd.xlane.f32.xlu0 %v56
    %v58 = vpop.xlane.xlu0 %57
    %v59 = vsel %vm55, %v54, 0.0
    %60 = vadd.xlane.f32.xlu0 %v59
    %v61 = vpop.xlane.xlu0 %60
    %v62 = vstv %s46
    %v63 = vadd.f32 %v58, %v62
    %v64 = vadd.f32 %v61, %v62
    %v65 = vrot.slane %v63, 4
    %v66 = vmax.f32 %v63, %v65
    %v67 = vrot.slane %v66, 2
    %v68 = vmax.f32 %v66, %v67
    %v69 = vrot.slane %v68, 1
    %v70 = vmax.f32 %v68, %v69
    %v71 = vrot.slane %v64, 4
    %v72 = vmax.f32 %v64, %v71
    %v73 = vrot.slane %v72, 2
    %v74 = vmax.f32 %v72, %v73
    %v75 = vrot.slane %v74, 1
    %v76 = vmax.f32 %v74, %v75
    %v77 = vsub.f32 %v63, %v70
    %v78 = vsub.f32 %v64, %v76
    %v79 = vmul.f32 %v77, 1.442695
    %v80 = vpow.pop %v79
    %v81 = vmul.f32 %v78, 1.442695
    %v82 = vpow.pop %v81
    %v83 = vrot.slane %v80, 4
    %v84 = vadd.f32 %v80, %v83
    %v85 = vrot.slane %v84, 2
    %v86 = vadd.f32 %v84, %v85
    %v87 = vrot.slane %v86, 1
    %v88 = vadd.f32 %v86, %v87
    %v89 = vrot.slane %v82, 4
    %v90 = vadd.f32 %v82, %v89
    %v91 = vrot.slane %v90, 2
    %v92 = vadd.f32 %v90, %v91
    %v93 = vrot.slane %v92, 1
    %v94 = vadd.f32 %v92, %v93
    %v95 = vrcp.pop %v88
    %v96 = vrcp.pop %v94
    %v97 = vmul.f32 %v80, %v95
    %v98 = vmul.f32 %v82, %v96
    %v99 = vmul.f32 %v97, %v43
    %v100 = vmul.f32 %v98, %v44
    %v101 = vsel %vm55, %v99, 0.0
    %v102 = vrot.slane %v101, 4
    %v103 = vadd.f32 %v101, %v102
    %v104 = vrot.slane %v103, 2
    %v105 = vadd.f32 %v103, %v104
    %v106 = vrot.slane %v105, 1
    %v107 = vadd.f32 %v105, %v106
    %v108 = vsel %vm55, %v100, 0.0
    %v109 = vrot.slane %v108, 4
    %v110 = vadd.f32 %v108, %v109
    %v111 = vrot.slane %v110, 2
    %v112 = vadd.f32 %v110, %v111
    %v113 = vrot.slane %v112, 1
    %v114 = vadd.f32 %v112, %v113
    %vm117 = vcmask 1041409
    %v118 = vsel %vm117, %v114, %v107
    %vm120 = vcmask 779264
    %121 = vst.msk [vmem:[%s3] sm:$0x3] %vm120, %v118
    // Predicated region
    $region22: #{threat_detection_forward.2} parent=1 // pred_check
      _
    $region23: #{threat_detection_forward.2} parent=1 // pred_check_branch
      %123 = sbr.rel (0) target = $region25
    $region24: #{threat_detection_forward.2} parent=1 // pred_region
      _
    $region25: #{threat_detection_forward.2} parent=1 // pred_fallthru
      _
    // Predicated region
    $region26: #{threat_detection_forward.2} parent=1 // pred_check
      _
    $region27: #{threat_detection_forward.2} parent=1 // pred_check_branch
      %125 = sbr.rel (0) target = $region29
    $region28: #{threat_detection_forward.2} parent=1 // pred_region
      _
    $region29: #{threat_detection_forward.2} parent=1 // pred_fallthru
      _
    %126 = vsyncpa [#allocation4], 1
    %127 = vsyncpa [#allocation6], 1

// kernel: threat_detection_forward.3
$region0: #{threat_detection_forward.3}
  #allocation0 [shape = 'u32[]', space=smem, size = 0x4, offset = 0x4, fixed_abs, tag = 'smem constant byte address 0x4 - core index']
  #allocation1 [shape = 'u32[144,128]{1,0:T(1,128)}', space=vmem, size = 0x12000, scoped, tag = 'internal scratch']
  %s0 = inlined_call_operand.vmem [shape: f32[2,96], index: 0, kind: input, shape index: {}]
  %s1 = inlined_call_operand.hbm [shape: f32[352,128], index: 1, kind: input, shape index: {}]
  %s2 = inlined_call_operand.vmem [shape: f32[16,128], index: 2, kind: input, shape index: {}]
  %s3 = inlined_call_operand.hbm [shape: f32[2,128], index: 3, kind: output, shape index: {}]
  %s4 = sld [smem:[#allocation0]]
  $region26: #{threat_detection_forward.3} parent=0
    _
  %s6 = ssub.s32 1, %s4
  %s7 = scalar_select 0, %s6, %s4
  $region1: #{threat_detection_forward.3} parent=0
    #allocation2 [shape = 'u8[180224]{0}', space=vmem, size = 0x2c000, scoped, tag = 'input window, operand 1, single buffered']
    #allocation3 [shape = 's32[1]{0}', space=sflag, size = 0x4, scoped, tag = 'scoped memory for threat_detection_forward.3']
    #allocation4 [shape = 's32[1]{0}', space=sflag, size = 0x4, scoped, tag = 'scoped memory for threat_detection_forward.3']
    #allocation5 [shape = 'u8[1024]{0}', space=vmem, size = 0x400, scoped, tag = 'output window, operand 0, single buffered']
    %8 = vsyncpa [#allocation3], 0
    %9 = vsyncpa [#allocation4], 0
    // Predicated region
    $region2: #{threat_detection_forward.3} parent=1 // pred_check
      _
    $region3: #{threat_detection_forward.3} parent=1 // pred_check_branch
      %11 = sbr.rel (0) target = $region5
    $region4: #{threat_detection_forward.3} parent=1 // pred_region
      _
    $region5: #{threat_detection_forward.3} parent=1 // pred_fallthru
      _
    // Predicated region
    $region6: #{threat_detection_forward.3} parent=1 // pred_check
      _
    $region7: #{threat_detection_forward.3} parent=1 // pred_check_branch
      %13 = sbr.rel (0) target = $region9
    $region8: #{threat_detection_forward.3} parent=1 // pred_region
      %s15 = ssub.s32 5632, 5632
      %16 = vsyncadd [#allocation3], %s15
      %s17 = sshll.u32 [#allocation2], 4
      %s18 = int_to_ptr.vmem [resolvable:$true] %s17
      %23 = dma.hbm_to_vmem [thread:$0]  %s1, 5632, %s18, [#allocation3], 128, 128, 8
    $region9: #{threat_detection_forward.3} parent=1 // pred_fallthru
      _
    // Predicated region
    $region10: #{threat_detection_forward.3} parent=1 // pred_check
      _
    $region11: #{threat_detection_forward.3} parent=1 // pred_check_branch
      %25 = sbr.rel (0) target = $region13
    $region12: #{threat_detection_forward.3} parent=1 // pred_region
      _
    $region13: #{threat_detection_forward.3} parent=1 // pred_fallthru
      _
    // Predicated region
    $region14: #{threat_detection_forward.3} parent=1 // pred_check
      _
    $region15: #{threat_detection_forward.3} parent=1 // pred_check_branch
      %27 = sbr.rel (0) target = $region17
    $region16: #{threat_detection_forward.3} parent=1 // pred_region
      %28 = dma.done [#allocation3], 5632
    $region17: #{threat_detection_forward.3} parent=1 // pred_fallthru
      _
    %v29 = vld [vmem:[%s0] sm:$0x3]
    %v30 = vld [vmem:[%s2 + $0x8] sm:$0x1]
    %v31 = vlaneseq
    %v32 = vshrl.u32 %v31, 7
    %v33 = vsub.s32 0, %v32
    %v34 = vrot.slane %v30, %v33
    %v35 = vadd.f32 %v34, 0.0
    %v36 = vld [vmem:[#allocation2] sm:$0xff]
    %v37 = vld [vmem:[#allocation2 + $0x8] sm:$0xff]
    %v38 = vld [vmem:[#allocation2 + $0x10] sm:$0xff]
    %v39 = vld [vmem:[#allocation2 + $0x18] sm:$0xff]
    %v40 = vld [vmem:[%s2] sm:$0x1]
    %v41 = vlaneseq
    %v42 = vshrl.u32 %v41, 7
    %v43 = vsub.s32 0, %v42
    %v44 = vrot.slane %v40, %v43
    %vm45 = vcmask 261120
    %v47 = vsel %vm45, %v29, 0
    %49 = vmatprep.subr.mxu0 0.0
    %50 = vmatpush1.msra.mxu0 %v36
    %51 = vmatprep.subr.mxu0 0.0
    %52 = vmatpush1.msra.mxu0 %v37
    %53 = vmatprep.subr.mxu0 0.0
    %54 = vmatpush1.msra.mxu0 %v38
    %55 = vmatprep.subr.mxu0 0.0
    %56 = vmatpush1.msra.mxu0 %v39
    %57 = vmatprep.subr.mxu0 0.0
    %58 = vmatpush1.msra.mxu0 0.0
    %59 = vmatprep.subr.mxu0 0.0
    %60 = vmatpush1.msra.mxu0 0.0
    %61 = vmatprep.subr.mxu0 0.0
    %62 = vmatpush1.msra.mxu0 0.0
    %63 = vmatprep.subr.mxu0 0.0
    %64 = vmatpush1.msra.mxu0 0.0
    %65 = vmatprep.subr.mxu0 0.0
    %66 = vmatpush1.msra.mxu0 0.0
    %67 = vmatprep.subr.mxu0 0.0
    %68 = vmatpush1.msra.mxu0 0.0
    %69 = vmatprep.subr.mxu0 0.0
    %70 = vmatpush1.msra.mxu0 0.0
    %71 = vmatprep.subr.mxu0 0.0
    %72 = vmatpush1.msra.mxu0 0.0
    %73 = vmatprep.subr.mxu0 0.0
    %74 = vmatpush1.msra.mxu0 0.0
    %75 = vmatprep.subr.mxu0 0.0
    %76 = vmatpush1.msra.mxu0 0.0
    %77 = vmatprep.subr.mxu0 0.0
    %78 = vmatpush1.msra.mxu0 0.0
    %79 = vmatprep.subr.mxu0 0.0
    %80 = vmatpush1.msra.mxu0 0.0
    %81 = vmatprep.subr.mxu0 0.0
    %82 = vmatpush1.msra.mxu0 0.0
    %83 = vmatprep.subr.mxu0 0.0
    %84 = vmatpush1.msra.mxu0 0.0
    %85 = vmatprep.subr.mxu0 0.0
    %86 = vmatpush1.msra.mxu0 0.0
    %87 = vmatprep.subr.mxu0 0.0
    %88 = vmatpush1.msra.mxu0 0.0
    %89 = vmatprep.subr.mxu0 0.0
    %90 = vmatpush1.msra.mxu0 0.0
    %91 = vmatprep.subr.mxu0 0.0
    %92 = vmatpush1.msra.mxu0 0.0
    %93 = vmatprep.subr.mxu0 0.0
    %94 = vmatpush1.msra.mxu0 0.0
    %95 = vmatprep.subr.mxu0 0.0
    %96 = vmatpush1.msra.mxu0 0.0
    %97 = vmatprep.subr.mxu0 0.0
    %98 = vmatpush1.msra.mxu0 0.0
    %99 = vmatprep.subr.mxu0 0.0
    %100 = vmatpush1.msra.mxu0 0.0
    %101 = vmatprep.subr.mxu0 0.0
    %102 = vmatpush1.msra.mxu0 0.0
    %103 = vmatprep.subr.mxu0 0.0
    %104 = vmatpush1.msra.mxu0 0.0
    %105 = vmatprep.subr.mxu0 0.0
    %106 = vmatpush1.msra.mxu0 0.0
    %107 = vmatprep.subr.mxu0 0.0
    %108 = vmatpush1.msra.mxu0 0.0
    %109 = vmatprep.subr.mxu0 0.0
    %110 = vmatpush1.msra.mxu0 0.0
    %111 = vmatprep.subr.mxu0 0.0
    %112 = vmatpush1.msra.mxu0 0.0
    %113 = vmatprep.mubr.f32.mxu0 0.0
    %114 = vmatmul.mubr.f32.gmra.mrb[0].mxu0 %v47
    %v115 = vpop.f32.mrb[0].mxu0
    %v116 = vadd.f32 %v44, %v115
    %v117 = vpop.f32.mrb[0].mxu0
    %118 = vdwg.mxu0
    %v119 = vxor.u32 %v116, 2147483648
    %v120 = vmul.f32 %v119, 1.442695
    %v121 = vpow.pop %v120
    %v122 = vadd.f32 %v121, 1.0
    %v123 = vrcp.pop %v122
    %v124 = vmul.f32 1.0, %v123
    %v125 = vtanh.pop %v116
    %127 = vrot.lane.b32.xlu0 %v125, 96
    %v128 = vpop.permute.xlu0 %127
    %v130 = vmul.f32 %v124, %v128
    %v131 = vtanh.pop %v130
    %133 = vrot.lane.b32.xlu0 %v131, 48
    %v134 = vpop.permute.xlu0 %133
    %v136 = vmul.f32 %v124, %v134
    %v137 = vld [vmem:[#allocation2 + $0x100] sm:$0xff]
    %v138 = vld [vmem:[#allocation2 + $0x108] sm:$0xff]
    %140 = vrot.lane.b32.xlu0 %v136, 80
    %v141 = vpop.permute.xlu0 %140
    %vm142 = vcmask 130048
    %v143 = vsel %vm142, %v141, 0
    %145 = vmatprep.subr.mxu0 0.0
    %146 = vmatpush1.msra.mxu0 %v137
    %147 = vmatprep.subr.mxu0 0.0
    %148 = vmatpush1.msra.mxu0 %v138
    %149 = vmatprep.subr.mxu0 0.0
    %150 = vmatpush1.msra.mxu0 0.0
    %151 = vmatprep.subr.mxu0 0.0
    %152 = vmatpush1.msra.mxu0 0.0
    %153 = vmatprep.subr.mxu0 0.0
    %154 = vmatpush1.msra.mxu0 0.0
    %155 = vmatprep.subr.mxu0 0.0
    %156 = vmatpush1.msra.mxu0 0.0
    %157 = vmatprep.subr.mxu0 0.0
    %158 = vmatpush1.msra.mxu0 0.0
    %159 = vmatprep.subr.mxu0 0.0
    %160 = vmatpush1.msra.mxu0 0.0
    %161 = vmatprep.subr.mxu0 0.0
    %162 = vmatpush1.msra.mxu0 0.0
    %163 = vmatprep.subr.mxu0 0.0
    %164 = vmatpush1.msra.mxu0 0.0
    %165 = vmatprep.subr.mxu0 0.0
    %166 = vmatpush1.msra.mxu0 0.0
    %167 = vmatprep.subr.mxu0 0.0
    %168 = vmatpush1.msra.mxu0 0.0
    %169 = vmatprep.subr.mxu0 0.0
    %170 = vmatpush1.msra.mxu0 0.0
    %171 = vmatprep.subr.mxu0 0.0
    %172 = vmatpush1.msra.mxu0 0.0
    %173 = vmatprep.subr.mxu0 0.0
    %174 = vmatpush1.msra.mxu0 0.0
    %175 = vmatprep.subr.mxu0 0.0
    %176 = vmatpush1.msra.mxu0 0.0
    %177 = vmatprep.subr.mxu0 0.0
    %178 = vmatpush1.msra.mxu0 0.0
    %179 = vmatprep.subr.mxu0 0.0
    %180 = vmatpush1.msra.mxu0 0.0
    %181 = vmatprep.subr.mxu0 0.0
    %182 = vmatpush1.msra.mxu0 0.0
    %183 = vmatprep.subr.mxu0 0.0
    %184 = vmatpush1.msra.mxu0 0.0
    %185 = vmatprep.subr.mxu0 0.0
    %186 = vmatpush1.msra.mxu0 0.0
    %187 = vmatprep.subr.mxu0 0.0
    %188 = vmatpush1.msra.mxu0 0.0
    %189 = vmatprep.subr.mxu0 0.0
    %190 = vmatpush1.msra.mxu0 0.0
    %191 = vmatprep.subr.mxu0 0.0
    %192 = vmatpush1.msra.mxu0 0.0
    %193 = vmatprep.subr.mxu0 0.0
    %194 = vmatpush1.msra.mxu0 0.0
    %195 = vmatprep.subr.mxu0 0.0
    %196 = vmatpush1.msra.mxu0 0.0
    %197 = vmatprep.subr.mxu0 0.0
    %198 = vmatpush1.msra.mxu0 0.0
    %199 = vmatprep.subr.mxu0 0.0
    %200 = vmatpush1.msra.mxu0 0.0
    %201 = vmatprep.subr.mxu0 0.0
    %202 = vmatpush1.msra.mxu0 0.0
    %203 = vmatprep.subr.mxu0 0.0
    %204 = vmatpush1.msra.mxu0 0.0
    %205 = vmatprep.subr.mxu0 0.0
    %206 = vmatpush1.msra.mxu0 0.0
    %207 = vmatprep.subr.mxu0 0.0
    %208 = vmatpush1.msra.mxu0 0.0
    %209 = vmatprep.mubr.f32.mxu0 0.0
    %210 = vmatmul.mubr.f32.gmra.mrb[0].mxu0 %v143
    %v211 = vpop.f32.mrb[0].mxu0
    %v212 = vadd.f32 0.0, %v211
    %v213 = vpop.f32.mrb[0].mxu0
    %214 = vdwg.mxu0
    %v215 = vadd.f32 %v35, %v212
    %v216 = vld [vmem:[#allocation2 + $0x20] sm:$0xff]
    %v217 = vld [vmem:[#allocation2 + $0x28] sm:$0xff]
    %v218 = vld [vmem:[#allocation2 + $0x30] sm:$0xff]
    %v219 = vld [vmem:[#allocation2 + $0x38] sm:$0xff]
    %v220 = vld [vmem:[%s2 + $0x1] sm:$0x1]
    %v221 = vlaneseq
    %v222 = vshrl.u32 %v221, 7
    %v223 = vsub.s32 0, %v222
    %v224 = vrot.slane %v220, %v223
    %225 = vmatprep.subr.mxu0 0.0
    %226 = vmatpush1.msra.mxu0 %v216
    %227 = vmatprep.subr.mxu0 0.0
    %228 = vmatpush1.msra.mxu0 %v217
    %229 = vmatprep.subr.mxu0 0.0
    %230 = vmatpush1.msra.mxu0 %v218
    %231 = vmatprep.subr.mxu0 0.0
    %232 = vmatpush1.msra.mxu0 %v219
    %233 = vmatprep.subr.mxu0 0.0
    %234 = vmatpush1.msra.mxu0 0.0
    %235 = vmatprep.subr.mxu0 0.0
    %236 = vmatpush1.msra.mxu0 0.0
    %237 = vmatprep.subr.mxu0 0.0
    %238 = vmatpush1.msra.mxu0 0.0
    %239 = vmatprep.subr.mxu0 0.0
    %240 = vmatpush1.msra.mxu0 0.0
    %241 = vmatprep.subr.mxu0 0.0
    %242 = vmatpush1.msra.mxu0 0.0
    %243 = vmatprep.subr.mxu0 0.0
    %244 = vmatpush1.msra.mxu0 0.0
    %245 = vmatprep.subr.mxu0 0.0
    %246 = vmatpush1.msra.mxu0 0.0
    %247 = vmatprep.subr.mxu0 0.0
    %248 = vmatpush1.msra.mxu0 0.0
    %249 = vmatprep.subr.mxu0 0.0
    %250 = vmatpush1.msra.mxu0 0.0
    %251 = vmatprep.subr.mxu0 0.0
    %252 = vmatpush1.msra.mxu0 0.0
    %253 = vmatprep.subr.mxu0 0.0
    %254 = vmatpush1.msra.mxu0 0.0
    %255 = vmatprep.subr.mxu0 0.0
    %256 = vmatpush1.msra.mxu0 0.0
    %257 = vmatprep.subr.mxu0 0.0
    %258 = vmatpush1.msra.mxu0 0.0
    %259 = vmatprep.subr.mxu0 0.0
    %260 = vmatpush1.msra.mxu0 0.0
    %261 = vmatprep.subr.mxu0 0.0
    %262 = vmatpush1.msra.mxu0 0.0
    %263 = vmatprep.subr.mxu0 0.0
    %264 = vmatpush1.msra.mxu0 0.0
    %265 = vmatprep.subr.mxu0 0.0
    %266 = vmatpush1.msra.mxu0 0.0
    %267 = vmatprep.subr.mxu0 0.0
    %268 = vmatpush1.msra.mxu0 0.0
    %269 = vmatprep.subr.mxu0 0.0
    %270 = vmatpush1.msra.mxu0 0.0
    %271 = vmatprep.subr.mxu0 0.0
    %272 = vmatpush1.msra.mxu0 0.0
    %273 = vmatprep.subr.mxu0 0.0
    %274 = vmatpush1.msra.mxu0 0.0
    %275 = vmatprep.subr.mxu0 0.0
    %276 = vmatpush1.msra.mxu0 0.0
    %277 = vmatprep.subr.mxu0 0.0
    %278 = vmatpush1.msra.mxu0 0.0
    %279 = vmatprep.subr.mxu0 0.0
    %280 = vmatpush1.msra.mxu0 0.0
    %281 = vmatprep.subr.mxu0 0.0
    %282 = vmatpush1.msra.mxu0 0.0
    %283 = vmatprep.subr.mxu0 0.0
    %284 = vmatpush1.msra.mxu0 0.0
    %285 = vmatprep.subr.mxu0 0.0
    %286 = vmatpush1.msra.mxu0 0.0
    %287 = vmatprep.subr.mxu0 0.0
    %288 = vmatpush1.msra.mxu0 0.0
    %289 = vmatprep.mubr.f32.mxu0 0.0
    %290 = vmatmul.mubr.f32.gmra.mrb[0].mxu0 %v47
    %v291 = vpop.f32.mrb[0].mxu0
    %v292 = vadd.f32 %v224, %v291
    %v293 = vpop.f32.mrb[0].mxu0
    %294 = vdwg.mxu0
    %v295 = vxor.u32 %v292, 2147483648
    %v296 = vmul.f32 %v295, 1.442695
    %v297 = vpow.pop %v296
    %v298 = vadd.f32 %v297, 1.0
    %v299 = vrcp.pop %v298
    %v300 = vmul.f32 1.0, %v299
    %v301 = vtanh.pop %v292
    %303 = vrot.lane.b32.xlu0 %v301, 96
    %v304 = vpop.permute.xlu0 %303
    %v306 = vmul.f32 %v300, %v304
    %v307 = vtanh.pop %v306
    %309 = vrot.lane.b32.xlu0 %v307, 48
    %v310 = vpop.permute.xlu0 %309
    %v312 = vmul.f32 %v300, %v310
    %v313 = vld [vmem:[#allocation2 + $0x110] sm:$0xff]
    %v314 = vld [vmem:[#allocation2 + $0x118] sm:$0xff]
    %316 = vrot.lane.b32.xlu0 %v312, 80
    %v317 = vpop.permute.xlu0 %316
    %v318 = vsel %vm142, %v317, 0
    %320 = vmatprep.subr.mxu0 0.0
    %321 = vmatpush1.msra.mxu0 %v313
    %322 = vmatprep.subr.mxu0 0.0
    %323 = vmatpush1.msra.mxu0 %v314
    %324 = vmatprep.subr.mxu0 0.0
    %325 = vmatpush1.msra.mxu0 0.0
    %326 = vmatprep.subr.mxu0 0.0
    %327 = vmatpush1.msra.mxu0 0.0
    %328 = vmatprep.subr.mxu0 0.0
    %329 = vmatpush1.msra.mxu0 0.0
    %330 = vmatprep.subr.mxu0 0.0
    %331 = vmatpush1.msra.mxu0 0.0
    %332 = vmatprep.subr.mxu0 0.0
    %333 = vmatpush1.msra.mxu0 0.0
    %334 = vmatprep.subr.mxu0 0.0
    %335 = vmatpush1.msra.mxu0 0.0
    %336 = vmatprep.subr.mxu0 0.0
    %337 = vmatpush1.msra.mxu0 0.0
    %338 = vmatprep.subr.mxu0 0.0
    %339 = vmatpush1.msra.mxu0 0.0
    %340 = vmatprep.subr.mxu0 0.0
    %341 = vmatpush1.msra.mxu0 0.0
    %342 = vmatprep.subr.mxu0 0.0
    %343 = vmatpush1.msra.mxu0 0.0
    %344 = vmatprep.subr.mxu0 0.0
    %345 = vmatpush1.msra.mxu0 0.0
    %346 = vmatprep.subr.mxu0 0.0
    %347 = vmatpush1.msra.mxu0 0.0
    %348 = vmatprep.subr.mxu0 0.0
    %349 = vmatpush1.msra.mxu0 0.0
    %350 = vmatprep.subr.mxu0 0.0
    %351 = vmatpush1.msra.mxu0 0.0
    %352 = vmatprep.subr.mxu0 0.0
    %353 = vmatpush1.msra.mxu0 0.0
    %354 = vmatprep.subr.mxu0 0.0
    %355 = vmatpush1.msra.mxu0 0.0
    %356 = vmatprep.subr.mxu0 0.0
    %357 = vmatpush1.msra.mxu0 0.0
    %358 = vmatprep.subr.mxu0 0.0
    %359 = vmatpush1.msra.mxu0 0.0
    %360 = vmatprep.subr.mxu0 0.0
    %361 = vmatpush1.msra.mxu0 0.0
    %362 = vmatprep.subr.mxu0 0.0
    %363 = vmatpush1.msra.mxu0 0.0
    %364 = vmatprep.subr.mxu0 0.0
    %365 = vmatpush1.msra.mxu0 0.0
    %366 = vmatprep.subr.mxu0 0.0
    %367 = vmatpush1.msra.mxu0 0.0
    %368 = vmatprep.subr.mxu0 0.0
    %369 = vmatpush1.msra.mxu0 0.0
    %370 = vmatprep.subr.mxu0 0.0
    %371 = vmatpush1.msra.mxu0 0.0
    %372 = vmatprep.subr.mxu0 0.0
    %373 = vmatpush1.msra.mxu0 0.0
    %374 = vmatprep.subr.mxu0 0.0
    %375 = vmatpush1.msra.mxu0 0.0
    %376 = vmatprep.subr.mxu0 0.0
    %377 = vmatpush1.msra.mxu0 0.0
    %378 = vmatprep.subr.mxu0 0.0
    %379 = vmatpush1.msra.mxu0 0.0
    %380 = vmatprep.subr.mxu0 0.0
    %381 = vmatpush1.msra.mxu0 0.0
    %382 = vmatprep.subr.mxu0 0.0
    %383 = vmatpush1.msra.mxu0 0.0
    %384 = vmatprep.mubr.f32.mxu0 0.0
    %385 = vmatmul.mubr.f32.gmra.mrb[0].mxu0 %v318
    %v386 = vpop.f32.mrb[0].mxu0
    %v387 = vadd.f32 0.0, %v386
    %v388 = vpop.f32.mrb[0].mxu0
    %389 = vdwg.mxu0
    %v390 = vadd.f32 %v215, %v387
    %v391 = vld [vmem:[#allocation2 + $0x40] sm:$0xff]
    %v392 = vld [vmem:[#allocation2 + $0x48] sm:$0xff]
    %v393 = vld [vmem:[#allocation2 + $0x50] sm:$0xff]
    %v394 = vld [vmem:[#allocation2 + $0x58] sm:$0xff]
    %v395 = vld [vmem:[%s2 + $0x2] sm:$0x1]
    %v396 = vlaneseq
    %v397 = vshrl.u32 %v396, 7
    %v398 = vsub.s32 0, %v397
    %v399 = vrot.slane %v395, %v398
    %400 = vrot.lane.b32.xlu0 %v29, 96
    %v401 = vpop.permute.xlu0 %400
    %v402 = vsel %vm45, %v401, 0
    %404 = vmatprep.subr.mxu0 0.0
    %405 = vmatpush1.msra.mxu0 %v391
    %406 = vmatprep.subr.mxu0 0.0
    %407 = vmatpush1.msra.mxu0 %v392
    %408 = vmatprep.subr.mxu0 0.0
    %409 = vmatpush1.msra.mxu0 %v393
    %410 = vmatprep.subr.mxu0 0.0
    %411 = vmatpush1.msra.mxu0 %v394
    %412 = vmatprep.subr.mxu0 0.0
    %413 = vmatpush1.msra.mxu0 0.0
    %414 = vmatprep.subr.mxu0 0.0
    %415 = vmatpush1.msra.mxu0 0.0
    %416 = vmatprep.subr.mxu0 0.0
    %417 = vmatpush1.msra.mxu0 0.0
    %418 = vmatprep.subr.mxu0 0.0
    %419 = vmatpush1.msra.mxu0 0.0
    %420 = vmatprep.subr.mxu0 0.0
    %421 = vmatpush1.msra.mxu0 0.0
    %422 = vmatprep.subr.mxu0 0.0
    %423 = vmatpush1.msra.mxu0 0.0
    %424 = vmatprep.subr.mxu0 0.0
    %425 = vmatpush1.msra.mxu0 0.0
    %426 = vmatprep.subr.mxu0 0.0
    %427 = vmatpush1.msra.mxu0 0.0
    %428 = vmatprep.subr.mxu0 0.0
    %429 = vmatpush1.msra.mxu0 0.0
    %430 = vmatprep.subr.mxu0 0.0
    %431 = vmatpush1.msra.mxu0 0.0
    %432 = vmatprep.subr.mxu0 0.0
    %433 = vmatpush1.msra.mxu0 0.0
    %434 = vmatprep.subr.mxu0 0.0
    %435 = vmatpush1.msra.mxu0 0.0
    %436 = vmatprep.subr.mxu0 0.0
    %437 = vmatpush1.msra.mxu0 0.0
    %438 = vmatprep.subr.mxu0 0.0
    %439 = vmatpush1.msra.mxu0 0.0
    %440 = vmatprep.subr.mxu0 0.0
    %441 = vmatpush1.msra.mxu0 0.0
    %442 = vmatprep.subr.mxu0 0.0
    %443 = vmatpush1.msra.mxu0 0.0
    %444 = vmatprep.subr.mxu0 0.0
    %445 = vmatpush1.msra.mxu0 0.0
    %446 = vmatprep.subr.mxu0 0.0
    %447 = vmatpush1.msra.mxu0 0.0
    %448 = vmatprep.subr.mxu0 0.0
    %449 = vmatpush1.msra.mxu0 0.0
    %450 = vmatprep.subr.mxu0 0.0
    %451 = vmatpush1.msra.mxu0 0.0
    %452 = vmatprep.subr.mxu0 0.0
    %453 = vmatpush1.msra.mxu0 0.0
    %454 = vmatprep.subr.mxu0 0.0
    %455 = vmatpush1.msra.mxu0 0.0
    %456 = vmatprep.subr.mxu0 0.0
    %457 = vmatpush1.msra.mxu0 0.0
    %458 = vmatprep.subr.mxu0 0.0
    %459 = vmatpush1.msra.mxu0 0.0
    %460 = vmatprep.subr.mxu0 0.0
    %461 = vmatpush1.msra.mxu0 0.0
    %462 = vmatprep.subr.mxu0 0.0
    %463 = vmatpush1.msra.mxu0 0.0
    %464 = vmatprep.subr.mxu0 0.0
    %465 = vmatpush1.msra.mxu0 0.0
    %466 = vmatprep.subr.mxu0 0.0
    %467 = vmatpush1.msra.mxu0 0.0
    %468 = vmatprep.mubr.f32.mxu0 0.0
    %469 = vmatmul.mubr.f32.gmra.mrb[0].mxu0 %v402
    %v470 = vpop.f32.mrb[0].mxu0
    %v471 = vadd.f32 %v399, %v470
    %v472 = vpop.f32.mrb[0].mxu0
    %473 = vdwg.mxu0
    %v474 = vld [vmem:[#allocation2 + $0x60] sm:$0xff]
    %v475 = vld [vmem:[#allocation2 + $0x68] sm:$0xff]
    %v476 = vld [vmem:[#allocation2 + $0x70] sm:$0xff]
    %v477 = vld [vmem:[#allocation2 + $0x78] sm:$0xff]
    %v478 = vld [vmem:[%s2 + $0x3] sm:$0x1]
    %480 = vrot.lane.b32.xlu0 %v471, 96
    %v481 = vpop.permute.xlu0 %480
    %vm482 = vcmask 64512
    %v483 = vsel %vm482, %v471, 0
    %v485 = vsel %vm482, %v481, 0
    %487 = vmatprep.subr.mxu0 0.0
    %488 = vmatpush1.xpose.msra.mxu0 %v485
    %489 = vmatprep.subr.mxu0 0.0
    %490 = vmatpush1.xpose.msra.mxu0 0.0
    %491 = vmatprep.subr.mxu0 0.0
    %492 = vmatpush1.xpose.msra.mxu0 0.0
    %493 = vmatprep.subr.mxu0 0.0
    %494 = vmatpush1.xpose.msra.mxu0 0.0
    %495 = vmatprep.subr.mxu0 0.0
    %496 = vmatpush1.xpose.msra.mxu0 0.0
    %497 = vmatprep.subr.mxu0 0.0
    %498 = vmatpush1.xpose.msra.mxu0 0.0
    %499 = vmatprep.subr.mxu0 0.0
    %500 = vmatpush1.xpose.msra.mxu0 0.0
    %501 = vmatprep.subr.mxu0 0.0
    %502 = vmatpush1.xpose.msra.mxu0 0.0
    %503 = vmatprep.subr.mxu0 0.0
    %504 = vmatpush1.xpose.msra.mxu0 0.0
    %505 = vmatprep.subr.mxu0 0.0
    %506 = vmatpush1.xpose.msra.mxu0 0.0
    %507 = vmatprep.subr.mxu0 0.0
    %508 = vmatpush1.xpose.msra.mxu0 0.0
    %509 = vmatprep.subr.mxu0 0.0
    %510 = vmatpush1.xpose.msra.mxu0 0.0
    %511 = vmatprep.subr.mxu0 0.0
    %512 = vmatpush1.xpose.msra.mxu0 0.0
    %513 = vmatprep.subr.mxu0 0.0
    %514 = vmatpush1.xpose.msra.mxu0 0.0
    %515 = vmatprep.subr.mxu0 0.0
    %516 = vmatpush1.xpose.msra.mxu0 0.0
    %517 = vmatprep.subr.mxu0 0.0
    %518 = vmatpush1.xpose.msra.mxu0 0.0
    %519 = vmatprep.subr.mxu0 0.0
    %520 = vmatpush1.xpose.msra.mxu0 0.0
    %521 = vmatprep.subr.mxu0 0.0
    %522 = vmatpush1.xpose.msra.mxu0 0.0
    %523 = vmatprep.subr.mxu0 0.0
    %524 = vmatpush1.xpose.msra.mxu0 0.0
    %525 = vmatprep.subr.mxu0 0.0
    %526 = vmatpush1.xpose.msra.mxu0 0.0
    %527 = vmatprep.subr.mxu0 0.0
    %528 = vmatpush1.xpose.msra.mxu0 0.0
    %529 = vmatprep.subr.mxu0 0.0
    %530 = vmatpush1.xpose.msra.mxu0 0.0
    %531 = vmatprep.subr.mxu0 0.0
    %532 = vmatpush1.xpose.msra.mxu0 0.0
    %533 = vmatprep.subr.mxu0 0.0
    %534 = vmatpush1.xpose.msra.mxu0 0.0
    %535 = vmatprep.subr.mxu0 0.0
    %536 = vmatpush1.xpose.msra.mxu0 0.0
    %537 = vmatprep.subr.mxu0 0.0
    %538 = vmatpush1.xpose.msra.mxu0 0.0
    %539 = vmatprep.subr.mxu0 0.0
    %540 = vmatpush1.xpose.msra.mxu0 0.0
    %541 = vmatprep.subr.mxu0 0.0
    %542 = vmatpush1.xpose.msra.mxu0 0.0
    %543 = vmatprep.subr.mxu0 0.0
    %544 = vmatpush1.xpose.msra.mxu0 0.0
    %545 = vmatprep.subr.mxu0 0.0
    %546 = vmatpush1.xpose.msra.mxu0 0.0
    %547 = vmatprep.subr.mxu0 0.0
    %548 = vmatpush1.xpose.msra.mxu0 0.0
    %549 = vmatprep.subr.mxu0 0.0
    %550 = vmatpush1.xpose.msra.mxu0 0.0
    %551 = vmatprep.mubr.f32.mxu0 0.0
    %552 = vmatmul.mubr.f32.gmra.mrb[0].mxu0 %v483
    %v553 = vpop.f32.mrb[0].mxu0
    %v554 = vadd.f32 0.0, %v553
    %v555 = vpop.f32.mrb[0].mxu0
    %556 = vdwg.mxu0
    %v557 = vmul.f32 %v554, 0.35355338
    %vm558 = vcmask 9216
    %v559 = vsel %vm558, %v557, -inf
    %560 = vmax.xlane.f32.xlu0 %v559
    %v561 = vpop.xlane.xlu0 %560
    %v562 = vsub.f32 %v557, %v561
    %v563 = vmul.f32 %v562, 1.442695
    %v564 = vpow.pop %v563
    %v565 = vsel %vm558, %v564, 0.0
    %566 = vadd.xlane.f32.xlu0 %v565
    %v567 = vpop.xlane.xlu0 %566
    %v568 = vrcp.pop %v567
    %v569 = vmul.f32 %v564, %v568
    %570 = vrot.lane.b32.xlu0 %v471, 64
    %v571 = vpop.permute.xlu0 %570
    %vm572 = vcmask 15360
    %v574 = vsel %vm572, %v569, 0
    %vm576 = vcmask 1041408
    %v577 = vsel %vm576, %v571, 0
    %579 = vmatprep.subr.mxu0 0.0
    %580 = vmatpush1.msra.mxu0 %v577
    %581 = vmatprep.subr.mxu0 0.0
    %582 = vmatpush1.msra.mxu0 0.0
    %583 = vmatprep.subr.mxu0 0.0
    %584 = vmatpush1.msra.mxu0 0.0
    %585 = vmatprep.subr.mxu0 0.0
    %586 = vmatpush1.msra.mxu0 0.0
    %587 = vmatprep.subr.mxu0 0.0
    %588 = vmatpush1.msra.mxu0 0.0
    %589 = vmatprep.subr.mxu0 0.0
    %590 = vmatpush1.msra.mxu0 0.0
    %591 = vmatprep.subr.mxu0 0.0
    %592 = vmatpush1.msra.mxu0 0.0
    %593 = vmatprep.subr.mxu0 0.0
    %594 = vmatpush1.msra.mxu0 0.0
    %595 = vmatprep.subr.mxu0 0.0
    %596 = vmatpush1.msra.mxu0 0.0
    %597 = vmatprep.subr.mxu0 0.0
    %598 = vmatpush1.msra.mxu0 0.0
    %599 = vmatprep.subr.mxu0 0.0
    %600 = vmatpush1.msra.mxu0 0.0
    %601 = vmatprep.subr.mxu0 0.0
    %602 = vmatpush1.msra.mxu0 0.0
    %603 = vmatprep.subr.mxu0 0.0
    %604 = vmatpush1.msra.mxu0 0.0
    %605 = vmatprep.subr.mxu0 0.0
    %606 = vmatpush1.msra.mxu0 0.0
    %607 = vmatprep.subr.mxu0 0.0
    %608 = vmatpush1.msra.mxu0 0.0
    %609 = vmatprep.subr.mxu0 0.0
    %610 = vmatpush1.msra.mxu0 0.0
    %611 = vmatprep.subr.mxu0 0.0
    %612 = vmatpush1.msra.mxu0 0.0
    %613 = vmatprep.subr.mxu0 0.0
    %614 = vmatpush1.msra.mxu0 0.0
    %615 = vmatprep.subr.mxu0 0.0
    %616 = vmatpush1.msra.mxu0 0.0
    %617 = vmatprep.subr.mxu0 0.0
    %618 = vmatpush1.msra.mxu0 0.0
    %619 = vmatprep.subr.mxu0 0.0
    %620 = vmatpush1.msra.mxu0 0.0
    %621 = vmatprep.subr.mxu0 0.0
    %622 = vmatpush1.msra.mxu0 0.0
    %623 = vmatprep.subr.mxu0 0.0
    %624 = vmatpush1.msra.mxu0 0.0
    %625 = vmatprep.subr.mxu0 0.0
    %626 = vmatpush1.msra.mxu0 0.0
    %627 = vmatprep.subr.mxu0 0.0
    %628 = vmatpush1.msra.mxu0 0.0
    %629 = vmatprep.subr.mxu0 0.0
    %630 = vmatpush1.msra.mxu0 0.0
    %631 = vmatprep.subr.mxu0 0.0
    %632 = vmatpush1.msra.mxu0 0.0
    %633 = vmatprep.subr.mxu0 0.0
    %634 = vmatpush1.msra.mxu0 0.0
    %635 = vmatprep.subr.mxu0 0.0
    %636 = vmatpush1.msra.mxu0 0.0
    %637 = vmatprep.subr.mxu0 0.0
    %638 = vmatpush1.msra.mxu0 0.0
    %639 = vmatprep.subr.mxu0 0.0
    %640 = vmatpush1.msra.mxu0 0.0
    %641 = vmatprep.subr.mxu0 0.0
    %642 = vmatpush1.msra.mxu0 0.0
    %643 = vmatprep.mubr.f32.mxu0 0.0
    %644 = vmatmul.mubr.f32.gmra.mrb[0].mxu0 %v574
    %v645 = vpop.f32.mrb[0].mxu0
    %v646 = vadd.f32 0.0, %v645
    %v647 = vpop.f32.mrb[0].mxu0
    %648 = vdwg.mxu0
    %v650 = vsel %vm482, %v646, 0
    %652 = vmatprep.subr.mxu0 0.0
    %653 = vmatpush1.msra.mxu0 %v474
    %654 = vmatprep.subr.mxu0 0.0
    %655 = vmatpush1.msra.mxu0 0.0
    %656 = vmatprep.subr.mxu0 0.0
    %657 = vmatpush1.msra.mxu0 0.0
    %658 = vmatprep.subr.mxu0 0.0
    %659 = vmatpush1.msra.mxu0 0.0
    %660 = vmatprep.subr.mxu0 0.0
    %661 = vmatpush1.msra.mxu0 0.0
    %662 = vmatprep.subr.mxu0 0.0
    %663 = vmatpush1.msra.mxu0 0.0
    %664 = vmatprep.subr.mxu0 0.0
    %665 = vmatpush1.msra.mxu0 0.0
    %666 = vmatprep.subr.mxu0 0.0
    %667 = vmatpush1.msra.mxu0 0.0
    %668 = vmatprep.subr.mxu0 0.0
    %669 = vmatpush1.msra.mxu0 0.0
    %670 = vmatprep.subr.mxu0 0.0
    %671 = vmatpush1.msra.mxu0 0.0
    %672 = vmatprep.subr.mxu0 0.0
    %673 = vmatpush1.msra.mxu0 0.0
    %674 = vmatprep.subr.mxu0 0.0
    %675 = vmatpush1.msra.mxu0 0.0
    %676 = vmatprep.subr.mxu0 0.0
    %677 = vmatpush1.msra.mxu0 0.0
    %678 = vmatprep.subr.mxu0 0.0
    %679 = vmatpush1.msra.mxu0 0.0
    %680 = vmatprep.subr.mxu0 0.0
    %681 = vmatpush1.msra.mxu0 0.0
    %682 = vmatprep.subr.mxu0 0.0
    %683 = vmatpush1.msra.mxu0 0.0
    %684 = vmatprep.subr.mxu0 0.0
    %685 = vmatpush1.msra.mxu0 0.0
    %686 = vmatprep.subr.mxu0 0.0
    %687 = vmatpush1.msra.mxu0 0.0
    %688 = vmatprep.subr.mxu0 0.0
    %689 = vmatpush1.msra.mxu0 0.0
    %690 = vmatprep.subr.mxu0 0.0
    %691 = vmatpush1.msra.mxu0 0.0
    %692 = vmatprep.subr.mxu0 0.0
    %693 = vmatpush1.msra.mxu0 0.0
    %694 = vmatprep.subr.mxu0 0.0
    %695 = vmatpush1.msra.mxu0 0.0
    %696 = vmatprep.subr.mxu0 0.0
    %697 = vmatpush1.msra.mxu0 0.0
    %698 = vmatprep.subr.mxu0 0.0
    %699 = vmatpush1.msra.mxu0 0.0
    %700 = vmatprep.subr.mxu0 0.0
    %701 = vmatpush1.msra.mxu0 0.0
    %702 = vmatprep.subr.mxu0 0.0
    %703 = vmatpush1.msra.mxu0 0.0
    %704 = vmatprep.subr.mxu0 0.0
    %705 = vmatpush1.msra.mxu0 0.0
    %706 = vmatprep.subr.mxu0 0.0
    %707 = vmatpush1.msra.mxu0 0.0
    %708 = vmatprep.subr.mxu0 0.0
    %709 = vmatpush1.msra.mxu0 0.0
    %710 = vmatprep.subr.mxu0 0.0
    %711 = vmatpush1.msra.mxu0 0.0
    %712 = vmatprep.subr.mxu0 0.0
    %713 = vmatpush1.msra.mxu0 0.0
    %714 = vmatprep.subr.mxu0 0.0
    %715 = vmatpush1.msra.mxu0 0.0
    %716 = vmatprep.mubr.f32.mxu0 0.0
    %717 = vmatmul.mubr.f32.gmra.mrb[0].mxu0 %v650
    %v718 = vpop.f32.mrb[0].mxu0
    %v719 = vadd.f32 0.0, %v718
    %v720 = vpop.f32.mrb[0].mxu0
    %721 = vdwg.mxu0
    %v722 = vlaneseq
    %v723 = vshrl.u32 %v722, 7
    %v724 = vsub.s32 0, %v723
    %v725 = vrot.slane %v478, %v724
    %v726 = vadd.f32 %v725, %v719
    %727 = vrot.lane.b32.xlu0 %v471, 120
    %v728 = vpop.permute.xlu0 %727
    %729 = vrot.lane.b32.xlu0 %v471, 88
    %v730 = vpop.permute.xlu0 %729
    %v731 = vsel %vm482, %v728, 0
    %v733 = vsel %vm482, %v730, 0
    %735 = vmatprep.subr.mxu0 0.0
    %736 = vmatpush1.xpose.msra.mxu0 %v733
    %737 = vmatprep.subr.mxu0 0.0
    %738 = vmatpush1.xpose.msra.mxu0 0.0
    %739 = vmatprep.subr.mxu0 0.0
    %740 = vmatpush1.xpose.msra.mxu0 0.0
    %741 = vmatprep.subr.mxu0 0.0
    %742 = vmatpush1.xpose.msra.mxu0 0.0
    %743 = vmatprep.subr.mxu0 0.0
    %744 = vmatpush1.xpose.msra.mxu0 0.0
    %745 = vmatprep.subr.mxu0 0.0
    %746 = vmatpush1.xpose.msra.mxu0 0.0
    %747 = vmatprep.subr.mxu0 0.0
    %748 = vmatpush1.xpose.msra.mxu0 0.0
    %749 = vmatprep.subr.mxu0 0.0
    %750 = vmatpush1.xpose.msra.mxu0 0.0
    %751 = vmatprep.subr.mxu0 0.0
    %752 = vmatpush1.xpose.msra.mxu0 0.0
    %753 = vmatprep.subr.mxu0 0.0
    %754 = vmatpush1.xpose.msra.mxu0 0.0
    %755 = vmatprep.subr.mxu0 0.0
    %756 = vmatpush1.xpose.msra.mxu0 0.0
    %757 = vmatprep.subr.mxu0 0.0
    %758 = vmatpush1.xpose.msra.mxu0 0.0
    %759 = vmatprep.subr.mxu0 0.0
    %760 = vmatpush1.xpose.msra.mxu0 0.0
    %761 = vmatprep.subr.mxu0 0.0
    %762 = vmatpush1.xpose.msra.mxu0 0.0
    %763 = vmatprep.subr.mxu0 0.0
    %764 = vmatpush1.xpose.msra.mxu0 0.0
    %765 = vmatprep.subr.mxu0 0.0
    %766 = vmatpush1.xpose.msra.mxu0 0.0
    %767 = vmatprep.subr.mxu0 0.0
    %768 = vmatpush1.xpose.msra.mxu0 0.0
    %769 = vmatprep.subr.mxu0 0.0
    %770 = vmatpush1.xpose.msra.mxu0 0.0
    %771 = vmatprep.subr.mxu0 0.0
    %772 = vmatpush1.xpose.msra.mxu0 0.0
    %773 = vmatprep.subr.mxu0 0.0
    %774 = vmatpush1.xpose.msra.mxu0 0.0
    %775 = vmatprep.subr.mxu0 0.0
    %776 = vmatpush1.xpose.msra.mxu0 0.0
    %777 = vmatprep.subr.mxu0 0.0
    %778 = vmatpush1.xpose.msra.mxu0 0.0
    %779 = vmatprep.subr.mxu0 0.0
    %780 = vmatpush1.xpose.msra.mxu0 0.0
    %781 = vmatprep.subr.mxu0 0.0
    %782 = vmatpush1.xpose.msra.mxu0 0.0
    %783 = vmatprep.subr.mxu0 0.0
    %784 = vmatpush1.xpose.msra.mxu0 0.0
    %785 = vmatprep.subr.mxu0 0.0
    %786 = vmatpush1.xpose.msra.mxu0 0.0
    %787 = vmatprep.subr.mxu0 0.0
    %788 = vmatpush1.xpose.msra.mxu0 0.0
    %789 = vmatprep.subr.mxu0 0.0
    %790 = vmatpush1.xpose.msra.mxu0 0.0
    %791 = vmatprep.subr.mxu0 0.0
    %792 = vmatpush1.xpose.msra.mxu0 0.0
    %793 = vmatprep.subr.mxu0 0.0
    %794 = vmatpush1.xpose.msra.mxu0 0.0
    %795 = vmatprep.subr.mxu0 0.0
    %796 = vmatpush1.xpose.msra.mxu0 0.0
    %797 = vmatprep.subr.mxu0 0.0
    %798 = vmatpush1.xpose.msra.mxu0 0.0
    %799 = vmatprep.mubr.f32.mxu0 0.0
    %800 = vmatmul.mubr.f32.gmra.mrb[0].mxu0 %v731
    %v801 = vpop.f32.mrb[0].mxu0
    %v802 = vadd.f32 0.0, %v801
    %v803 = vpop.f32.mrb[0].mxu0
    %804 = vdwg.mxu0
    %v805 = vmul.f32 %v802, 0.35355338
    %v806 = vsel %vm558, %v805, -inf
    %807 = vmax.xlane.f32.xlu0 %v806
    %v808 = vpop.xlane.xlu0 %807
    %v809 = vsub.f32 %v805, %v808
    %v810 = vmul.f32 %v809, 1.442695
    %v811 = vpow.pop %v810
    %v812 = vsel %vm558, %v811, 0.0
    %813 = vadd.xlane.f32.xlu0 %v812
    %v814 = vpop.xlane.xlu0 %813
    %v815 = vrcp.pop %v814
    %v816 = vmul.f32 %v811, %v815
    %817 = vrot.lane.b32.xlu0 %v471, 56
    %v818 = vpop.permute.xlu0 %817
    %v820 = vsel %vm572, %v816, 0
    %v822 = vsel %vm576, %v818, 0
    %824 = vmatprep.subr.mxu0 0.0
    %825 = vmatpush1.msra.mxu0 %v822
    %826 = vmatprep.subr.mxu0 0.0
    %827 = vmatpush1.msra.mxu0 0.0
    %828 = vmatprep.subr.mxu0 0.0
    %829 = vmatpush1.msra.mxu0 0.0
    %830 = vmatprep.subr.mxu0 0.0
    %831 = vmatpush1.msra.mxu0 0.0
    %832 = vmatprep.subr.mxu0 0.0
    %833 = vmatpush1.msra.mxu0 0.0
    %834 = vmatprep.subr.mxu0 0.0
    %835 = vmatpush1.msra.mxu0 0.0
    %836 = vmatprep.subr.mxu0 0.0
    %837 = vmatpush1.msra.mxu0 0.0
    %838 = vmatprep.subr.mxu0 0.0
    %839 = vmatpush1.msra.mxu0 0.0
    %840 = vmatprep.subr.mxu0 0.0
    %841 = vmatpush1.msra.mxu0 0.0
    %842 = vmatprep.subr.mxu0 0.0
    %843 = vmatpush1.msra.mxu0 0.0
    %844 = vmatprep.subr.mxu0 0.0
    %845 = vmatpush1.msra.mxu0 0.0
    %846 = vmatprep.subr.mxu0 0.0
    %847 = vmatpush1.msra.mxu0 0.0
    %848 = vmatprep.subr.mxu0 0.0
    %849 = vmatpush1.msra.mxu0 0.0
    %850 = vmatprep.subr.mxu0 0.0
    %851 = vmatpush1.msra.mxu0 0.0
    %852 = vmatprep.subr.mxu0 0.0
    %853 = vmatpush1.msra.mxu0 0.0
    %854 = vmatprep.subr.mxu0 0.0
    %855 = vmatpush1.msra.mxu0 0.0
    %856 = vmatprep.subr.mxu0 0.0
    %857 = vmatpush1.msra.mxu0 0.0
    %858 = vmatprep.subr.mxu0 0.0
    %859 = vmatpush1.msra.mxu0 0.0
    %860 = vmatprep.subr.mxu0 0.0
    %861 = vmatpush1.msra.mxu0 0.0
    %862 = vmatprep.subr.mxu0 0.0
    %863 = vmatpush1.msra.mxu0 0.0
    %864 = vmatprep.subr.mxu0 0.0
    %865 = vmatpush1.msra.mxu0 0.0
    %866 = vmatprep.subr.mxu0 0.0
    %867 = vmatpush1.msra.mxu0 0.0
    %868 = vmatprep.subr.mxu0 0.0
    %869 = vmatpush1.msra.mxu0 0.0
    %870 = vmatprep.subr.mxu0 0.0
    %871 = vmatpush1.msra.mxu0 0.0
    %872 = vmatprep.subr.mxu0 0.0
    %873 = vmatpush1.msra.mxu0 0.0
    %874 = vmatprep.subr.mxu0 0.0
    %875 = vmatpush1.msra.mxu0 0.0
    %876 = vmatprep.subr.mxu0 0.0
    %877 = vmatpush1.msra.mxu0 0.0
    %878 = vmatprep.subr.mxu0 0.0
    %879 = vmatpush1.msra.mxu0 0.0
    %880 = vmatprep.subr.mxu0 0.0
    %881 = vmatpush1.msra.mxu0 0.0
    %882 = vmatprep.subr.mxu0 0.0
    %883 = vmatpush1.msra.mxu0 0.0
    %884 = vmatprep.subr.mxu0 0.0
    %885 = vmatpush1.msra.mxu0 0.0
    %886 = vmatprep.subr.mxu0 0.0
    %887 = vmatpush1.msra.mxu0 0.0
    %888 = vmatprep.mubr.f32.mxu0 0.0
    %889 = vmatmul.mubr.f32.gmra.mrb[0].mxu0 %v820
    %v890 = vpop.f32.mrb[0].mxu0
    %v891 = vadd.f32 0.0, %v890
    %v892 = vpop.f32.mrb[0].mxu0
    %893 = vdwg.mxu0
    %v895 = vsel %vm482, %v891, 0
    %897 = vmatprep.subr.mxu0 0.0
    %898 = vmatpush1.msra.mxu0 %v475
    %899 = vmatprep.subr.mxu0 0.0
    %900 = vmatpush1.msra.mxu0 0.0
    %901 = vmatprep.subr.mxu0 0.0
    %902 = vmatpush1.msra.mxu0 0.0
    %903 = vmatprep.subr.mxu0 0.0
    %904 = vmatpush1.msra.mxu0 0.0
    %905 = vmatprep.subr.mxu0 0.0
    %906 = vmatpush1.msra.mxu0 0.0
    %907 = vmatprep.subr.mxu0 0.0
    %908 = vmatpush1.msra.mxu0 0.0
    %909 = vmatprep.subr.mxu0 0.0
    %910 = vmatpush1.msra.mxu0 0.0
    %911 = vmatprep.subr.mxu0 0.0
    %912 = vmatpush1.msra.mxu0 0.0
    %913 = vmatprep.subr.mxu0 0.0
    %914 = vmatpush1.msra.mxu0 0.0
    %915 = vmatprep.subr.mxu0 0.0
    %916 = vmatpush1.msra.mxu0 0.0
    %917 = vmatprep.subr.mxu0 0.0
    %918 = vmatpush1.msra.mxu0 0.0
    %919 = vmatprep.subr.mxu0 0.0
    %920 = vmatpush1.msra.mxu0 0.0
    %921 = vmatprep.subr.mxu0 0.0
    %922 = vmatpush1.msra.mxu0 0.0
    %923 = vmatprep.subr.mxu0 0.0
    %924 = vmatpush1.msra.mxu0 0.0
    %925 = vmatprep.subr.mxu0 0.0
    %926 = vmatpush1.msra.mxu0 0.0
    %927 = vmatprep.subr.mxu0 0.0
    %928 = vmatpush1.msra.mxu0 0.0
    %929 = vmatprep.subr.mxu0 0.0
    %930 = vmatpush1.msra.mxu0 0.0
    %931 = vmatprep.subr.mxu0 0.0
    %932 = vmatpush1.msra.mxu0 0.0
    %933 = vmatprep.subr.mxu0 0.0
    %934 = vmatpush1.msra.mxu0 0.0
    %935 = vmatprep.subr.mxu0 0.0
    %936 = vmatpush1.msra.mxu0 0.0
    %937 = vmatprep.subr.mxu0 0.0
    %938 = vmatpush1.msra.mxu0 0.0
    %939 = vmatprep.subr.mxu0 0.0
    %940 = vmatpush1.msra.mxu0 0.0
    %941 = vmatprep.subr.mxu0 0.0
    %942 = vmatpush1.msra.mxu0 0.0
    %943 = vmatprep.subr.mxu0 0.0
    %944 = vmatpush1.msra.mxu0 0.0
    %945 = vmatprep.subr.mxu0 0.0
    %946 = vmatpush1.msra.mxu0 0.0
    %947 = vmatprep.subr.mxu0 0.0
    %948 = vmatpush1.msra.mxu0 0.0
    %949 = vmatprep.subr.mxu0 0.0
    %950 = vmatpush1.msra.mxu0 0.0
    %951 = vmatprep.subr.mxu0 0.0
    %952 = vmatpush1.msra.mxu0 0.0
    %953 = vmatprep.subr.mxu0 0.0
    %954 = vmatpush1.msra.mxu0 0.0
    %955 = vmatprep.subr.mxu0 0.0
    %956 = vmatpush1.msra.mxu0 0.0
    %957 = vmatprep.subr.mxu0 0.0
    %958 = vmatpush1.msra.mxu0 0.0
    %959 = vmatprep.subr.mxu0 0.0
    %960 = vmatpush1.msra.mxu0 0.0
    %961 = vmatprep.mubr.f32.mxu0 0.0
    %962 = vmatmul.mubr.f32.gmra.mrb[0].mxu0 %v895
    %v963 = vpop.f32.mrb[0].mxu0
    %v964 = vadd.f32 0.0, %v963
    %v965 = vpop.f32.mrb[0].mxu0
    %966 = vdwg.mxu0
    %v967 = vadd.f32 %v726, %v964
    %968 = vrot.lane.b32.xlu0 %v471, 112
    %v969 = vpop.permute.xlu0 %968
    %970 = vrot.lane.b32.xlu0 %v471, 80
    %v971 = vpop.permute.xlu0 %970
    %v972 = vsel %vm482, %v969, 0
    %v974 = vsel %vm482, %v971, 0
    %976 = vmatprep.subr.mxu0 0.0
    %977 = vmatpush1.xpose.msra.mxu0 %v974
    %978 = vmatprep.subr.mxu0 0.0
    %979 = vmatpush1.xpose.msra.mxu0 0.0
    %980 = vmatprep.subr.mxu0 0.0
    %981 = vmatpush1.xpose.msra.mxu0 0.0
    %982 = vmatprep.subr.mxu0 0.0
    %983 = vmatpush1.xpose.msra.mxu0 0.0
    %984 = vmatprep.subr.mxu0 0.0
    %985 = vmatpush1.xpose.msra.mxu0 0.0
    %986 = vmatprep.subr.mxu0 0.0
    %987 = vmatpush1.xpose.msra.mxu0 0.0
    %988 = vmatprep.subr.mxu0 0.0
    %989 = vmatpush1.xpose.msra.mxu0 0.0
    %990 = vmatprep.subr.mxu0 0.0
    %991 = vmatpush1.xpose.msra.mxu0 0.0
    %992 = vmatprep.subr.mxu0 0.0
    %993 = vmatpush1.xpose.msra.mxu0 0.0
    %994 = vmatprep.subr.mxu0 0.0
    %995 = vmatpush1.xpose.msra.mxu0 0.0
    %996 = vmatprep.subr.mxu0 0.0
    %997 = vmatpush1.xpose.msra.mxu0 0.0
    %998 = vmatprep.subr.mxu0 0.0
    %999 = vmatpush1.xpose.msra.mxu0 0.0
    %1000 = vmatprep.subr.mxu0 0.0
    %1001 = vmatpush1.xpose.msra.mxu0 0.0
    %1002 = vmatprep.subr.mxu0 0.0
    %1003 = vmatpush1.xpose.msra.mxu0 0.0
    %1004 = vmatprep.subr.mxu0 0.0
    %1005 = vmatpush1.xpose.msra.mxu0 0.0
    %1006 = vmatprep.subr.mxu0 0.0
    %1007 = vmatpush1.xpose.msra.mxu0 0.0
    %1008 = vmatprep.subr.mxu0 0.0
    %1009 = vmatpush1.xpose.msra.mxu0 0.0
    %1010 = vmatprep.subr.mxu0 0.0
    %1011 = vmatpush1.xpose.msra.mxu0 0.0
    %1012 = vmatprep.subr.mxu0 0.0
    %1013 = vmatpush1.xpose.msra.mxu0 0.0
    %1014 = vmatprep.subr.mxu0 0.0
    %1015 = vmatpush1.xpose.msra.mxu0 0.0
    %1016 = vmatprep.subr.mxu0 0.0
    %1017 = vmatpush1.xpose.msra.mxu0 0.0
    %1018 = vmatprep.subr.mxu0 0.0
    %1019 = vmatpush1.xpose.msra.mxu0 0.0
    %1020 = vmatprep.subr.mxu0 0.0
    %1021 = vmatpush1.xpose.msra.mxu0 0.0
    %1022 = vmatprep.subr.mxu0 0.0
    %1023 = vmatpush1.xpose.msra.mxu0 0.0
    %1024 = vmatprep.subr.mxu0 0.0
    %1025 = vmatpush1.xpose.msra.mxu0 0.0
    %1026 = vmatprep.subr.mxu0 0.0
    %1027 = vmatpush1.xpose.msra.mxu0 0.0
    %1028 = vmatprep.subr.mxu0 0.0
    %1029 = vmatpush1.xpose.msra.mxu0 0.0
    %1030 = vmatprep.subr.mxu0 0.0
    %1031 = vmatpush1.xpose.msra.mxu0 0.0
    %1032 = vmatprep.subr.mxu0 0.0
    %1033 = vmatpush1.xpose.msra.mxu0 0.0
    %1034 = vmatprep.subr.mxu0 0.0
    %1035 = vmatpush1.xpose.msra.mxu0 0.0
    %1036 = vmatprep.subr.mxu0 0.0
    %1037 = vmatpush1.xpose.msra.mxu0 0.0
    %1038 = vmatprep.subr.mxu0 0.0
    %1039 = vmatpush1.xpose.msra.mxu0 0.0
    %1040 = vmatprep.mubr.f32.mxu0 0.0
    %1041 = vmatmul.mubr.f32.gmra.mrb[0].mxu0 %v972
    %v1042 = vpop.f32.mrb[0].mxu0
    %v1043 = vadd.f32 0.0, %v1042
    %v1044 = vpop.f32.mrb[0].mxu0
    %1045 = vdwg.mxu0
    %v1046 = vmul.f32 %v1043, 0.35355338
    %v1047 = vsel %vm558, %v1046, -inf
    %1048 = vmax.xlane.f32.xlu0 %v1047
    %v1049 = vpop.xlane.xlu0 %1048
    %v1050 = vsub.f32 %v1046, %v1049
    %v1051 = vmul.f32 %v1050, 1.442695
    %v1052 = vpow.pop %v1051
    %v1053 = vsel %vm558, %v1052, 0.0
    %1054 = vadd.xlane.f32.xlu0 %v1053
    %v1055 = vpop.xlane.xlu0 %1054
    %v1056 = vrcp.pop %v1055
    %v1057 = vmul.f32 %v1052, %v1056
    %1058 = vrot.lane.b32.xlu0 %v471, 48
    %v1059 = vpop.permute.xlu0 %1058
    %v1061 = vsel %vm572, %v1057, 0
    %v1063 = vsel %vm576, %v1059, 0
    %1065 = vmatprep.subr.mxu0 0.0
    %1066 = vmatpush1.msra.mxu0 %v1063
    %1067 = vmatprep.subr.mxu0 0.0
    %1068 = vmatpush1.msra.mxu0 0.0
    %1069 = vmatprep.subr.mxu0 0.0
    %1070 = vmatpush1.msra.mxu0 0.0
    %1071 = vmatprep.subr.mxu0 0.0
    %1072 = vmatpush1.msra.mxu0 0.0
    %1073 = vmatprep.subr.mxu0 0.0
    %1074 = vmatpush1.msra.mxu0 0.0
    %1075 = vmatprep.subr.mxu0 0.0
    %1076 = vmatpush1.msra.mxu0 0.0
    %1077 = vmatprep.subr.mxu0 0.0
    %1078 = vmatpush1.msra.mxu0 0.0
    %1079 = vmatprep.subr.mxu0 0.0
    %1080 = vmatpush1.msra.mxu0 0.0
    %1081 = vmatprep.subr.mxu0 0.0
    %1082 = vmatpush1.msra.mxu0 0.0
    %1083 = vmatprep.subr.mxu0 0.0
    %1084 = vmatpush1.msra.mxu0 0.0
    %1085 = vmatprep.subr.mxu0 0.0
    %1086 = vmatpush1.msra.mxu0 0.0
    %1087 = vmatprep.subr.mxu0 0.0
    %1088 = vmatpush1.msra.mxu0 0.0
    %1089 = vmatprep.subr.mxu0 0.0
    %1090 = vmatpush1.msra.mxu0 0.0
    %1091 = vmatprep.subr.mxu0 0.0
    %1092 = vmatpush1.msra.mxu0 0.0
    %1093 = vmatprep.subr.mxu0 0.0
    %1094 = vmatpush1.msra.mxu0 0.0
    %1095 = vmatprep.subr.mxu0 0.0
    %1096 = vmatpush1.msra.mxu0 0.0
    %1097 = vmatprep.subr.mxu0 0.0
    %1098 = vmatpush1.msra.mxu0 0.0
    %1099 = vmatprep.subr.mxu0 0.0
    %1100 = vmatpush1.msra.mxu0 0.0
    %1101 = vmatprep.subr.mxu0 0.0
    %1102 = vmatpush1.msra.mxu0 0.0
    %1103 = vmatprep.subr.mxu0 0.0
    %1104 = vmatpush1.msra.mxu0 0.0
    %1105 = vmatprep.subr.mxu0 0.0
    %1106 = vmatpush1.msra.mxu0 0.0
    %1107 = vmatprep.subr.mxu0 0.0
    %1108 = vmatpush1.msra.mxu0 0.0
    %1109 = vmatprep.subr.mxu0 0.0
    %1110 = vmatpush1.msra.mxu0 0.0
    %1111 = vmatprep.subr.mxu0 0.0
    %1112 = vmatpush1.msra.mxu0 0.0
    %1113 = vmatprep.subr.mxu0 0.0
    %1114 = vmatpush1.msra.mxu0 0.0
    %1115 = vmatprep.subr.mxu0 0.0
    %1116 = vmatpush1.msra.mxu0 0.0
    %1117 = vmatprep.subr.mxu0 0.0
    %1118 = vmatpush1.msra.mxu0 0.0
    %1119 = vmatprep.subr.mxu0 0.0
    %1120 = vmatpush1.msra.mxu0 0.0
    %1121 = vmatprep.subr.mxu0 0.0
    %1122 = vmatpush1.msra.mxu0 0.0
    %1123 = vmatprep.subr.mxu0 0.0
    %1124 = vmatpush1.msra.mxu0 0.0
    %1125 = vmatprep.subr.mxu0 0.0
    %1126 = vmatpush1.msra.mxu0 0.0
    %1127 = vmatprep.subr.mxu0 0.0
    %1128 = vmatpush1.msra.mxu0 0.0
    %1129 = vmatprep.mubr.f32.mxu0 0.0
    %1130 = vmatmul.mubr.f32.gmra.mrb[0].mxu0 %v1061
    %v1131 = vpop.f32.mrb[0].mxu0
    %v1132 = vadd.f32 0.0, %v1131
    %v1133 = vpop.f32.mrb[0].mxu0
    %1134 = vdwg.mxu0
    %v1136 = vsel %vm482, %v1132, 0
    %1138 = vmatprep.subr.mxu0 0.0
    %1139 = vmatpush1.msra.mxu0 %v476
    %1140 = vmatprep.subr.mxu0 0.0
    %1141 = vmatpush1.msra.mxu0 0.0
    %1142 = vmatprep.subr.mxu0 0.0
    %1143 = vmatpush1.msra.mxu0 0.0
    %1144 = vmatprep.subr.mxu0 0.0
    %1145 = vmatpush1.msra.mxu0 0.0
    %1146 = vmatprep.subr.mxu0 0.0
    %1147 = vmatpush1.msra.mxu0 0.0
    %1148 = vmatprep.subr.mxu0 0.0
    %1149 = vmatpush1.msra.mxu0 0.0
    %1150 = vmatprep.subr.mxu0 0.0
    %1151 = vmatpush1.msra.mxu0 0.0
    %1152 = vmatprep.subr.mxu0 0.0
    %1153 = vmatpush1.msra.mxu0 0.0
    %1154 = vmatprep.subr.mxu0 0.0
    %1155 = vmatpush1.msra.mxu0 0.0
    %1156 = vmatprep.subr.mxu0 0.0
    %1157 = vmatpush1.msra.mxu0 0.0
    %1158 = vmatprep.subr.mxu0 0.0
    %1159 = vmatpush1.msra.mxu0 0.0
    %1160 = vmatprep.subr.mxu0 0.0
    %1161 = vmatpush1.msra.mxu0 0.0
    %1162 = vmatprep.subr.mxu0 0.0
    %1163 = vmatpush1.msra.mxu0 0.0
    %1164 = vmatprep.subr.mxu0 0.0
    %1165 = vmatpush1.msra.mxu0 0.0
    %1166 = vmatprep.subr.mxu0 0.0
    %1167 = vmatpush1.msra.mxu0 0.0
    %1168 = vmatprep.subr.mxu0 0.0
    %1169 = vmatpush1.msra.mxu0 0.0
    %1170 = vmatprep.subr.mxu0 0.0
    %1171 = vmatpush1.msra.mxu0 0.0
    %1172 = vmatprep.subr.mxu0 0.0
    %1173 = vmatpush1.msra.mxu0 0.0
    %1174 = vmatprep.subr.mxu0 0.0
    %1175 = vmatpush1.msra.mxu0 0.0
    %1176 = vmatprep.subr.mxu0 0.0
    %1177 = vmatpush1.msra.mxu0 0.0
    %1178 = vmatprep.subr.mxu0 0.0
    %1179 = vmatpush1.msra.mxu0 0.0
    %1180 = vmatprep.subr.mxu0 0.0
    %1181 = vmatpush1.msra.mxu0 0.0
    %1182 = vmatprep.subr.mxu0 0.0
    %1183 = vmatpush1.msra.mxu0 0.0
    %1184 = vmatprep.subr.mxu0 0.0
    %1185 = vmatpush1.msra.mxu0 0.0
    %1186 = vmatprep.subr.mxu0 0.0
    %1187 = vmatpush1.msra.mxu0 0.0
    %1188 = vmatprep.subr.mxu0 0.0
    %1189 = vmatpush1.msra.mxu0 0.0
    %1190 = vmatprep.subr.mxu0 0.0
    %1191 = vmatpush1.msra.mxu0 0.0
    %1192 = vmatprep.subr.mxu0 0.0
    %1193 = vmatpush1.msra.mxu0 0.0
    %1194 = vmatprep.subr.mxu0 0.0
    %1195 = vmatpush1.msra.mxu0 0.0
    %1196 = vmatprep.subr.mxu0 0.0
    %1197 = vmatpush1.msra.mxu0 0.0
    %1198 = vmatprep.subr.mxu0 0.0
    %1199 = vmatpush1.msra.mxu0 0.0
    %1200 = vmatprep.subr.mxu0 0.0
    %1201 = vmatpush1.msra.mxu0 0.0
    %1202 = vmatprep.mubr.f32.mxu0 0.0
    %1203 = vmatmul.mubr.f32.gmra.mrb[0].mxu0 %v1136
    %v1204 = vpop.f32.mrb[0].mxu0
    %v1205 = vadd.f32 0.0, %v1204
    %v1206 = vpop.f32.mrb[0].mxu0
    %1207 = vdwg.mxu0
    %v1208 = vadd.f32 %v967, %v1205
    %1209 = vrot.lane.b32.xlu0 %v471, 104
    %v1210 = vpop.permute.xlu0 %1209
    %1211 = vrot.lane.b32.xlu0 %v471, 72
    %v1212 = vpop.permute.xlu0 %1211
    %v1213 = vsel %vm482, %v1210, 0
    %v1215 = vsel %vm482, %v1212, 0
    %1217 = vmatprep.subr.mxu0 0.0
    %1218 = vmatpush1.xpose.msra.mxu0 %v1215
    %1219 = vmatprep.subr.mxu0 0.0
    %1220 = vmatpush1.xpose.msra.mxu0 0.0
    %1221 = vmatprep.subr.mxu0 0.0
    %1222 = vmatpush1.xpose.msra.mxu0 0.0
    %1223 = vmatprep.subr.mxu0 0.0
    %1224 = vmatpush1.xpose.msra.mxu0 0.0
    %1225 = vmatprep.subr.mxu0 0.0
    %1226 = vmatpush1.xpose.msra.mxu0 0.0
    %1227 = vmatprep.subr.mxu0 0.0
    %1228 = vmatpush1.xpose.msra.mxu0 0.0
    %1229 = vmatprep.subr.mxu0 0.0
    %1230 = vmatpush1.xpose.msra.mxu0 0.0
    %1231 = vmatprep.subr.mxu0 0.0
    %1232 = vmatpush1.xpose.msra.mxu0 0.0
    %1233 = vmatprep.subr.mxu0 0.0
    %1234 = vmatpush1.xpose.msra.mxu0 0.0
    %1235 = vmatprep.subr.mxu0 0.0
    %1236 = vmatpush1.xpose.msra.mxu0 0.0
    %1237 = vmatprep.subr.mxu0 0.0
    %1238 = vmatpush1.xpose.msra.mxu0 0.0
    %1239 = vmatprep.subr.mxu0 0.0
    %1240 = vmatpush1.xpose.msra.mxu0 0.0
    %1241 = vmatprep.subr.mxu0 0.0
    %1242 = vmatpush1.xpose.msra.mxu0 0.0
    %1243 = vmatprep.subr.mxu0 0.0
    %1244 = vmatpush1.xpose.msra.mxu0 0.0
    %1245 = vmatprep.subr.mxu0 0.0
    %1246 = vmatpush1.xpose.msra.mxu0 0.0
    %1247 = vmatprep.subr.mxu0 0.0
    %1248 = vmatpush1.xpose.msra.mxu0 0.0
    %1249 = vmatprep.subr.mxu0 0.0
    %1250 = vmatpush1.xpose.msra.mxu0 0.0
    %1251 = vmatprep.subr.mxu0 0.0
    %1252 = vmatpush1.xpose.msra.mxu0 0.0
    %1253 = vmatprep.subr.mxu0 0.0
    %1254 = vmatpush1.xpose.msra.mxu0 0.0
    %1255 = vmatprep.subr.mxu0 0.0
    %1256 = vmatpush1.xpose.msra.mxu0 0.0
    %1257 = vmatprep.subr.mxu0 0.0
    %1258 = vmatpush1.xpose.msra.mxu0 0.0
    %1259 = vmatprep.subr.mxu0 0.0
    %1260 = vmatpush1.xpose.msra.mxu0 0.0
    %1261 = vmatprep.subr.mxu0 0.0
    %1262 = vmatpush1.xpose.msra.mxu0 0.0
    %1263 = vmatprep.subr.mxu0 0.0
    %1264 = vmatpush1.xpose.msra.mxu0 0.0
    %1265 = vmatprep.subr.mxu0 0.0
    %1266 = vmatpush1.xpose.msra.mxu0 0.0
    %1267 = vmatprep.subr.mxu0 0.0
    %1268 = vmatpush1.xpose.msra.mxu0 0.0
    %1269 = vmatprep.subr.mxu0 0.0
    %1270 = vmatpush1.xpose.msra.mxu0 0.0
    %1271 = vmatprep.subr.mxu0 0.0
    %1272 = vmatpush1.xpose.msra.mxu0 0.0
    %1273 = vmatprep.subr.mxu0 0.0
    %1274 = vmatpush1.xpose.msra.mxu0 0.0
    %1275 = vmatprep.subr.mxu0 0.0
    %1276 = vmatpush1.xpose.msra.mxu0 0.0
    %1277 = vmatprep.subr.mxu0 0.0
    %1278 = vmatpush1.xpose.msra.mxu0 0.0
    %1279 = vmatprep.subr.mxu0 0.0
    %1280 = vmatpush1.xpose.msra.mxu0 0.0
    %1281 = vmatprep.mubr.f32.mxu0 0.0
    %1282 = vmatmul.mubr.f32.gmra.mrb[0].mxu0 %v1213
    %v1283 = vpop.f32.mrb[0].mxu0
    %v1284 = vadd.f32 0.0, %v1283
    %v1285 = vpop.f32.mrb[0].mxu0
    %1286 = vdwg.mxu0
    %v1287 = vmul.f32 %v1284, 0.35355338
    %v1288 = vsel %vm558, %v1287, -inf
    %1289 = vmax.xlane.f32.xlu0 %v1288
    %v1290 = vpop.xlane.xlu0 %1289
    %v1291 = vsub.f32 %v1287, %v1290
    %v1292 = vmul.f32 %v1291, 1.442695
    %v1293 = vpow.pop %v1292
    %v1294 = vsel %vm558, %v1293, 0.0
    %1295 = vadd.xlane.f32.xlu0 %v1294
    %v1296 = vpop.xlane.xlu0 %1295
    %v1297 = vrcp.pop %v1296
    %v1298 = vmul.f32 %v1293, %v1297
    %1299 = vrot.lane.b32.xlu0 %v471, 40
    %v1300 = vpop.permute.xlu0 %1299
    %v1302 = vsel %vm572, %v1298, 0
    %v1304 = vsel %vm576, %v1300, 0
    %1306 = vmatprep.subr.mxu0 0.0
    %1307 = vmatpush1.msra.mxu0 %v1304
    %1308 = vmatprep.subr.mxu0 0.0
    %1309 = vmatpush1.msra.mxu0 0.0
    %1310 = vmatprep.subr.mxu0 0.0
    %1311 = vmatpush1.msra.mxu0 0.0
    %1312 = vmatprep.subr.mxu0 0.0
    %1313 = vmatpush1.msra.mxu0 0.0
    %1314 = vmatprep.subr.mxu0 0.0
    %1315 = vmatpush1.msra.mxu0 0.0
    %1316 = vmatprep.subr.mxu0 0.0
    %1317 = vmatpush1.msra.mxu0 0.0
    %1318 = vmatprep.subr.mxu0 0.0
    %1319 = vmatpush1.msra.mxu0 0.0
    %1320 = vmatprep.subr.mxu0 0.0
    %1321 = vmatpush1.msra.mxu0 0.0
    %1322 = vmatprep.subr.mxu0 0.0
    %1323 = vmatpush1.msra.mxu0 0.0
    %1324 = vmatprep.subr.mxu0 0.0
    %1325 = vmatpush1.msra.mxu0 0.0
    %1326 = vmatprep.subr.mxu0 0.0
    %1327 = vmatpush1.msra.mxu0 0.0
    %1328 = vmatprep.subr.mxu0 0.0
    %1329 = vmatpush1.msra.mxu0 0.0
    %1330 = vmatprep.subr.mxu0 0.0
    %1331 = vmatpush1.msra.mxu0 0.0
    %1332 = vmatprep.subr.mxu0 0.0
    %1333 = vmatpush1.msra.mxu0 0.0
    %1334 = vmatprep.subr.mxu0 0.0
    %1335 = vmatpush1.msra.mxu0 0.0
    %1336 = vmatprep.subr.mxu0 0.0
    %1337 = vmatpush1.msra.mxu0 0.0
    %1338 = vmatprep.subr.mxu0 0.0
    %1339 = vmatpush1.msra.mxu0 0.0
    %1340 = vmatprep.subr.mxu0 0.0
    %1341 = vmatpush1.msra.mxu0 0.0
    %1342 = vmatprep.subr.mxu0 0.0
    %1343 = vmatpush1.msra.mxu0 0.0
    %1344 = vmatprep.subr.mxu0 0.0
    %1345 = vmatpush1.msra.mxu0 0.0
    %1346 = vmatprep.subr.mxu0 0.0
    %1347 = vmatpush1.msra.mxu0 0.0
    %1348 = vmatprep.subr.mxu0 0.0
    %1349 = vmatpush1.msra.mxu0 0.0
    %1350 = vmatprep.subr.mxu0 0.0
    %1351 = vmatpush1.msra.mxu0 0.0
    %1352 = vmatprep.subr.mxu0 0.0
    %1353 = vmatpush1.msra.mxu0 0.0
    %1354 = vmatprep.subr.mxu0 0.0
    %1355 = vmatpush1.msra.mxu0 0.0
    %1356 = vmatprep.subr.mxu0 0.0
    %1357 = vmatpush1.msra.mxu0 0.0
    %1358 = vmatprep.subr.mxu0 0.0
    %1359 = vmatpush1.msra.mxu0 0.0
    %1360 = vmatprep.subr.mxu0 0.0
    %1361 = vmatpush1.msra.mxu0 0.0
    %1362 = vmatprep.subr.mxu0 0.0
    %1363 = vmatpush1.msra.mxu0 0.0
    %1364 = vmatprep.subr.mxu0 0.0
    %1365 = vmatpush1.msra.mxu0 0.0
    %1366 = vmatprep.subr.mxu0 0.0
    %1367 = vmatpush1.msra.mxu0 0.0
    %1368 = vmatprep.subr.mxu0 0.0
    %1369 = vmatpush1.msra.mxu0 0.0
    %1370 = vmatprep.mubr.f32.mxu0 0.0
    %1371 = vmatmul.mubr.f32.gmra.mrb[0].mxu0 %v1302
    %v1372 = vpop.f32.mrb[0].mxu0
    %v1373 = vadd.f32 0.0, %v1372
    %v1374 = vpop.f32.mrb[0].mxu0
    %1375 = vdwg.mxu0
    %v1377 = vsel %vm482, %v1373, 0
    %1379 = vmatprep.subr.mxu0 0.0
    %1380 = vmatpush1.msra.mxu0 %v477
    %1381 = vmatprep.subr.mxu0 0.0
    %1382 = vmatpush1.msra.mxu0 0.0
    %1383 = vmatprep.subr.mxu0 0.0
    %1384 = vmatpush1.msra.mxu0 0.0
    %1385 = vmatprep.subr.mxu0 0.0
    %1386 = vmatpush1.msra.mxu0 0.0
    %1387 = vmatprep.subr.mxu0 0.0
    %1388 = vmatpush1.msra.mxu0 0.0
    %1389 = vmatprep.subr.mxu0 0.0
    %1390 = vmatpush1.msra.mxu0 0.0
    %1391 = vmatprep.subr.mxu0 0.0
    %1392 = vmatpush1.msra.mxu0 0.0
    %1393 = vmatprep.subr.mxu0 0.0
    %1394 = vmatpush1.msra.mxu0 0.0
    %1395 = vmatprep.subr.mxu0 0.0
    %1396 = vmatpush1.msra.mxu0 0.0
    %1397 = vmatprep.subr.mxu0 0.0
    %1398 = vmatpush1.msra.mxu0 0.0
    %1399 = vmatprep.subr.mxu0 0.0
    %1400 = vmatpush1.msra.mxu0 0.0
    %1401 = vmatprep.subr.mxu0 0.0
    %1402 = vmatpush1.msra.mxu0 0.0
    %1403 = vmatprep.subr.mxu0 0.0
    %1404 = vmatpush1.msra.mxu0 0.0
    %1405 = vmatprep.subr.mxu0 0.0
    %1406 = vmatpush1.msra.mxu0 0.0
    %1407 = vmatprep.subr.mxu0 0.0
    %1408 = vmatpush1.msra.mxu0 0.0
    %1409 = vmatprep.subr.mxu0 0.0
    %1410 = vmatpush1.msra.mxu0 0.0
    %1411 = vmatprep.subr.mxu0 0.0
    %1412 = vmatpush1.msra.mxu0 0.0
    %1413 = vmatprep.subr.mxu0 0.0
    %1414 = vmatpush1.msra.mxu0 0.0
    %1415 = vmatprep.subr.mxu0 0.0
    %1416 = vmatpush1.msra.mxu0 0.0
    %1417 = vmatprep.subr.mxu0 0.0
    %1418 = vmatpush1.msra.mxu0 0.0
    %1419 = vmatprep.subr.mxu0 0.0
    %1420 = vmatpush1.msra.mxu0 0.0
    %1421 = vmatprep.subr.mxu0 0.0
    %1422 = vmatpush1.msra.mxu0 0.0
    %1423 = vmatprep.subr.mxu0 0.0
    %1424 = vmatpush1.msra.mxu0 0.0
    %1425 = vmatprep.subr.mxu0 0.0
    %1426 = vmatpush1.msra.mxu0 0.0
    %1427 = vmatprep.subr.mxu0 0.0
    %1428 = vmatpush1.msra.mxu0 0.0
    %1429 = vmatprep.subr.mxu0 0.0
    %1430 = vmatpush1.msra.mxu0 0.0
    %1431 = vmatprep.subr.mxu0 0.0
    %1432 = vmatpush1.msra.mxu0 0.0
    %1433 = vmatprep.subr.mxu0 0.0
    %1434 = vmatpush1.msra.mxu0 0.0
    %1435 = vmatprep.subr.mxu0 0.0
    %1436 = vmatpush1.msra.mxu0 0.0
    %1437 = vmatprep.subr.mxu0 0.0
    %1438 = vmatpush1.msra.mxu0 0.0
    %1439 = vmatprep.subr.mxu0 0.0
    %1440 = vmatpush1.msra.mxu0 0.0
    %1441 = vmatprep.subr.mxu0 0.0
    %1442 = vmatpush1.msra.mxu0 0.0
    %1443 = vmatprep.mubr.f32.mxu0 0.0
    %1444 = vmatmul.mubr.f32.gmra.mrb[0].mxu0 %v1377
    %v1445 = vpop.f32.mrb[0].mxu0
    %v1446 = vadd.f32 0.0, %v1445
    %v1447 = vpop.f32.mrb[0].mxu0
    %1448 = vdwg.mxu0
    %v1449 = vadd.f32 %v1208, %v1446
    %v1450 = vld [vmem:[#allocation2 + $0x120] sm:$0xff]
    %v1451 = vld [vmem:[#allocation2 + $0x128] sm:$0xff]
    %v1452 = vld [vmem:[#allocation2 + $0x130] sm:$0xff]
    %v1453 = vld [vmem:[#allocation2 + $0x138] sm:$0xff]
    %v1455 = vsel %vm45, %v1449, 0
    %1457 = vmatprep.subr.mxu0 0.0
    %1458 = vmatpush1.msra.mxu0 %v1450
    %1459 = vmatprep.subr.mxu0 0.0
    %1460 = vmatpush1.msra.mxu0 %v1451
    %1461 = vmatprep.subr.mxu0 0.0
    %1462 = vmatpush1.msra.mxu0 %v1452
    %1463 = vmatprep.subr.mxu0 0.0
    %1464 = vmatpush1.msra.mxu0 %v1453
    %1465 = vmatprep.subr.mxu0 0.0
    %1466 = vmatpush1.msra.mxu0 0.0
    %1467 = vmatprep.subr.mxu0 0.0
    %1468 = vmatpush1.msra.mxu0 0.0
    %1469 = vmatprep.subr.mxu0 0.0
    %1470 = vmatpush1.msra.mxu0 0.0
    %1471 = vmatprep.subr.mxu0 0.0
    %1472 = vmatpush1.msra.mxu0 0.0
    %1473 = vmatprep.subr.mxu0 0.0
    %1474 = vmatpush1.msra.mxu0 0.0
    %1475 = vmatprep.subr.mxu0 0.0
    %1476 = vmatpush1.msra.mxu0 0.0
    %1477 = vmatprep.subr.mxu0 0.0
    %1478 = vmatpush1.msra.mxu0 0.0
    %1479 = vmatprep.subr.mxu0 0.0
    %1480 = vmatpush1.msra.mxu0 0.0
    %1481 = vmatprep.subr.mxu0 0.0
    %1482 = vmatpush1.msra.mxu0 0.0
    %1483 = vmatprep.subr.mxu0 0.0
    %1484 = vmatpush1.msra.mxu0 0.0
    %1485 = vmatprep.subr.mxu0 0.0
    %1486 = vmatpush1.msra.mxu0 0.0
    %1487 = vmatprep.subr.mxu0 0.0
    %1488 = vmatpush1.msra.mxu0 0.0
    %1489 = vmatprep.subr.mxu0 0.0
    %1490 = vmatpush1.msra.mxu0 0.0
    %1491 = vmatprep.subr.mxu0 0.0
    %1492 = vmatpush1.msra.mxu0 0.0
    %1493 = vmatprep.subr.mxu0 0.0
    %1494 = vmatpush1.msra.mxu0 0.0
    %1495 = vmatprep.subr.mxu0 0.0
    %1496 = vmatpush1.msra.mxu0 0.0
    %1497 = vmatprep.subr.mxu0 0.0
    %1498 = vmatpush1.msra.mxu0 0.0
    %1499 = vmatprep.subr.mxu0 0.0
    %1500 = vmatpush1.msra.mxu0 0.0
    %1501 = vmatprep.subr.mxu0 0.0
    %1502 = vmatpush1.msra.mxu0 0.0
    %1503 = vmatprep.subr.mxu0 0.0
    %1504 = vmatpush1.msra.mxu0 0.0
    %1505 = vmatprep.subr.mxu0 0.0
    %1506 = vmatpush1.msra.mxu0 0.0
    %1507 = vmatprep.subr.mxu0 0.0
    %1508 = vmatpush1.msra.mxu0 0.0
    %1509 = vmatprep.subr.mxu0 0.0
    %1510 = vmatpush1.msra.mxu0 0.0
    %1511 = vmatprep.subr.mxu0 0.0
    %1512 = vmatpush1.msra.mxu0 0.0
    %1513 = vmatprep.subr.mxu0 0.0
    %1514 = vmatpush1.msra.mxu0 0.0
    %1515 = vmatprep.subr.mxu0 0.0
    %1516 = vmatpush1.msra.mxu0 0.0
    %1517 = vmatprep.subr.mxu0 0.0
    %1518 = vmatpush1.msra.mxu0 0.0
    %1519 = vmatprep.subr.mxu0 0.0
    %1520 = vmatpush1.msra.mxu0 0.0
    %1521 = vmatprep.mubr.f32.mxu0 0.0
    %1522 = vmatmul.mubr.f32.gmra.mrb[0].mxu0 %v1455
    %v1523 = vpop.f32.mrb[0].mxu0
    %v1524 = vadd.f32 0.0, %v1523
    %v1525 = vpop.f32.mrb[0].mxu0
    %1526 = vdwg.mxu0
    %v1527 = vadd.f32 %v390, %v1524
    %v1528 = vld [vmem:[#allocation2 + $0xc0] sm:$0xff]
    %v1529 = vld [vmem:[#allocation2 + $0xc8] sm:$0xff]
    %v1530 = vld [vmem:[#allocation2 + $0xd0] sm:$0xff]
    %v1531 = vld [vmem:[#allocation2 + $0xd8] sm:$0xff]
    %v1532 = vld [vmem:[%s2 + $0x6] sm:$0x1]
    %v1533 = vlaneseq
    %v1534 = vshrl.u32 %v1533, 7
    %v1535 = vsub.s32 0, %v1534
    %v1536 = vrot.slane %v1532, %v1535
    %1537 = vrot.lane.b32.xlu0 %v29, 64
    %v1538 = vpop.permute.xlu0 %1537
    %v1539 = vsel %vm45, %v1538, 0
    %1541 = vmatprep.subr.mxu0 0.0
    %1542 = vmatpush1.msra.mxu0 %v1528
    %1543 = vmatprep.subr.mxu0 0.0
    %1544 = vmatpush1.msra.mxu0 %v1529
    %1545 = vmatprep.subr.mxu0 0.0
    %1546 = vmatpush1.msra.mxu0 %v1530
    %1547 = vmatprep.subr.mxu0 0.0
    %1548 = vmatpush1.msra.mxu0 %v1531
    %1549 = vmatprep.subr.mxu0 0.0
    %1550 = vmatpush1.msra.mxu0 0.0
    %1551 = vmatprep.subr.mxu0 0.0
    %1552 = vmatpush1.msra.mxu0 0.0
    %1553 = vmatprep.subr.mxu0 0.0
    %1554 = vmatpush1.msra.mxu0 0.0
    %1555 = vmatprep.subr.mxu0 0.0
    %1556 = vmatpush1.msra.mxu0 0.0
    %1557 = vmatprep.subr.mxu0 0.0
    %1558 = vmatpush1.msra.mxu0 0.0
    %1559 = vmatprep.subr.mxu0 0.0
    %1560 = vmatpush1.msra.mxu0 0.0
    %1561 = vmatprep.subr.mxu0 0.0
    %1562 = vmatpush1.msra.mxu0 0.0
    %1563 = vmatprep.subr.mxu0 0.0
    %1564 = vmatpush1.msra.mxu0 0.0
    %1565 = vmatprep.subr.mxu0 0.0
    %1566 = vmatpush1.msra.mxu0 0.0
    %1567 = vmatprep.subr.mxu0 0.0
    %1568 = vmatpush1.msra.mxu0 0.0
    %1569 = vmatprep.subr.mxu0 0.0
    %1570 = vmatpush1.msra.mxu0 0.0
    %1571 = vmatprep.subr.mxu0 0.0
    %1572 = vmatpush1.msra.mxu0 0.0
    %1573 = vmatprep.subr.mxu0 0.0
    %1574 = vmatpush1.msra.mxu0 0.0
    %1575 = vmatprep.subr.mxu0 0.0
    %1576 = vmatpush1.msra.mxu0 0.0
    %1577 = vmatprep.subr.mxu0 0.0
    %1578 = vmatpush1.msra.mxu0 0.0
    %1579 = vmatprep.subr.mxu0 0.0
    %1580 = vmatpush1.msra.mxu0 0.0
    %1581 = vmatprep.subr.mxu0 0.0
    %1582 = vmatpush1.msra.mxu0 0.0
    %1583 = vmatprep.subr.mxu0 0.0
    %1584 = vmatpush1.msra.mxu0 0.0
    %1585 = vmatprep.subr.mxu0 0.0
    %1586 = vmatpush1.msra.mxu0 0.0
    %1587 = vmatprep.subr.mxu0 0.0
    %1588 = vmatpush1.msra.mxu0 0.0
    %1589 = vmatprep.subr.mxu0 0.0
    %1590 = vmatpush1.msra.mxu0 0.0
    %1591 = vmatprep.subr.mxu0 0.0
    %1592 = vmatpush1.msra.mxu0 0.0
    %1593 = vmatprep.subr.mxu0 0.0
    %1594 = vmatpush1.msra.mxu0 0.0
    %1595 = vmatprep.subr.mxu0 0.0
    %1596 = vmatpush1.msra.mxu0 0.0
    %1597 = vmatprep.subr.mxu0 0.0
    %1598 = vmatpush1.msra.mxu0 0.0
    %1599 = vmatprep.subr.mxu0 0.0
    %1600 = vmatpush1.msra.mxu0 0.0
    %1601 = vmatprep.subr.mxu0 0.0
    %1602 = vmatpush1.msra.mxu0 0.0
    %1603 = vmatprep.subr.mxu0 0.0
    %1604 = vmatpush1.msra.mxu0 0.0
    %1605 = vmatprep.mubr.f32.mxu0 0.0
    %1606 = vmatmul.mubr.f32.gmra.mrb[0].mxu0 %v1539
    %v1607 = vpop.f32.mrb[0].mxu0
    %v1608 = vadd.f32 %v1536, %v1607
    %v1609 = vpop.f32.mrb[0].mxu0
    %1610 = vdwg.mxu0
    %v1611 = vmax.f32 %v1608, 0.0
    %v1612 = vld [vmem:[#allocation2 + $0xe0] sm:$0xff]
    %v1613 = vld [vmem:[#allocation2 + $0xe8] sm:$0xff]
    %v1614 = vld [vmem:[#allocation2 + $0xf0] sm:$0xff]
    %v1615 = vld [vmem:[#allocation2 + $0xf8] sm:$0xff]
    %v1616 = vld [vmem:[%s2 + $0x7] sm:$0x1]
    %v1617 = vlaneseq
    %v1618 = vshrl.u32 %v1617, 7
    %v1619 = vsub.s32 0, %v1618
    %v1620 = vrot.slane %v1616, %v1619
    %v1622 = vsel %vm45, %v1611, 0
    %1624 = vmatprep.subr.mxu0 0.0
    %1625 = vmatpush1.msra.mxu0 %v1612
    %1626 = vmatprep.subr.mxu0 0.0
    %1627 = vmatpush1.msra.mxu0 %v1613
    %1628 = vmatprep.subr.mxu0 0.0
    %1629 = vmatpush1.msra.mxu0 %v1614
    %1630 = vmatprep.subr.mxu0 0.0
    %1631 = vmatpush1.msra.mxu0 %v1615
    %1632 = vmatprep.subr.mxu0 0.0
    %1633 = vmatpush1.msra.mxu0 0.0
    %1634 = vmatprep.subr.mxu0 0.0
    %1635 = vmatpush1.msra.mxu0 0.0
    %1636 = vmatprep.subr.mxu0 0.0
    %1637 = vmatpush1.msra.mxu0 0.0
    %1638 = vmatprep.subr.mxu0 0.0
    %1639 = vmatpush1.msra.mxu0 0.0
    %1640 = vmatprep.subr.mxu0 0.0
    %1641 = vmatpush1.msra.mxu0 0.0
    %1642 = vmatprep.subr.mxu0 0.0
    %1643 = vmatpush1.msra.mxu0 0.0
    %1644 = vmatprep.subr.mxu0 0.0
    %1645 = vmatpush1.msra.mxu0 0.0
    %1646 = vmatprep.subr.mxu0 0.0
    %1647 = vmatpush1.msra.mxu0 0.0
    %1648 = vmatprep.subr.mxu0 0.0
    %1649 = vmatpush1.msra.mxu0 0.0
    %1650 = vmatprep.subr.mxu0 0.0
    %1651 = vmatpush1.msra.mxu0 0.0
    %1652 = vmatprep.subr.mxu0 0.0
    %1653 = vmatpush1.msra.mxu0 0.0
    %1654 = vmatprep.subr.mxu0 0.0
    %1655 = vmatpush1.msra.mxu0 0.0
    %1656 = vmatprep.subr.mxu0 0.0
    %1657 = vmatpush1.msra.mxu0 0.0
    %1658 = vmatprep.subr.mxu0 0.0
    %1659 = vmatpush1.msra.mxu0 0.0
    %1660 = vmatprep.subr.mxu0 0.0
    %1661 = vmatpush1.msra.mxu0 0.0
    %1662 = vmatprep.subr.mxu0 0.0
    %1663 = vmatpush1.msra.mxu0 0.0
    %1664 = vmatprep.subr.mxu0 0.0
    %1665 = vmatpush1.msra.mxu0 0.0
    %1666 = vmatprep.subr.mxu0 0.0
    %1667 = vmatpush1.msra.mxu0 0.0
    %1668 = vmatprep.subr.mxu0 0.0
    %1669 = vmatpush1.msra.mxu0 0.0
    %1670 = vmatprep.subr.mxu0 0.0
    %1671 = vmatpush1.msra.mxu0 0.0
    %1672 = vmatprep.subr.mxu0 0.0
    %1673 = vmatpush1.msra.mxu0 0.0
    %1674 = vmatprep.subr.mxu0 0.0
    %1675 = vmatpush1.msra.mxu0 0.0
    %1676 = vmatprep.subr.mxu0 0.0
    %1677 = vmatpush1.msra.mxu0 0.0
    %1678 = vmatprep.subr.mxu0 0.0
    %1679 = vmatpush1.msra.mxu0 0.0
    %1680 = vmatprep.subr.mxu0 0.0
    %1681 = vmatpush1.msra.mxu0 0.0
    %1682 = vmatprep.subr.mxu0 0.0
    %1683 = vmatpush1.msra.mxu0 0.0
    %1684 = vmatprep.subr.mxu0 0.0
    %1685 = vmatpush1.msra.mxu0 0.0
    %1686 = vmatprep.subr.mxu0 0.0
    %1687 = vmatpush1.msra.mxu0 0.0
    %1688 = vmatprep.mubr.f32.mxu0 0.0
    %1689 = vmatmul.mubr.f32.gmra.mrb[0].mxu0 %v1622
    %v1690 = vpop.f32.mrb[0].mxu0
    %v1691 = vadd.f32 %v1620, %v1690
    %v1692 = vpop.f32.mrb[0].mxu0
    %1693 = vdwg.mxu0
    %v1694 = vld [vmem:[#allocation2 + $0x80] sm:$0xff]
    %v1695 = vld [vmem:[#allocation2 + $0x88] sm:$0xff]
    %v1696 = vld [vmem:[#allocation2 + $0x90] sm:$0xff]
    %v1697 = vld [vmem:[#allocation2 + $0x98] sm:$0xff]
    %v1698 = vld [vmem:[%s2 + $0x4] sm:$0x1]
    %v1699 = vlaneseq
    %v1700 = vshrl.u32 %v1699, 7
    %v1701 = vsub.s32 0, %v1700
    %v1702 = vrot.slane %v1698, %v1701
    %v1704 = vsel %vm45, %v1691, 0
    %1706 = vmatprep.subr.mxu0 0.0
    %1707 = vmatpush1.msra.mxu0 %v1694
    %1708 = vmatprep.subr.mxu0 0.0
    %1709 = vmatpush1.msra.mxu0 %v1695
    %1710 = vmatprep.subr.mxu0 0.0
    %1711 = vmatpush1.msra.mxu0 %v1696
    %1712 = vmatprep.subr.mxu0 0.0
    %1713 = vmatpush1.msra.mxu0 %v1697
    %1714 = vmatprep.subr.mxu0 0.0
    %1715 = vmatpush1.msra.mxu0 0.0
    %1716 = vmatprep.subr.mxu0 0.0
    %1717 = vmatpush1.msra.mxu0 0.0
    %1718 = vmatprep.subr.mxu0 0.0
    %1719 = vmatpush1.msra.mxu0 0.0
    %1720 = vmatprep.subr.mxu0 0.0
    %1721 = vmatpush1.msra.mxu0 0.0
    %1722 = vmatprep.subr.mxu0 0.0
    %1723 = vmatpush1.msra.mxu0 0.0
    %1724 = vmatprep.subr.mxu0 0.0
    %1725 = vmatpush1.msra.mxu0 0.0
    %1726 = vmatprep.subr.mxu0 0.0
    %1727 = vmatpush1.msra.mxu0 0.0
    %1728 = vmatprep.subr.mxu0 0.0
    %1729 = vmatpush1.msra.mxu0 0.0
    %1730 = vmatprep.subr.mxu0 0.0
    %1731 = vmatpush1.msra.mxu0 0.0
    %1732 = vmatprep.subr.mxu0 0.0
    %1733 = vmatpush1.msra.mxu0 0.0
    %1734 = vmatprep.subr.mxu0 0.0
    %1735 = vmatpush1.msra.mxu0 0.0
    %1736 = vmatprep.subr.mxu0 0.0
    %1737 = vmatpush1.msra.mxu0 0.0
    %1738 = vmatprep.subr.mxu0 0.0
    %1739 = vmatpush1.msra.mxu0 0.0
    %1740 = vmatprep.subr.mxu0 0.0
    %1741 = vmatpush1.msra.mxu0 0.0
    %1742 = vmatprep.subr.mxu0 0.0
    %1743 = vmatpush1.msra.mxu0 0.0
    %1744 = vmatprep.subr.mxu0 0.0
    %1745 = vmatpush1.msra.mxu0 0.0
    %1746 = vmatprep.subr.mxu0 0.0
    %1747 = vmatpush1.msra.mxu0 0.0
    %1748 = vmatprep.subr.mxu0 0.0
    %1749 = vmatpush1.msra.mxu0 0.0
    %1750 = vmatprep.subr.mxu0 0.0
    %1751 = vmatpush1.msra.mxu0 0.0
    %1752 = vmatprep.subr.mxu0 0.0
    %1753 = vmatpush1.msra.mxu0 0.0
    %1754 = vmatprep.subr.mxu0 0.0
    %1755 = vmatpush1.msra.mxu0 0.0
    %1756 = vmatprep.subr.mxu0 0.0
    %1757 = vmatpush1.msra.mxu0 0.0
    %1758 = vmatprep.subr.mxu0 0.0
    %1759 = vmatpush1.msra.mxu0 0.0
    %1760 = vmatprep.subr.mxu0 0.0
    %1761 = vmatpush1.msra.mxu0 0.0
    %1762 = vmatprep.subr.mxu0 0.0
    %1763 = vmatpush1.msra.mxu0 0.0
    %1764 = vmatprep.subr.mxu0 0.0
    %1765 = vmatpush1.msra.mxu0 0.0
    %1766 = vmatprep.subr.mxu0 0.0
    %1767 = vmatpush1.msra.mxu0 0.0
    %1768 = vmatprep.subr.mxu0 0.0
    %1769 = vmatpush1.msra.mxu0 0.0
    %1770 = vmatprep.mubr.f32.mxu0 0.0
    %1771 = vmatmul.mubr.f32.gmra.mrb[0].mxu0 %v1704
    %v1772 = vpop.f32.mrb[0].mxu0
    %v1773 = vadd.f32 %v1702, %v1772
    %v1774 = vpop.f32.mrb[0].mxu0
    %1775 = vdwg.mxu0
    %v1776 = vld [vmem:[#allocation2 + $0xa0] sm:$0xff]
    %v1777 = vld [vmem:[#allocation2 + $0xa8] sm:$0xff]
    %v1778 = vld [vmem:[#allocation2 + $0xb0] sm:$0xff]
    %v1779 = vld [vmem:[#allocation2 + $0xb8] sm:$0xff]
    %v1780 = vld [vmem:[%s2 + $0x5] sm:$0x1]
    %1782 = vrot.lane.b32.xlu0 %v1773, 96
    %v1783 = vpop.permute.xlu0 %1782
    %v1784 = vsel %vm482, %v1773, 0
    %v1786 = vsel %vm482, %v1783, 0
    %1788 = vmatprep.subr.mxu0 0.0
    %1789 = vmatpush1.xpose.msra.mxu0 %v1786
    %1790 = vmatprep.subr.mxu0 0.0
    %1791 = vmatpush1.xpose.msra.mxu0 0.0
    %1792 = vmatprep.subr.mxu0 0.0
    %1793 = vmatpush1.xpose.msra.mxu0 0.0
    %1794 = vmatprep.subr.mxu0 0.0
    %1795 = vmatpush1.xpose.msra.mxu0 0.0
    %1796 = vmatprep.subr.mxu0 0.0
    %1797 = vmatpush1.xpose.msra.mxu0 0.0
    %1798 = vmatprep.subr.mxu0 0.0
    %1799 = vmatpush1.xpose.msra.mxu0 0.0
    %1800 = vmatprep.subr.mxu0 0.0
    %1801 = vmatpush1.xpose.msra.mxu0 0.0
    %1802 = vmatprep.subr.mxu0 0.0
    %1803 = vmatpush1.xpose.msra.mxu0 0.0
    %1804 = vmatprep.subr.mxu0 0.0
    %1805 = vmatpush1.xpose.msra.mxu0 0.0
    %1806 = vmatprep.subr.mxu0 0.0
    %1807 = vmatpush1.xpose.msra.mxu0 0.0
    %1808 = vmatprep.subr.mxu0 0.0
    %1809 = vmatpush1.xpose.msra.mxu0 0.0
    %1810 = vmatprep.subr.mxu0 0.0
    %1811 = vmatpush1.xpose.msra.mxu0 0.0
    %1812 = vmatprep.subr.mxu0 0.0
    %1813 = vmatpush1.xpose.msra.mxu0 0.0
    %1814 = vmatprep.subr.mxu0 0.0
    %1815 = vmatpush1.xpose.msra.mxu0 0.0
    %1816 = vmatprep.subr.mxu0 0.0
    %1817 = vmatpush1.xpose.msra.mxu0 0.0
    %1818 = vmatprep.subr.mxu0 0.0
    %1819 = vmatpush1.xpose.msra.mxu0 0.0
    %1820 = vmatprep.subr.mxu0 0.0
    %1821 = vmatpush1.xpose.msra.mxu0 0.0
    %1822 = vmatprep.subr.mxu0 0.0
    %1823 = vmatpush1.xpose.msra.mxu0 0.0
    %1824 = vmatprep.subr.mxu0 0.0
    %1825 = vmatpush1.xpose.msra.mxu0 0.0
    %1826 = vmatprep.subr.mxu0 0.0
    %1827 = vmatpush1.xpose.msra.mxu0 0.0
    %1828 = vmatprep.subr.mxu0 0.0
    %1829 = vmatpush1.xpose.msra.mxu0 0.0
    %1830 = vmatprep.subr.mxu0 0.0
    %1831 = vmatpush1.xpose.msra.mxu0 0.0
    %1832 = vmatprep.subr.mxu0 0.0
    %1833 = vmatpush1.xpose.msra.mxu0 0.0
    %1834 = vmatprep.subr.mxu0 0.0
    %1835 = vmatpush1.xpose.msra.mxu0 0.0
    %1836 = vmatprep.subr.mxu0 0.0
    %1837 = vmatpush1.xpose.msra.mxu0 0.0
    %1838 = vmatprep.subr.mxu0 0.0
    %1839 = vmatpush1.xpose.msra.mxu0 0.0
    %1840 = vmatprep.subr.mxu0 0.0
    %1841 = vmatpush1.xpose.msra.mxu0 0.0
    %1842 = vmatprep.subr.mxu0 0.0
    %1843 = vmatpush1.xpose.msra.mxu0 0.0
    %1844 = vmatprep.subr.mxu0 0.0
    %1845 = vmatpush1.xpose.msra.mxu0 0.0
    %1846 = vmatprep.subr.mxu0 0.0
    %1847 = vmatpush1.xpose.msra.mxu0 0.0
    %1848 = vmatprep.subr.mxu0 0.0
    %1849 = vmatpush1.xpose.msra.mxu0 0.0
    %1850 = vmatprep.subr.mxu0 0.0
    %1851 = vmatpush1.xpose.msra.mxu0 0.0
    %1852 = vmatprep.mubr.f32.mxu0 0.0
    %1853 = vmatmul.mubr.f32.gmra.mrb[0].mxu0 %v1784
    %v1854 = vpop.f32.mrb[0].mxu0
    %v1855 = vadd.f32 0.0, %v1854
    %v1856 = vpop.f32.mrb[0].mxu0
    %1857 = vdwg.mxu0
    %v1858 = vmul.f32 %v1855, 0.35355338
    %v1859 = vsel %vm558, %v1858, -inf
    %1860 = vmax.xlane.f32.xlu0 %v1859
    %v1861 = vpop.xlane.xlu0 %1860
    %v1862 = vsub.f32 %v1858, %v1861
    %v1863 = vmul.f32 %v1862, 1.442695
    %v1864 = vpow.pop %v1863
    %v1865 = vsel %vm558, %v1864, 0.0
    %1866 = vadd.xlane.f32.xlu0 %v1865
    %v1867 = vpop.xlane.xlu0 %1866
    %v1868 = vrcp.pop %v1867
    %v1869 = vmul.f32 %v1864, %v1868
    %1870 = vrot.lane.b32.xlu0 %v1773, 64
    %v1871 = vpop.permute.xlu0 %1870
    %v1873 = vsel %vm572, %v1869, 0
    %v1875 = vsel %vm576, %v1871, 0
    %1877 = vmatprep.subr.mxu0 0.0
    %1878 = vmatpush1.msra.mxu0 %v1875
    %1879 = vmatprep.subr.mxu0 0.0
    %1880 = vmatpush1.msra.mxu0 0.0
    %1881 = vmatprep.subr.mxu0 0.0
    %1882 = vmatpush1.msra.mxu0 0.0
    %1883 = vmatprep.subr.mxu0 0.0
    %1884 = vmatpush1.msra.mxu0 0.0
    %1885 = vmatprep.subr.mxu0 0.0
    %1886 = vmatpush1.msra.mxu0 0.0
    %1887 = vmatprep.subr.mxu0 0.0
    %1888 = vmatpush1.msra.mxu0 0.0
    %1889 = vmatprep.subr.mxu0 0.0
    %1890 = vmatpush1.msra.mxu0 0.0
    %1891 = vmatprep.subr.mxu0 0.0
    %1892 = vmatpush1.msra.mxu0 0.0
    %1893 = vmatprep.subr.mxu0 0.0
    %1894 = vmatpush1.msra.mxu0 0.0
    %1895 = vmatprep.subr.mxu0 0.0
    %1896 = vmatpush1.msra.mxu0 0.0
    %1897 = vmatprep.subr.mxu0 0.0
    %1898 = vmatpush1.msra.mxu0 0.0
    %1899 = vmatprep.subr.mxu0 0.0
    %1900 = vmatpush1.msra.mxu0 0.0
    %1901 = vmatprep.subr.mxu0 0.0
    %1902 = vmatpush1.msra.mxu0 0.0
    %1903 = vmatprep.subr.mxu0 0.0
    %1904 = vmatpush1.msra.mxu0 0.0
    %1905 = vmatprep.subr.mxu0 0.0
    %1906 = vmatpush1.msra.mxu0 0.0
    %1907 = vmatprep.subr.mxu0 0.0
    %1908 = vmatpush1.msra.mxu0 0.0
    %1909 = vmatprep.subr.mxu0 0.0
    %1910 = vmatpush1.msra.mxu0 0.0
    %1911 = vmatprep.subr.mxu0 0.0
    %1912 = vmatpush1.msra.mxu0 0.0
    %1913 = vmatprep.subr.mxu0 0.0
    %1914 = vmatpush1.msra.mxu0 0.0
    %1915 = vmatprep.subr.mxu0 0.0
    %1916 = vmatpush1.msra.mxu0 0.0
    %1917 = vmatprep.subr.mxu0 0.0
    %1918 = vmatpush1.msra.mxu0 0.0
    %1919 = vmatprep.subr.mxu0 0.0
    %1920 = vmatpush1.msra.mxu0 0.0
    %1921 = vmatprep.subr.mxu0 0.0
    %1922 = vmatpush1.msra.mxu0 0.0
    %1923 = vmatprep.subr.mxu0 0.0
    %1924 = vmatpush1.msra.mxu0 0.0
    %1925 = vmatprep.subr.mxu0 0.0
    %1926 = vmatpush1.msra.mxu0 0.0
    %1927 = vmatprep.subr.mxu0 0.0
    %1928 = vmatpush1.msra.mxu0 0.0
    %1929 = vmatprep.subr.mxu0 0.0
    %1930 = vmatpush1.msra.mxu0 0.0
    %1931 = vmatprep.subr.mxu0 0.0
    %1932 = vmatpush1.msra.mxu0 0.0
    %1933 = vmatprep.subr.mxu0 0.0
    %1934 = vmatpush1.msra.mxu0 0.0
    %1935 = vmatprep.subr.mxu0 0.0
    %1936 = vmatpush1.msra.mxu0 0.0
    %1937 = vmatprep.subr.mxu0 0.0
    %1938 = vmatpush1.msra.mxu0 0.0
    %1939 = vmatprep.subr.mxu0 0.0
    %1940 = vmatpush1.msra.mxu0 0.0
    %1941 = vmatprep.mubr.f32.mxu0 0.0
    %1942 = vmatmul.mubr.f32.gmra.mrb[0].mxu0 %v1873
    %v1943 = vpop.f32.mrb[0].mxu0
    %v1944 = vadd.f32 0.0, %v1943
    %v1945 = vpop.f32.mrb[0].mxu0
    %1946 = vdwg.mxu0
    %v1948 = vsel %vm482, %v1944, 0
    %1950 = vmatprep.subr.mxu0 0.0
    %1951 = vmatpush1.msra.mxu0 %v1776
    %1952 = vmatprep.subr.mxu0 0.0
    %1953 = vmatpush1.msra.mxu0 0.0
    %1954 = vmatprep.subr.mxu0 0.0
    %1955 = vmatpush1.msra.mxu0 0.0
    %1956 = vmatprep.subr.mxu0 0.0
    %1957 = vmatpush1.msra.mxu0 0.0
    %1958 = vmatprep.subr.mxu0 0.0
    %1959 = vmatpush1.msra.mxu0 0.0
    %1960 = vmatprep.subr.mxu0 0.0
    %1961 = vmatpush1.msra.mxu0 0.0
    %1962 = vmatprep.subr.mxu0 0.0
    %1963 = vmatpush1.msra.mxu0 0.0
    %1964 = vmatprep.subr.mxu0 0.0
    %1965 = vmatpush1.msra.mxu0 0.0
    %1966 = vmatprep.subr.mxu0 0.0
    %1967 = vmatpush1.msra.mxu0 0.0
    %1968 = vmatprep.subr.mxu0 0.0
    %1969 = vmatpush1.msra.mxu0 0.0
    %1970 = vmatprep.subr.mxu0 0.0
    %1971 = vmatpush1.msra.mxu0 0.0
    %1972 = vmatprep.subr.mxu0 0.0
    %1973 = vmatpush1.msra.mxu0 0.0
    %1974 = vmatprep.subr.mxu0 0.0
    %1975 = vmatpush1.msra.mxu0 0.0
    %1976 = vmatprep.subr.mxu0 0.0
    %1977 = vmatpush1.msra.mxu0 0.0
    %1978 = vmatprep.subr.mxu0 0.0
    %1979 = vmatpush1.msra.mxu0 0.0
    %1980 = vmatprep.subr.mxu0 0.0
    %1981 = vmatpush1.msra.mxu0 0.0
    %1982 = vmatprep.subr.mxu0 0.0
    %1983 = vmatpush1.msra.mxu0 0.0
    %1984 = vmatprep.subr.mxu0 0.0
    %1985 = vmatpush1.msra.mxu0 0.0
    %1986 = vmatprep.subr.mxu0 0.0
    %1987 = vmatpush1.msra.mxu0 0.0
    %1988 = vmatprep.subr.mxu0 0.0
    %1989 = vmatpush1.msra.mxu0 0.0
    %1990 = vmatprep.subr.mxu0 0.0
    %1991 = vmatpush1.msra.mxu0 0.0
    %1992 = vmatprep.subr.mxu0 0.0
    %1993 = vmatpush1.msra.mxu0 0.0
    %1994 = vmatprep.subr.mxu0 0.0
    %1995 = vmatpush1.msra.mxu0 0.0
    %1996 = vmatprep.subr.mxu0 0.0
    %1997 = vmatpush1.msra.mxu0 0.0
    %1998 = vmatprep.subr.mxu0 0.0
    %1999 = vmatpush1.msra.mxu0 0.0
    %2000 = vmatprep.subr.mxu0 0.0
    %2001 = vmatpush1.msra.mxu0 0.0
    %2002 = vmatprep.subr.mxu0 0.0
    %2003 = vmatpush1.msra.mxu0 0.0
    %2004 = vmatprep.subr.mxu0 0.0
    %2005 = vmatpush1.msra.mxu0 0.0
    %2006 = vmatprep.subr.mxu0 0.0
    %2007 = vmatpush1.msra.mxu0 0.0
    %2008 = vmatprep.subr.mxu0 0.0
    %2009 = vmatpush1.msra.mxu0 0.0
    %2010 = vmatprep.subr.mxu0 0.0
    %2011 = vmatpush1.msra.mxu0 0.0
    %2012 = vmatprep.subr.mxu0 0.0
    %2013 = vmatpush1.msra.mxu0 0.0
    %2014 = vmatprep.mubr.f32.mxu0 0.0
    %2015 = vmatmul.mubr.f32.gmra.mrb[0].mxu0 %v1948
    %v2016 = vpop.f32.mrb[0].mxu0
    %v2017 = vadd.f32 0.0, %v2016
    %v2018 = vpop.f32.mrb[0].mxu0
    %2019 = vdwg.mxu0
    %v2020 = vlaneseq
    %v2021 = vshrl.u32 %v2020, 7
    %v2022 = vsub.s32 0, %v2021
    %v2023 = vrot.slane %v1780, %v2022
    %v2024 = vadd.f32 %v2023, %v2017
    %2025 = vrot.lane.b32.xlu0 %v1773, 120
    %v2026 = vpop.permute.xlu0 %2025
    %2027 = vrot.lane.b32.xlu0 %v1773, 88
    %v2028 = vpop.permute.xlu0 %2027
    %v2029 = vsel %vm482, %v2026, 0
    %v2031 = vsel %vm482, %v2028, 0
    %2033 = vmatprep.subr.mxu0 0.0
    %2034 = vmatpush1.xpose.msra.mxu0 %v2031
    %2035 = vmatprep.subr.mxu0 0.0
    %2036 = vmatpush1.xpose.msra.mxu0 0.0
    %2037 = vmatprep.subr.mxu0 0.0
    %2038 = vmatpush1.xpose.msra.mxu0 0.0
    %2039 = vmatprep.subr.mxu0 0.0
    %2040 = vmatpush1.xpose.msra.mxu0 0.0
    %2041 = vmatprep.subr.mxu0 0.0
    %2042 = vmatpush1.xpose.msra.mxu0 0.0
    %2043 = vmatprep.subr.mxu0 0.0
    %2044 = vmatpush1.xpose.msra.mxu0 0.0
    %2045 = vmatprep.subr.mxu0 0.0
    %2046 = vmatpush1.xpose.msra.mxu0 0.0
    %2047 = vmatprep.subr.mxu0 0.0
    %2048 = vmatpush1.xpose.msra.mxu0 0.0
    %2049 = vmatprep.subr.mxu0 0.0
    %2050 = vmatpush1.xpose.msra.mxu0 0.0
    %2051 = vmatprep.subr.mxu0 0.0
    %2052 = vmatpush1.xpose.msra.mxu0 0.0
    %2053 = vmatprep.subr.mxu0 0.0
    %2054 = vmatpush1.xpose.msra.mxu0 0.0
    %2055 = vmatprep.subr.mxu0 0.0
    %2056 = vmatpush1.xpose.msra.mxu0 0.0
    %2057 = vmatprep.subr.mxu0 0.0
    %2058 = vmatpush1.xpose.msra.mxu0 0.0
    %2059 = vmatprep.subr.mxu0 0.0
    %2060 = vmatpush1.xpose.msra.mxu0 0.0
    %2061 = vmatprep.subr.mxu0 0.0
    %2062 = vmatpush1.xpose.msra.mxu0 0.0
    %2063 = vmatprep.subr.mxu0 0.0
    %2064 = vmatpush1.xpose.msra.mxu0 0.0
    %2065 = vmatprep.subr.mxu0 0.0
    %2066 = vmatpush1.xpose.msra.mxu0 0.0
    %2067 = vmatprep.subr.mxu0 0.0
    %2068 = vmatpush1.xpose.msra.mxu0 0.0
    %2069 = vmatprep.subr.mxu0 0.0
    %2070 = vmatpush1.xpose.msra.mxu0 0.0
    %2071 = vmatprep.subr.mxu0 0.0
    %2072 = vmatpush1.xpose.msra.mxu0 0.0
    %2073 = vmatprep.subr.mxu0 0.0
    %2074 = vmatpush1.xpose.msra.mxu0 0.0
    %2075 = vmatprep.subr.mxu0 0.0
    %2076 = vmatpush1.xpose.msra.mxu0 0.0
    %2077 = vmatprep.subr.mxu0 0.0
    %2078 = vmatpush1.xpose.msra.mxu0 0.0
    %2079 = vmatprep.subr.mxu0 0.0
    %2080 = vmatpush1.xpose.msra.mxu0 0.0
    %2081 = vmatprep.subr.mxu0 0.0
    %2082 = vmatpush1.xpose.msra.mxu0 0.0
    %2083 = vmatprep.subr.mxu0 0.0
    %2084 = vmatpush1.xpose.msra.mxu0 0.0
    %2085 = vmatprep.subr.mxu0 0.0
    %2086 = vmatpush1.xpose.msra.mxu0 0.0
    %2087 = vmatprep.subr.mxu0 0.0
    %2088 = vmatpush1.xpose.msra.mxu0 0.0
    %2089 = vmatprep.subr.mxu0 0.0
    %2090 = vmatpush1.xpose.msra.mxu0 0.0
    %2091 = vmatprep.subr.mxu0 0.0
    %2092 = vmatpush1.xpose.msra.mxu0 0.0
    %2093 = vmatprep.subr.mxu0 0.0
    %2094 = vmatpush1.xpose.msra.mxu0 0.0
    %2095 = vmatprep.subr.mxu0 0.0
    %2096 = vmatpush1.xpose.msra.mxu0 0.0
    %2097 = vmatprep.mubr.f32.mxu0 0.0
    %2098 = vmatmul.mubr.f32.gmra.mrb[0].mxu0 %v2029
    %v2099 = vpop.f32.mrb[0].mxu0
    %v2100 = vadd.f32 0.0, %v2099
    %v2101 = vpop.f32.mrb[0].mxu0
    %2102 = vdwg.mxu0
    %v2103 = vmul.f32 %v2100, 0.35355338
    %v2104 = vsel %vm558, %v2103, -inf
    %2105 = vmax.xlane.f32.xlu0 %v2104
    %v2106 = vpop.xlane.xlu0 %2105
    %v2107 = vsub.f32 %v2103, %v2106
    %v2108 = vmul.f32 %v2107, 1.442695
    %v2109 = vpow.pop %v2108
    %v2110 = vsel %vm558, %v2109, 0.0
    %2111 = vadd.xlane.f32.xlu0 %v2110
    %v2112 = vpop.xlane.xlu0 %2111
    %v2113 = vrcp.pop %v2112
    %v2114 = vmul.f32 %v2109, %v2113
    %2115 = vrot.lane.b32.xlu0 %v1773, 56
    %v2116 = vpop.permute.xlu0 %2115
    %v2118 = vsel %vm572, %v2114, 0
    %v2120 = vsel %vm576, %v2116, 0
    %2122 = vmatprep.subr.mxu0 0.0
    %2123 = vmatpush1.msra.mxu0 %v2120
    %2124 = vmatprep.subr.mxu0 0.0
    %2125 = vmatpush1.msra.mxu0 0.0
    %2126 = vmatprep.subr.mxu0 0.0
    %2127 = vmatpush1.msra.mxu0 0.0
    %2128 = vmatprep.subr.mxu0 0.0
    %2129 = vmatpush1.msra.mxu0 0.0
    %2130 = vmatprep.subr.mxu0 0.0
    %2131 = vmatpush1.msra.mxu0 0.0
    %2132 = vmatprep.subr.mxu0 0.0
    %2133 = vmatpush1.msra.mxu0 0.0
    %2134 = vmatprep.subr.mxu0 0.0
    %2135 = vmatpush1.msra.mxu0 0.0
    %2136 = vmatprep.subr.mxu0 0.0
    %2137 = vmatpush1.msra.mxu0 0.0
    %2138 = vmatprep.subr.mxu0 0.0
    %2139 = vmatpush1.msra.mxu0 0.0
    %2140 = vmatprep.subr.mxu0 0.0
    %2141 = vmatpush1.msra.mxu0 0.0
    %2142 = vmatprep.subr.mxu0 0.0
    %2143 = vmatpush1.msra.mxu0 0.0
    %2144 = vmatprep.subr.mxu0 0.0
    %2145 = vmatpush1.msra.mxu0 0.0
    %2146 = vmatprep.subr.mxu0 0.0
    %2147 = vmatpush1.msra.mxu0 0.0
    %2148 = vmatprep.subr.mxu0 0.0
    %2149 = vmatpush1.msra.mxu0 0.0
    %2150 = vmatprep.subr.mxu0 0.0
    %2151 = vmatpush1.msra.mxu0 0.0
    %2152 = vmatprep.subr.mxu0 0.0
    %2153 = vmatpush1.msra.mxu0 0.0
    %2154 = vmatprep.subr.mxu0 0.0
    %2155 = vmatpush1.msra.mxu0 0.0
    %2156 = vmatprep.subr.mxu0 0.0
    %2157 = vmatpush1.msra.mxu0 0.0
    %2158 = vmatprep.subr.mxu0 0.0
    %2159 = vmatpush1.msra.mxu0 0.0
    %2160 = vmatprep.subr.mxu0 0.0
    %2161 = vmatpush1.msra.mxu0 0.0
    %2162 = vmatprep.subr.mxu0 0.0
    %2163 = vmatpush1.msra.mxu0 0.0
    %2164 = vmatprep.subr.mxu0 0.0
    %2165 = vmatpush1.msra.mxu0 0.0
    %2166 = vmatprep.subr.mxu0 0.0
    %2167 = vmatpush1.msra.mxu0 0.0
    %2168 = vmatprep.subr.mxu0 0.0
    %2169 = vmatpush1.msra.mxu0 0.0
    %2170 = vmatprep.subr.mxu0 0.0
    %2171 = vmatpush1.msra.mxu0 0.0
    %2172 = vmatprep.subr.mxu0 0.0
    %2173 = vmatpush1.msra.mxu0 0.0
    %2174 = vmatprep.subr.mxu0 0.0
    %2175 = vmatpush1.msra.mxu0 0.0
    %2176 = vmatprep.subr.mxu0 0.0
    %2177 = vmatpush1.msra.mxu0 0.0
    %2178 = vmatprep.subr.mxu0 0.0
    %2179 = vmatpush1.msra.mxu0 0.0
    %2180 = vmatprep.subr.mxu0 0.0
    %2181 = vmatpush1.msra.mxu0 0.0
    %2182 = vmatprep.subr.mxu0 0.0
    %2183 = vmatpush1.msra.mxu0 0.0
    %2184 = vmatprep.subr.mxu0 0.0
    %2185 = vmatpush1.msra.mxu0 0.0
    %2186 = vmatprep.mubr.f32.mxu0 0.0
    %2187 = vmatmul.mubr.f32.gmra.mrb[0].mxu0 %v2118
    %v2188 = vpop.f32.mrb[0].mxu0
    %v2189 = vadd.f32 0.0, %v2188
    %v2190 = vpop.f32.mrb[0].mxu0
    %2191 = vdwg.mxu0
    %v2193 = vsel %vm482, %v2189, 0
    %2195 = vmatprep.subr.mxu0 0.0
    %2196 = vmatpush1.msra.mxu0 %v1777
    %2197 = vmatprep.subr.mxu0 0.0
    %2198 = vmatpush1.msra.mxu0 0.0
    %2199 = vmatprep.subr.mxu0 0.0
    %2200 = vmatpush1.msra.mxu0 0.0
    %2201 = vmatprep.subr.mxu0 0.0
    %2202 = vmatpush1.msra.mxu0 0.0
    %2203 = vmatprep.subr.mxu0 0.0
    %2204 = vmatpush1.msra.mxu0 0.0
    %2205 = vmatprep.subr.mxu0 0.0
    %2206 = vmatpush1.msra.mxu0 0.0
    %2207 = vmatprep.subr.mxu0 0.0
    %2208 = vmatpush1.msra.mxu0 0.0
    %2209 = vmatprep.subr.mxu0 0.0
    %2210 = vmatpush1.msra.mxu0 0.0
    %2211 = vmatprep.subr.mxu0 0.0
    %2212 = vmatpush1.msra.mxu0 0.0
    %2213 = vmatprep.subr.mxu0 0.0
    %2214 = vmatpush1.msra.mxu0 0.0
    %2215 = vmatprep.subr.mxu0 0.0
    %2216 = vmatpush1.msra.mxu0 0.0
    %2217 = vmatprep.subr.mxu0 0.0
    %2218 = vmatpush1.msra.mxu0 0.0
    %2219 = vmatprep.subr.mxu0 0.0
    %2220 = vmatpush1.msra.mxu0 0.0
    %2221 = vmatprep.subr.mxu0 0.0
    %2222 = vmatpush1.msra.mxu0 0.0
    %2223 = vmatprep.subr.mxu0 0.0
    %2224 = vmatpush1.msra.mxu0 0.0
    %2225 = vmatprep.subr.mxu0 0.0
    %2226 = vmatpush1.msra.mxu0 0.0
    %2227 = vmatprep.subr.mxu0 0.0
    %2228 = vmatpush1.msra.mxu0 0.0
    %2229 = vmatprep.subr.mxu0 0.0
    %2230 = vmatpush1.msra.mxu0 0.0
    %2231 = vmatprep.subr.mxu0 0.0
    %2232 = vmatpush1.msra.mxu0 0.0
    %2233 = vmatprep.subr.mxu0 0.0
    %2234 = vmatpush1.msra.mxu0 0.0
    %2235 = vmatprep.subr.mxu0 0.0
    %2236 = vmatpush1.msra.mxu0 0.0
    %2237 = vmatprep.subr.mxu0 0.0
    %2238 = vmatpush1.msra.mxu0 0.0
    %2239 = vmatprep.subr.mxu0 0.0
    %2240 = vmatpush1.msra.mxu0 0.0
    %2241 = vmatprep.subr.mxu0 0.0
    %2242 = vmatpush1.msra.mxu0 0.0
    %2243 = vmatprep.subr.mxu0 0.0
    %2244 = vmatpush1.msra.mxu0 0.0
    %2245 = vmatprep.subr.mxu0 0.0
    %2246 = vmatpush1.msra.mxu0 0.0
    %2247 = vmatprep.subr.mxu0 0.0
    %2248 = vmatpush1.msra.mxu0 0.0
    %2249 = vmatprep.subr.mxu0 0.0
    %2250 = vmatpush1.msra.mxu0 0.0
    %2251 = vmatprep.subr.mxu0 0.0
    %2252 = vmatpush1.msra.mxu0 0.0
    %2253 = vmatprep.subr.mxu0 0.0
    %2254 = vmatpush1.msra.mxu0 0.0
    %2255 = vmatprep.subr.mxu0 0.0
    %2256 = vmatpush1.msra.mxu0 0.0
    %2257 = vmatprep.subr.mxu0 0.0
    %2258 = vmatpush1.msra.mxu0 0.0
    %2259 = vmatprep.mubr.f32.mxu0 0.0
    %2260 = vmatmul.mubr.f32.gmra.mrb[0].mxu0 %v2193
    %v2261 = vpop.f32.mrb[0].mxu0
    %v2262 = vadd.f32 0.0, %v2261
    %v2263 = vpop.f32.mrb[0].mxu0
    %2264 = vdwg.mxu0
    %v2265 = vadd.f32 %v2024, %v2262
    %2266 = vrot.lane.b32.xlu0 %v1773, 112
    %v2267 = vpop.permute.xlu0 %2266
    %2268 = vrot.lane.b32.xlu0 %v1773, 80
    %v2269 = vpop.permute.xlu0 %2268
    %v2270 = vsel %vm482, %v2267, 0
    %v2272 = vsel %vm482, %v2269, 0
    %2274 = vmatprep.subr.mxu0 0.0
    %2275 = vmatpush1.xpose.msra.mxu0 %v2272
    %2276 = vmatprep.subr.mxu0 0.0
    %2277 = vmatpush1.xpose.msra.mxu0 0.0
    %2278 = vmatprep.subr.mxu0 0.0
    %2279 = vmatpush1.xpose.msra.mxu0 0.0
    %2280 = vmatprep.subr.mxu0 0.0
    %2281 = vmatpush1.xpose.msra.mxu0 0.0
    %2282 = vmatprep.subr.mxu0 0.0
    %2283 = vmatpush1.xpose.msra.mxu0 0.0
    %2284 = vmatprep.subr.mxu0 0.0
    %2285 = vmatpush1.xpose.msra.mxu0 0.0
    %2286 = vmatprep.subr.mxu0 0.0
    %2287 = vmatpush1.xpose.msra.mxu0 0.0
    %2288 = vmatprep.subr.mxu0 0.0
    %2289 = vmatpush1.xpose.msra.mxu0 0.0
    %2290 = vmatprep.subr.mxu0 0.0
    %2291 = vmatpush1.xpose.msra.mxu0 0.0
    %2292 = vmatprep.subr.mxu0 0.0
    %2293 = vmatpush1.xpose.msra.mxu0 0.0
    %2294 = vmatprep.subr.mxu0 0.0
    %2295 = vmatpush1.xpose.msra.mxu0 0.0
    %2296 = vmatprep.subr.mxu0 0.0
    %2297 = vmatpush1.xpose.msra.mxu0 0.0
    %2298 = vmatprep.subr.mxu0 0.0
    %2299 = vmatpush1.xpose.msra.mxu0 0.0
    %2300 = vmatprep.subr.mxu0 0.0
    %2301 = vmatpush1.xpose.msra.mxu0 0.0
    %2302 = vmatprep.subr.mxu0 0.0
    %2303 = vmatpush1.xpose.msra.mxu0 0.0
    %2304 = vmatprep.subr.mxu0 0.0
    %2305 = vmatpush1.xpose.msra.mxu0 0.0
    %2306 = vmatprep.subr.mxu0 0.0
    %2307 = vmatpush1.xpose.msra.mxu0 0.0
    %2308 = vmatprep.subr.mxu0 0.0
    %2309 = vmatpush1.xpose.msra.mxu0 0.0
    %2310 = vmatprep.subr.mxu0 0.0
    %2311 = vmatpush1.xpose.msra.mxu0 0.0
    %2312 = vmatprep.subr.mxu0 0.0
    %2313 = vmatpush1.xpose.msra.mxu0 0.0
    %2314 = vmatprep.subr.mxu0 0.0
    %2315 = vmatpush1.xpose.msra.mxu0 0.0
    %2316 = vmatprep.subr.mxu0 0.0
    %2317 = vmatpush1.xpose.msra.mxu0 0.0
    %2318 = vmatprep.subr.mxu0 0.0
    %2319 = vmatpush1.xpose.msra.mxu0 0.0
    %2320 = vmatprep.subr.mxu0 0.0
    %2321 = vmatpush1.xpose.msra.mxu0 0.0
    %2322 = vmatprep.subr.mxu0 0.0
    %2323 = vmatpush1.xpose.msra.mxu0 0.0
    %2324 = vmatprep.subr.mxu0 0.0
    %2325 = vmatpush1.xpose.msra.mxu0 0.0
    %2326 = vmatprep.subr.mxu0 0.0
    %2327 = vmatpush1.xpose.msra.mxu0 0.0
    %2328 = vmatprep.subr.mxu0 0.0
    %2329 = vmatpush1.xpose.msra.mxu0 0.0
    %2330 = vmatprep.subr.mxu0 0.0
    %2331 = vmatpush1.xpose.msra.mxu0 0.0
    %2332 = vmatprep.subr.mxu0 0.0
    %2333 = vmatpush1.xpose.msra.mxu0 0.0
    %2334 = vmatprep.subr.mxu0 0.0
    %2335 = vmatpush1.xpose.msra.mxu0 0.0
    %2336 = vmatprep.subr.mxu0 0.0
    %2337 = vmatpush1.xpose.msra.mxu0 0.0
    %2338 = vmatprep.mubr.f32.mxu0 0.0
    %2339 = vmatmul.mubr.f32.gmra.mrb[0].mxu0 %v2270
    %v2340 = vpop.f32.mrb[0].mxu0
    %v2341 = vadd.f32 0.0, %v2340
    %v2342 = vpop.f32.mrb[0].mxu0
    %2343 = vdwg.mxu0
    %v2344 = vmul.f32 %v2341, 0.35355338
    %v2345 = vsel %vm558, %v2344, -inf
    %2346 = vmax.xlane.f32.xlu0 %v2345
    %v2347 = vpop.xlane.xlu0 %2346
    %v2348 = vsub.f32 %v2344, %v2347
    %v2349 = vmul.f32 %v2348, 1.442695
    %v2350 = vpow.pop %v2349
    %v2351 = vsel %vm558, %v2350, 0.0
    %2352 = vadd.xlane.f32.xlu0 %v2351
    %v2353 = vpop.xlane.xlu0 %2352
    %v2354 = vrcp.pop %v2353
    %v2355 = vmul.f32 %v2350, %v2354
    %2356 = vrot.lane.b32.xlu0 %v1773, 48
    %v2357 = vpop.permute.xlu0 %2356
    %v2359 = vsel %vm572, %v2355, 0
    %v2361 = vsel %vm576, %v2357, 0
    %2363 = vmatprep.subr.mxu0 0.0
    %2364 = vmatpush1.msra.mxu0 %v2361
    %2365 = vmatprep.subr.mxu0 0.0
    %2366 = vmatpush1.msra.mxu0 0.0
    %2367 = vmatprep.subr.mxu0 0.0
    %2368 = vmatpush1.msra.mxu0 0.0
    %2369 = vmatprep.subr.mxu0 0.0
    %2370 = vmatpush1.msra.mxu0 0.0
    %2371 = vmatprep.subr.mxu0 0.0
    %2372 = vmatpush1.msra.mxu0 0.0
    %2373 = vmatprep.subr.mxu0 0.0
    %2374 = vmatpush1.msra.mxu0 0.0
    %2375 = vmatprep.subr.mxu0 0.0
    %2376 = vmatpush1.msra.mxu0 0.0
    %2377 = vmatprep.subr.mxu0 0.0
    %2378 = vmatpush1.msra.mxu0 0.0
    %2379 = vmatprep.subr.mxu0 0.0
    %2380 = vmatpush1.msra.mxu0 0.0
    %2381 = vmatprep.subr.mxu0 0.0
    %2382 = vmatpush1.msra.mxu0 0.0
    %2383 = vmatprep.subr.mxu0 0.0
    %2384 = vmatpush1.msra.mxu0 0.0
    %2385 = vmatprep.subr.mxu0 0.0
    %2386 = vmatpush1.msra.mxu0 0.0
    %2387 = vmatprep.subr.mxu0 0.0
    %2388 = vmatpush1.msra.mxu0 0.0
    %2389 = vmatprep.subr.mxu0 0.0
    %2390 = vmatpush1.msra.mxu0 0.0
    %2391 = vmatprep.subr.mxu0 0.0
    %2392 = vmatpush1.msra.mxu0 0.0
    %2393 = vmatprep.subr.mxu0 0.0
    %2394 = vmatpush1.msra.mxu0 0.0
    %2395 = vmatprep.subr.mxu0 0.0
    %2396 = vmatpush1.msra.mxu0 0.0
    %2397 = vmatprep.subr.mxu0 0.0
    %2398 = vmatpush1.msra.mxu0 0.0
    %2399 = vmatprep.subr.mxu0 0.0
    %2400 = vmatpush1.msra.mxu0 0.0
    %2401 = vmatprep.subr.mxu0 0.0
    %2402 = vmatpush1.msra.mxu0 0.0
    %2403 = vmatprep.subr.mxu0 0.0
    %2404 = vmatpush1.msra.mxu0 0.0
    %2405 = vmatprep.subr.mxu0 0.0
    %2406 = vmatpush1.msra.mxu0 0.0
    %2407 = vmatprep.subr.mxu0 0.0
    %2408 = vmatpush1.msra.mxu0 0.0
    %2409 = vmatprep.subr.mxu0 0.0
    %2410 = vmatpush1.msra.mxu0 0.0
    %2411 = vmatprep.subr.mxu0 0.0
    %2412 = vmatpush1.msra.mxu0 0.0
    %2413 = vmatprep.subr.mxu0 0.0
    %2414 = vmatpush1.msra.mxu0 0.0
    %2415 = vmatprep.subr.mxu0 0.0
    %2416 = vmatpush1.msra.mxu0 0.0
    %2417 = vmatprep.subr.mxu0 0.0
    %2418 = vmatpush1.msra.mxu0 0.0
    %2419 = vmatprep.subr.mxu0 0.0
    %2420 = vmatpush1.msra.mxu0 0.0
    %2421 = vmatprep.subr.mxu0 0.0
    %2422 = vmatpush1.msra.mxu0 0.0
    %2423 = vmatprep.subr.mxu0 0.0
    %2424 = vmatpush1.msra.mxu0 0.0
    %2425 = vmatprep.subr.mxu0 0.0
    %2426 = vmatpush1.msra.mxu0 0.0
    %2427 = vmatprep.mubr.f32.mxu0 0.0
    %2428 = vmatmul.mubr.f32.gmra.mrb[0].mxu0 %v2359
    %v2429 = vpop.f32.mrb[0].mxu0
    %v2430 = vadd.f32 0.0, %v2429
    %v2431 = vpop.f32.mrb[0].mxu0
    %2432 = vdwg.mxu0
    %v2434 = vsel %vm482, %v2430, 0
    %2436 = vmatprep.subr.mxu0 0.0
    %2437 = vmatpush1.msra.mxu0 %v1778
    %2438 = vmatprep.subr.mxu0 0.0
    %2439 = vmatpush1.msra.mxu0 0.0
    %2440 = vmatprep.subr.mxu0 0.0
    %2441 = vmatpush1.msra.mxu0 0.0
    %2442 = vmatprep.subr.mxu0 0.0
    %2443 = vmatpush1.msra.mxu0 0.0
    %2444 = vmatprep.subr.mxu0 0.0
    %2445 = vmatpush1.msra.mxu0 0.0
    %2446 = vmatprep.subr.mxu0 0.0
    %2447 = vmatpush1.msra.mxu0 0.0
    %2448 = vmatprep.subr.mxu0 0.0
    %2449 = vmatpush1.msra.mxu0 0.0
    %2450 = vmatprep.subr.mxu0 0.0
    %2451 = vmatpush1.msra.mxu0 0.0
    %2452 = vmatprep.subr.mxu0 0.0
    %2453 = vmatpush1.msra.mxu0 0.0
    %2454 = vmatprep.subr.mxu0 0.0
    %2455 = vmatpush1.msra.mxu0 0.0
    %2456 = vmatprep.subr.mxu0 0.0
    %2457 = vmatpush1.msra.mxu0 0.0
    %2458 = vmatprep.subr.mxu0 0.0
    %2459 = vmatpush1.msra.mxu0 0.0
    %2460 = vmatprep.subr.mxu0 0.0
    %2461 = vmatpush1.msra.mxu0 0.0
    %2462 = vmatprep.subr.mxu0 0.0
    %2463 = vmatpush1.msra.mxu0 0.0
    %2464 = vmatprep.subr.mxu0 0.0
    %2465 = vmatpush1.msra.mxu0 0.0
    %2466 = vmatprep.subr.mxu0 0.0
    %2467 = vmatpush1.msra.mxu0 0.0
    %2468 = vmatprep.subr.mxu0 0.0
    %2469 = vmatpush1.msra.mxu0 0.0
    %2470 = vmatprep.subr.mxu0 0.0
    %2471 = vmatpush1.msra.mxu0 0.0
    %2472 = vmatprep.subr.mxu0 0.0
    %2473 = vmatpush1.msra.mxu0 0.0
    %2474 = vmatprep.subr.mxu0 0.0
    %2475 = vmatpush1.msra.mxu0 0.0
    %2476 = vmatprep.subr.mxu0 0.0
    %2477 = vmatpush1.msra.mxu0 0.0
    %2478 = vmatprep.subr.mxu0 0.0
    %2479 = vmatpush1.msra.mxu0 0.0
    %2480 = vmatprep.subr.mxu0 0.0
    %2481 = vmatpush1.msra.mxu0 0.0
    %2482 = vmatprep.subr.mxu0 0.0
    %2483 = vmatpush1.msra.mxu0 0.0
    %2484 = vmatprep.subr.mxu0 0.0
    %2485 = vmatpush1.msra.mxu0 0.0
    %2486 = vmatprep.subr.mxu0 0.0
    %2487 = vmatpush1.msra.mxu0 0.0
    %2488 = vmatprep.subr.mxu0 0.0
    %2489 = vmatpush1.msra.mxu0 0.0
    %2490 = vmatprep.subr.mxu0 0.0
    %2491 = vmatpush1.msra.mxu0 0.0
    %2492 = vmatprep.subr.mxu0 0.0
    %2493 = vmatpush1.msra.mxu0 0.0
    %2494 = vmatprep.subr.mxu0 0.0
    %2495 = vmatpush1.msra.mxu0 0.0
    %2496 = vmatprep.subr.mxu0 0.0
    %2497 = vmatpush1.msra.mxu0 0.0
    %2498 = vmatprep.subr.mxu0 0.0
    %2499 = vmatpush1.msra.mxu0 0.0
    %2500 = vmatprep.mubr.f32.mxu0 0.0
    %2501 = vmatmul.mubr.f32.gmra.mrb[0].mxu0 %v2434
    %v2502 = vpop.f32.mrb[0].mxu0
    %v2503 = vadd.f32 0.0, %v2502
    %v2504 = vpop.f32.mrb[0].mxu0
    %2505 = vdwg.mxu0
    %v2506 = vadd.f32 %v2265, %v2503
    %2507 = vrot.lane.b32.xlu0 %v1773, 104
    %v2508 = vpop.permute.xlu0 %2507
    %2509 = vrot.lane.b32.xlu0 %v1773, 72
    %v2510 = vpop.permute.xlu0 %2509
    %v2511 = vsel %vm482, %v2508, 0
    %v2513 = vsel %vm482, %v2510, 0
    %2515 = vmatprep.subr.mxu0 0.0
    %2516 = vmatpush1.xpose.msra.mxu0 %v2513
    %2517 = vmatprep.subr.mxu0 0.0
    %2518 = vmatpush1.xpose.msra.mxu0 0.0
    %2519 = vmatprep.subr.mxu0 0.0
    %2520 = vmatpush1.xpose.msra.mxu0 0.0
    %2521 = vmatprep.subr.mxu0 0.0
    %2522 = vmatpush1.xpose.msra.mxu0 0.0
    %2523 = vmatprep.subr.mxu0 0.0
    %2524 = vmatpush1.xpose.msra.mxu0 0.0
    %2525 = vmatprep.subr.mxu0 0.0
    %2526 = vmatpush1.xpose.msra.mxu0 0.0
    %2527 = vmatprep.subr.mxu0 0.0
    %2528 = vmatpush1.xpose.msra.mxu0 0.0
    %2529 = vmatprep.subr.mxu0 0.0
    %2530 = vmatpush1.xpose.msra.mxu0 0.0
    %2531 = vmatprep.subr.mxu0 0.0
    %2532 = vmatpush1.xpose.msra.mxu0 0.0
    %2533 = vmatprep.subr.mxu0 0.0
    %2534 = vmatpush1.xpose.msra.mxu0 0.0
    %2535 = vmatprep.subr.mxu0 0.0
    %2536 = vmatpush1.xpose.msra.mxu0 0.0
    %2537 = vmatprep.subr.mxu0 0.0
    %2538 = vmatpush1.xpose.msra.mxu0 0.0
    %2539 = vmatprep.subr.mxu0 0.0
    %2540 = vmatpush1.xpose.msra.mxu0 0.0
    %2541 = vmatprep.subr.mxu0 0.0
    %2542 = vmatpush1.xpose.msra.mxu0 0.0
    %2543 = vmatprep.subr.mxu0 0.0
    %2544 = vmatpush1.xpose.msra.mxu0 0.0
    %2545 = vmatprep.subr.mxu0 0.0
    %2546 = vmatpush1.xpose.msra.mxu0 0.0
    %2547 = vmatprep.subr.mxu0 0.0
    %2548 = vmatpush1.xpose.msra.mxu0 0.0
    %2549 = vmatprep.subr.mxu0 0.0
    %2550 = vmatpush1.xpose.msra.mxu0 0.0
    %2551 = vmatprep.subr.mxu0 0.0
    %2552 = vmatpush1.xpose.msra.mxu0 0.0
    %2553 = vmatprep.subr.mxu0 0.0
    %2554 = vmatpush1.xpose.msra.mxu0 0.0
    %2555 = vmatprep.subr.mxu0 0.0
    %2556 = vmatpush1.xpose.msra.mxu0 0.0
    %2557 = vmatprep.subr.mxu0 0.0
    %2558 = vmatpush1.xpose.msra.mxu0 0.0
    %2559 = vmatprep.subr.mxu0 0.0
    %2560 = vmatpush1.xpose.msra.mxu0 0.0
    %2561 = vmatprep.subr.mxu0 0.0
    %2562 = vmatpush1.xpose.msra.mxu0 0.0
    %2563 = vmatprep.subr.mxu0 0.0
    %2564 = vmatpush1.xpose.msra.mxu0 0.0
    %2565 = vmatprep.subr.mxu0 0.0
    %2566 = vmatpush1.xpose.msra.mxu0 0.0
    %2567 = vmatprep.subr.mxu0 0.0
    %2568 = vmatpush1.xpose.msra.mxu0 0.0
    %2569 = vmatprep.subr.mxu0 0.0
    %2570 = vmatpush1.xpose.msra.mxu0 0.0
    %2571 = vmatprep.subr.mxu0 0.0
    %2572 = vmatpush1.xpose.msra.mxu0 0.0
    %2573 = vmatprep.subr.mxu0 0.0
    %2574 = vmatpush1.xpose.msra.mxu0 0.0
    %2575 = vmatprep.subr.mxu0 0.0
    %2576 = vmatpush1.xpose.msra.mxu0 0.0
    %2577 = vmatprep.subr.mxu0 0.0
    %2578 = vmatpush1.xpose.msra.mxu0 0.0
    %2579 = vmatprep.mubr.f32.mxu0 0.0
    %2580 = vmatmul.mubr.f32.gmra.mrb[0].mxu0 %v2511
    %v2581 = vpop.f32.mrb[0].mxu0
    %v2582 = vadd.f32 0.0, %v2581
    %v2583 = vpop.f32.mrb[0].mxu0
    %2584 = vdwg.mxu0
    %v2585 = vmul.f32 %v2582, 0.35355338
    %v2586 = vsel %vm558, %v2585, -inf
    %2587 = vmax.xlane.f32.xlu0 %v2586
    %v2588 = vpop.xlane.xlu0 %2587
    %v2589 = vsub.f32 %v2585, %v2588
    %v2590 = vmul.f32 %v2589, 1.442695
    %v2591 = vpow.pop %v2590
    %v2592 = vsel %vm558, %v2591, 0.0
    %2593 = vadd.xlane.f32.xlu0 %v2592
    %v2594 = vpop.xlane.xlu0 %2593
    %v2595 = vrcp.pop %v2594
    %v2596 = vmul.f32 %v2591, %v2595
    %2597 = vrot.lane.b32.xlu0 %v1773, 40
    %v2598 = vpop.permute.xlu0 %2597
    %v2600 = vsel %vm572, %v2596, 0
    %v2602 = vsel %vm576, %v2598, 0
    %2604 = vmatprep.subr.mxu0 0.0
    %2605 = vmatpush1.msra.mxu0 %v2602
    %2606 = vmatprep.subr.mxu0 0.0
    %2607 = vmatpush1.msra.mxu0 0.0
    %2608 = vmatprep.subr.mxu0 0.0
    %2609 = vmatpush1.msra.mxu0 0.0
    %2610 = vmatprep.subr.mxu0 0.0
    %2611 = vmatpush1.msra.mxu0 0.0
    %2612 = vmatprep.subr.mxu0 0.0
    %2613 = vmatpush1.msra.mxu0 0.0
    %2614 = vmatprep.subr.mxu0 0.0
    %2615 = vmatpush1.msra.mxu0 0.0
    %2616 = vmatprep.subr.mxu0 0.0
    %2617 = vmatpush1.msra.mxu0 0.0
    %2618 = vmatprep.subr.mxu0 0.0
    %2619 = vmatpush1.msra.mxu0 0.0
    %2620 = vmatprep.subr.mxu0 0.0
    %2621 = vmatpush1.msra.mxu0 0.0
    %2622 = vmatprep.subr.mxu0 0.0
    %2623 = vmatpush1.msra.mxu0 0.0
    %2624 = vmatprep.subr.mxu0 0.0
    %2625 = vmatpush1.msra.mxu0 0.0
    %2626 = vmatprep.subr.mxu0 0.0
    %2627 = vmatpush1.msra.mxu0 0.0
    %2628 = vmatprep.subr.mxu0 0.0
    %2629 = vmatpush1.msra.mxu0 0.0
    %2630 = vmatprep.subr.mxu0 0.0
    %2631 = vmatpush1.msra.mxu0 0.0
    %2632 = vmatprep.subr.mxu0 0.0
    %2633 = vmatpush1.msra.mxu0 0.0
    %2634 = vmatprep.subr.mxu0 0.0
    %2635 = vmatpush1.msra.mxu0 0.0
    %2636 = vmatprep.subr.mxu0 0.0
    %2637 = vmatpush1.msra.mxu0 0.0
    %2638 = vmatprep.subr.mxu0 0.0
    %2639 = vmatpush1.msra.mxu0 0.0
    %2640 = vmatprep.subr.mxu0 0.0
    %2641 = vmatpush1.msra.mxu0 0.0
    %2642 = vmatprep.subr.mxu0 0.0
    %2643 = vmatpush1.msra.mxu0 0.0
    %2644 = vmatprep.subr.mxu0 0.0
    %2645 = vmatpush1.msra.mxu0 0.0
    %2646 = vmatprep.subr.mxu0 0.0
    %2647 = vmatpush1.msra.mxu0 0.0
    %2648 = vmatprep.subr.mxu0 0.0
    %2649 = vmatpush1.msra.mxu0 0.0
    %2650 = vmatprep.subr.mxu0 0.0
    %2651 = vmatpush1.msra.mxu0 0.0
    %2652 = vmatprep.subr.mxu0 0.0
    %2653 = vmatpush1.msra.mxu0 0.0
    %2654 = vmatprep.subr.mxu0 0.0
    %2655 = vmatpush1.msra.mxu0 0.0
    %2656 = vmatprep.subr.mxu0 0.0
    %2657 = vmatpush1.msra.mxu0 0.0
    %2658 = vmatprep.subr.mxu0 0.0
    %2659 = vmatpush1.msra.mxu0 0.0
    %2660 = vmatprep.subr.mxu0 0.0
    %2661 = vmatpush1.msra.mxu0 0.0
    %2662 = vmatprep.subr.mxu0 0.0
    %2663 = vmatpush1.msra.mxu0 0.0
    %2664 = vmatprep.subr.mxu0 0.0
    %2665 = vmatpush1.msra.mxu0 0.0
    %2666 = vmatprep.subr.mxu0 0.0
    %2667 = vmatpush1.msra.mxu0 0.0
    %2668 = vmatprep.mubr.f32.mxu0 0.0
    %2669 = vmatmul.mubr.f32.gmra.mrb[0].mxu0 %v2600
    %v2670 = vpop.f32.mrb[0].mxu0
    %v2671 = vadd.f32 0.0, %v2670
    %v2672 = vpop.f32.mrb[0].mxu0
    %2673 = vdwg.mxu0
    %v2675 = vsel %vm482, %v2671, 0
    %2677 = vmatprep.subr.mxu0 0.0
    %2678 = vmatpush1.msra.mxu0 %v1779
    %2679 = vmatprep.subr.mxu0 0.0
    %2680 = vmatpush1.msra.mxu0 0.0
    %2681 = vmatprep.subr.mxu0 0.0
    %2682 = vmatpush1.msra.mxu0 0.0
    %2683 = vmatprep.subr.mxu0 0.0
    %2684 = vmatpush1.msra.mxu0 0.0
    %2685 = vmatprep.subr.mxu0 0.0
    %2686 = vmatpush1.msra.mxu0 0.0
    %2687 = vmatprep.subr.mxu0 0.0
    %2688 = vmatpush1.msra.mxu0 0.0
    %2689 = vmatprep.subr.mxu0 0.0
    %2690 = vmatpush1.msra.mxu0 0.0
    %2691 = vmatprep.subr.mxu0 0.0
    %2692 = vmatpush1.msra.mxu0 0.0
    %2693 = vmatprep.subr.mxu0 0.0
    %2694 = vmatpush1.msra.mxu0 0.0
    %2695 = vmatprep.subr.mxu0 0.0
    %2696 = vmatpush1.msra.mxu0 0.0
    %2697 = vmatprep.subr.mxu0 0.0
    %2698 = vmatpush1.msra.mxu0 0.0
    %2699 = vmatprep.subr.mxu0 0.0
    %2700 = vmatpush1.msra.mxu0 0.0
    %2701 = vmatprep.subr.mxu0 0.0
    %2702 = vmatpush1.msra.mxu0 0.0
    %2703 = vmatprep.subr.mxu0 0.0
    %2704 = vmatpush1.msra.mxu0 0.0
    %2705 = vmatprep.subr.mxu0 0.0
    %2706 = vmatpush1.msra.mxu0 0.0
    %2707 = vmatprep.subr.mxu0 0.0
    %2708 = vmatpush1.msra.mxu0 0.0
    %2709 = vmatprep.subr.mxu0 0.0
    %2710 = vmatpush1.msra.mxu0 0.0
    %2711 = vmatprep.subr.mxu0 0.0
    %2712 = vmatpush1.msra.mxu0 0.0
    %2713 = vmatprep.subr.mxu0 0.0
    %2714 = vmatpush1.msra.mxu0 0.0
    %2715 = vmatprep.subr.mxu0 0.0
    %2716 = vmatpush1.msra.mxu0 0.0
    %2717 = vmatprep.subr.mxu0 0.0
    %2718 = vmatpush1.msra.mxu0 0.0
    %2719 = vmatprep.subr.mxu0 0.0
    %2720 = vmatpush1.msra.mxu0 0.0
    %2721 = vmatprep.subr.mxu0 0.0
    %2722 = vmatpush1.msra.mxu0 0.0
    %2723 = vmatprep.subr.mxu0 0.0
    %2724 = vmatpush1.msra.mxu0 0.0
    %2725 = vmatprep.subr.mxu0 0.0
    %2726 = vmatpush1.msra.mxu0 0.0
    %2727 = vmatprep.subr.mxu0 0.0
    %2728 = vmatpush1.msra.mxu0 0.0
    %2729 = vmatprep.subr.mxu0 0.0
    %2730 = vmatpush1.msra.mxu0 0.0
    %2731 = vmatprep.subr.mxu0 0.0
    %2732 = vmatpush1.msra.mxu0 0.0
    %2733 = vmatprep.subr.mxu0 0.0
    %2734 = vmatpush1.msra.mxu0 0.0
    %2735 = vmatprep.subr.mxu0 0.0
    %2736 = vmatpush1.msra.mxu0 0.0
    %2737 = vmatprep.subr.mxu0 0.0
    %2738 = vmatpush1.msra.mxu0 0.0
    %2739 = vmatprep.subr.mxu0 0.0
    %2740 = vmatpush1.msra.mxu0 0.0
    %2741 = vmatprep.mubr.f32.mxu0 0.0
    %2742 = vmatmul.mubr.f32.gmra.mrb[0].mxu0 %v2675
    %v2743 = vpop.f32.mrb[0].mxu0
    %v2744 = vadd.f32 0.0, %v2743
    %v2745 = vpop.f32.mrb[0].mxu0
    %2746 = vdwg.mxu0
    %v2747 = vadd.f32 %v2506, %v2744
    %v2748 = vld [vmem:[#allocation2 + $0x140] sm:$0xff]
    %v2749 = vld [vmem:[#allocation2 + $0x148] sm:$0xff]
    %v2750 = vld [vmem:[#allocation2 + $0x150] sm:$0xff]
    %v2751 = vld [vmem:[#allocation2 + $0x158] sm:$0xff]
    %v2753 = vsel %vm45, %v2747, 0
    %2755 = vmatprep.subr.mxu0 0.0
    %2756 = vmatpush1.msra.mxu0 %v2748
    %2757 = vmatprep.subr.mxu0 0.0
    %2758 = vmatpush1.msra.mxu0 %v2749
    %2759 = vmatprep.subr.mxu0 0.0
    %2760 = vmatpush1.msra.mxu0 %v2750
    %2761 = vmatprep.subr.mxu0 0.0
    %2762 = vmatpush1.msra.mxu0 %v2751
    %2763 = vmatprep.subr.mxu0 0.0
    %2764 = vmatpush1.msra.mxu0 0.0
    %2765 = vmatprep.subr.mxu0 0.0
    %2766 = vmatpush1.msra.mxu0 0.0
    %2767 = vmatprep.subr.mxu0 0.0
    %2768 = vmatpush1.msra.mxu0 0.0
    %2769 = vmatprep.subr.mxu0 0.0
    %2770 = vmatpush1.msra.mxu0 0.0
    %2771 = vmatprep.subr.mxu0 0.0
    %2772 = vmatpush1.msra.mxu0 0.0
    %2773 = vmatprep.subr.mxu0 0.0
    %2774 = vmatpush1.msra.mxu0 0.0
    %2775 = vmatprep.subr.mxu0 0.0
    %2776 = vmatpush1.msra.mxu0 0.0
    %2777 = vmatprep.subr.mxu0 0.0
    %2778 = vmatpush1.msra.mxu0 0.0
    %2779 = vmatprep.subr.mxu0 0.0
    %2780 = vmatpush1.msra.mxu0 0.0
    %2781 = vmatprep.subr.mxu0 0.0
    %2782 = vmatpush1.msra.mxu0 0.0
    %2783 = vmatprep.subr.mxu0 0.0
    %2784 = vmatpush1.msra.mxu0 0.0
    %2785 = vmatprep.subr.mxu0 0.0
    %2786 = vmatpush1.msra.mxu0 0.0
    %2787 = vmatprep.subr.mxu0 0.0
    %2788 = vmatpush1.msra.mxu0 0.0
    %2789 = vmatprep.subr.mxu0 0.0
    %2790 = vmatpush1.msra.mxu0 0.0
    %2791 = vmatprep.subr.mxu0 0.0
    %2792 = vmatpush1.msra.mxu0 0.0
    %2793 = vmatprep.subr.mxu0 0.0
    %2794 = vmatpush1.msra.mxu0 0.0
    %2795 = vmatprep.subr.mxu0 0.0
    %2796 = vmatpush1.msra.mxu0 0.0
    %2797 = vmatprep.subr.mxu0 0.0
    %2798 = vmatpush1.msra.mxu0 0.0
    %2799 = vmatprep.subr.mxu0 0.0
    %2800 = vmatpush1.msra.mxu0 0.0
    %2801 = vmatprep.subr.mxu0 0.0
    %2802 = vmatpush1.msra.mxu0 0.0
    %2803 = vmatprep.subr.mxu0 0.0
    %2804 = vmatpush1.msra.mxu0 0.0
    %2805 = vmatprep.subr.mxu0 0.0
    %2806 = vmatpush1.msra.mxu0 0.0
    %2807 = vmatprep.subr.mxu0 0.0
    %2808 = vmatpush1.msra.mxu0 0.0
    %2809 = vmatprep.subr.mxu0 0.0
    %2810 = vmatpush1.msra.mxu0 0.0
    %2811 = vmatprep.subr.mxu0 0.0
    %2812 = vmatpush1.msra.mxu0 0.0
    %2813 = vmatprep.subr.mxu0 0.0
    %2814 = vmatpush1.msra.mxu0 0.0
    %2815 = vmatprep.subr.mxu0 0.0
    %2816 = vmatpush1.msra.mxu0 0.0
    %2817 = vmatprep.subr.mxu0 0.0
    %2818 = vmatpush1.msra.mxu0 0.0
    %2819 = vmatprep.mubr.f32.mxu0 0.0
    %2820 = vmatmul.mubr.f32.gmra.mrb[0].mxu0 %v2753
    %v2821 = vpop.f32.mrb[0].mxu0
    %v2822 = vadd.f32 0.0, %v2821
    %v2823 = vpop.f32.mrb[0].mxu0
    %2824 = vdwg.mxu0
    %v2825 = vadd.f32 %v1527, %v2822
    %v2826 = vlaneseq
    %v2827 = vand.u32 %v2826, 127
    %vm2828 = vcmp.lt.s32.totalorder %v2827, 4
    %v2829 = vsel %vm2828, %v2825, -1e+30
    %v2830 = vsel %vm576, %v2829, -inf
    %2831 = vmax.xlane.f32.xlu0 %v2830
    %v2832 = vpop.xlane.xlu0 %2831
    %v2833 = vsub.f32 %v2829, %v2832
    %v2834 = vmul.f32 %v2833, 1.442695
    %v2835 = vpow.pop %v2834
    %v2836 = vsel %vm576, %v2835, 0.0
    %2837 = vadd.xlane.f32.xlu0 %v2836
    %v2838 = vpop.xlane.xlu0 %2837
    %v2839 = vrcp.pop %v2838
    %v2840 = vmul.f32 %v2835, %v2839
    %2841 = vst [vmem:[#allocation5] sm:$0x3] %v2840
    // Predicated region
    $region18: #{threat_detection_forward.3} parent=1 // pred_check
      _
    $region19: #{threat_detection_forward.3} parent=1 // pred_check_branch
      %2843 = sbr.rel (0) target = $region21
    $region20: #{threat_detection_forward.3} parent=1 // pred_region
      %s2845 = ssub.s32 32, 32
      %2846 = vsyncadd [#allocation4], %s2845
      %s2848 = sshll.u32 [#allocation5], 4
      %s2849 = int_to_ptr.vmem [resolvable:$true] %s2848
      %2851 = dma.vmem_to_hbm [thread:$0]  %s2849, 32, %s3, [#allocation4]
    $region21: #{threat_detection_forward.3} parent=1 // pred_fallthru
      _
    // Predicated region
    $region22: #{threat_detection_forward.3} parent=1 // pred_check
      _
    $region23: #{threat_detection_forward.3} parent=1 // pred_check_branch
      %2853 = sbr.rel (0) target = $region25
    $region24: #{threat_detection_forward.3} parent=1 // pred_region
      %2854 = dma.done [#allocation4], 32
    $region25: #{threat_detection_forward.3} parent=1 // pred_fallthru
      _
    %2855 = vsyncpa [#allocation3], 1
    %2856 = vsyncpa [#allocation4], 1

</llo_original>
